<compile_context>
chip_gen: v6e
topology: v6e:2x2x1
jax: 0.10.0
libtpu: 0.0.40
codegen_flags: <defaults>
</compile_context>

<pallas_src>
import math
import jax
import jax.numpy as jnp
from jax.experimental import pallas as pl
from jax.experimental.pallas import tpu as pltpu

# ---------------- small "text_config" ----------------
VOCAB = 100        # vocab_size
MAX_POS = 16       # max_position_embeddings
TYPE_VOCAB = 2     # type_vocab_size
B = 2              # batch
S = 8              # sequence length
D = 32             # hidden_size
H = 4              # num_attention_heads
DH = D // H        # head dim
I = 64             # intermediate_size
N_LAYERS = 2       # num_hidden_layers
LN_EPS = 1e-12     # BERT layer_norm_eps


def _layernorm(x, g, b):
    # E[x^2] - mu^2 form: both XLU reductions are independent of each other.
    mu = jnp.mean(x, axis=-1, keepdims=True)
    ms = jnp.mean(x * x, axis=-1, keepdims=True)
    var = jnp.maximum(ms - mu * mu, 0.0)
    return (x - mu) * jax.lax.rsqrt(var + LN_EPS) * g + b


# ---------------- fused Pallas kernel (one batch element per grid step) ------
def fused_text_encoder_kernel(x_ref, kb_ref, emb_g_ref, emb_b_ref,
                              wqkv_ref, bqkv_ref, wo_ref, bo_ref,
                              ln1g_ref, ln1b_ref, wi_ref, bi_ref,
                              w2_ref, b2_ref, ln2g_ref, ln2b_ref,
                              o_ref):
    # Embeddings LayerNorm on this batch element's (S, D) slab.
    x = _layernorm(x_ref[...].reshape(S, D).astype(jnp.float32),
                   emb_g_ref[...], emb_b_ref[...])

    # Key-padding bias, (1, S): broadcasts over query rows.  Built from a tiny
    # per-batch row instead of a materialized (B*S, B*S) slab.
    kb = kb_ref[...].reshape(1, S).astype(jnp.float32)
    inv_sqrt2 = jnp.float32(1.0 / math.sqrt(2.0))

    for l in range(N_LAYERS):                          # static unroll over layers
        # ----- multi-head self-attention -----
        # wqkv is bf16 with 1/sqrt(DH) already folded into the Q columns.
        qkv = (jnp.dot(x.astype(jnp.bfloat16), wqkv_ref[l],
                       preferred_element_type=jnp.float32)
               + bqkv_ref[l])                          # (S, 3D) f32

        ctx_parts = []
        for h in range(H):                             # static unroll over heads
            qh = qkv[:, h * DH:(h + 1) * DH]           # (S, DH)
            kh = qkv[:, D + h * DH:D + (h + 1) * DH]   # (S, DH)
            vh = qkv[:, 2 * D + h * DH:2 * D + (h + 1) * DH]

            # Q·K^T without materializing a transpose (contract last dims).
            scores = jax.lax.dot_general(
                qh.astype(jnp.bfloat16), kh.astype(jnp.bfloat16),
                (((1,), (1,)), ((), ())),
                preferred_element_type=jnp.float32) + kb          # (S, S)
            scores = scores - jnp.max(scores, axis=-1, keepdims=True)
            p = jnp.exp(scores)
            p = p * pl.reciprocal(jnp.sum(p, axis=-1, keepdims=True), approx=True)

            ctx_parts.append(jnp.dot(p.astype(jnp.bfloat16),
                                     vh.astype(jnp.bfloat16),
                                     preferred_element_type=jnp.float32))

        # Single output projection per layer (one (S,D)@(D,D) matmul instead of
        # H accumulated (S,DH)@(DH,D) matmuls).
        ctx = jnp.concatenate(ctx_parts, axis=-1)                  # (S, D)
        attn = jnp.dot(ctx.astype(jnp.bfloat16), wo_ref[l],
                       preferred_element_type=jnp.float32) + bo_ref[l]
        x = _layernorm(attn + x, ln1g_ref[l], ln1b_ref[l])

        # ----- GELU FFN (exact erf form, matching HF BERT) -----
        inter = (jnp.dot(x.astype(jnp.bfloat16), wi_ref[l],
                         preferred_element_type=jnp.float32) + bi_ref[l])
        inter = 0.5 * inter * (1.0 + jax.lax.erf(inter * inv_sqrt2))
        ffn = (jnp.dot(inter.astype(jnp.bfloat16), w2_ref[l],
                       preferred_element_type=jnp.float32) + b2_ref[l])
        x = _layernorm(ffn + x, ln2g_ref[l], ln2b_ref[l])

    o_ref[...] = x.reshape(1, S, D).astype(o_ref.dtype)


# ---------------- wrapper ----------------
def text_encoder_forward(params, input_ids, attention_mask, token_type_ids):
    # Embedding gathers are glue (plain JAX); everything else is in-kernel.
    positions = jnp.arange(S, dtype=jnp.int32)[None, :]                 # (1, S)
    emb = (params["word_emb"][input_ids]
           + params["pos_emb"][positions]
           + params["type_emb"][token_type_ids]).astype(jnp.float32)    # (B, S, D)

    # (B, 1, S) key-padding bias row (BERT convention: (1 - mask) * -10000).
    key_bias = ((1.0 - attention_mask.astype(jnp.float32))
                * jnp.float32(-10000.0)).reshape(B, 1, S)

    st = params["stacked"]

    def full_spec(a):
        # Whole array resident in VMEM; same block for every grid step.
        return pl.BlockSpec(a.shape, lambda b, _nd=a.ndim: (0,) * _nd)

    out = pl.pallas_call(
        fused_text_encoder_kernel,
        out_shape=jax.ShapeDtypeStruct((B, S, D), jnp.float32),
        grid_spec=pltpu.PrefetchScalarGridSpec(
            num_scalar_prefetch=0,
            grid=(B,),
            in_specs=[
                pl.BlockSpec((1, S, D), lambda b: (b, 0, 0)),   # embeddings
                pl.BlockSpec((1, 1, S), lambda b: (b, 0, 0)),   # key bias row
                full_spec(params["emb_ln_g"]), full_spec(params["emb_ln_b"]),
                full_spec(st["wqkv"]), full_spec(st["bqkv"]),
                full_spec(st["wo"]), full_spec(st["bo"]),
                full_spec(st["ln1_g"]), full_spec(st["ln1_b"]),
                full_spec(st["wi"]), full_spec(st["bi"]),
                full_spec(st["w2"]), full_spec(st["b2"]),
                full_spec(st["ln2_g"]), full_spec(st["ln2_b"]),
            ],
            out_specs=pl.BlockSpec((1, S, D), lambda b: (b, 0, 0)),
        ),
        compiler_params=pltpu.CompilerParams(
            dimension_semantics=("parallel",)),
    )(emb, key_bias, params["emb_ln_g"], params["emb_ln_b"],
      st["wqkv"], st["bqkv"], st["wo"], st["bo"],
      st["ln1_g"], st["ln1_b"], st["wi"], st["bi"],
      st["w2"], st["b2"], st["ln2_g"], st["ln2_b"])
    return out                                                   # last_hidden_state


# ---------------- deterministic parameter init ----------------
def init_params(key):
    keys = iter(jax.random.split(key, 8 + 8 * N_LAYERS))

    def nrm(shape):
        return jax.random.normal(next(keys), shape, jnp.float32) * 0.02

    params = {
        "word_emb": nrm((VOCAB, D)),
        "pos_emb": nrm((MAX_POS, D)),
        "type_emb": nrm((TYPE_VOCAB, D)),
        "emb_ln_g": jnp.ones((1, D), jnp.float32),
        "emb_ln_b": jnp.zeros((1, D), jnp.float32),
    }

    # Stack per-layer weights along a leading layer axis; fuse Q|K|V; fold the
    # 1/sqrt(DH) attention scale into the Q columns at pack time; store matmul
    # weights in bf16 (MXU-native on v6e/v7x), biases / LN params in f32.
    scale = jnp.float32(1.0 / math.sqrt(DH))
    wqkv, bqkv, wo, bo = [], [], [], []
    ln1g, ln1b, wi, bi, w2, b2, ln2g, ln2b = [], [], [], [], [], [], [], []
    for _ in range(N_LAYERS):
        wq, wk, wv = nrm((D, D)), nrm((D, D)), nrm((D, D))
        bq = jnp.zeros((1, D), jnp.float32)
        bk = jnp.zeros((1, D), jnp.float32)
        bv = jnp.zeros((1, D), jnp.float32)
        wqkv.append(jnp.concatenate([wq * scale, wk, wv], axis=1))      # (D, 3D)
        bqkv.append(jnp.concatenate([bq * scale, bk, bv], axis=1))      # (1, 3D)
        wo.append(nrm((D, D)))
        bo.append(jnp.zeros((1, D), jnp.float32))
        ln1g.append(jnp.ones((1, D), jnp.float32))
        ln1b.append(jnp.zeros((1, D), jnp.float32))
        wi.append(nrm((D, I)))
        bi.append(jnp.zeros((1, I), jnp.float32))
        w2.append(nrm((I, D)))
        b2.append(jnp.zeros((1, D), jnp.float32))
        ln2g.append(jnp.ones((1, D), jnp.float32))
        ln2b.append(jnp.zeros((1, D), jnp.float32))

    params["stacked"] = {
        "wqkv": jnp.stack(wqkv).astype(jnp.bfloat16),
        "bqkv": jnp.stack(bqkv),
        "wo": jnp.stack(wo).astype(jnp.bfloat16),
        "bo": jnp.stack(bo),
        "ln1_g": jnp.stack(ln1g), "ln1_b": jnp.stack(ln1b),
        "wi": jnp.stack(wi).astype(jnp.bfloat16),
        "bi": jnp.stack(bi),
        "w2": jnp.stack(w2).astype(jnp.bfloat16),
        "b2": jnp.stack(b2),
        "ln2_g": jnp.stack(ln2g), "ln2_b": jnp.stack(ln2b),
    }
    return params


if __name__ == "__main__":
    root = jax.random.PRNGKey(0)
    k_param, k_ids = jax.random.split(root)
    params = init_params(k_param)

    # batch['text'] = {'input_ids', 'attention_mask', 'token_type_ids'}
    input_ids = jax.random.randint(k_ids, (B, S), 0, VOCAB, dtype=jnp.int32)
    attention_mask = jnp.ones((B, S), jnp.int32).at[1, S - 2:].set(0)   # pad 2 tokens
    token_type_ids = jnp.zeros((B, S), jnp.int32)

    fwd = jax.jit(text_encoder_forward)
    last_hidden_state = fwd(params, input_ids, attention_mask, token_type_ids)
    jax.block_until_ready(last_hidden_state)
    assert last_hidden_state.shape == (B, S, D)
    assert bool(jnp.all(jnp.isfinite(last_hidden_state)))
    print("KERNEL_OK")
</pallas_src>

<mosaic_0001>
module attributes {stable_mosaic.version = 11 : i64} {
  func.func @fused_text_encoder_kernel(%arg0: i32, %arg1: memref<1x8x32xf32, #tpu.memory_space<vmem>>, %arg2: memref<1x1x8xf32, #tpu.memory_space<vmem>>, %arg3: memref<1x32xf32, #tpu.memory_space<vmem>>, %arg4: memref<1x32xf32, #tpu.memory_space<vmem>>, %arg5: memref<2x32x96xbf16, #tpu.memory_space<vmem>>, %arg6: memref<2x1x96xf32, #tpu.memory_space<vmem>>, %arg7: memref<2x32x32xbf16, #tpu.memory_space<vmem>>, %arg8: memref<2x1x32xf32, #tpu.memory_space<vmem>>, %arg9: memref<2x1x32xf32, #tpu.memory_space<vmem>>, %arg10: memref<2x1x32xf32, #tpu.memory_space<vmem>>, %arg11: memref<2x32x64xbf16, #tpu.memory_space<vmem>>, %arg12: memref<2x1x64xf32, #tpu.memory_space<vmem>>, %arg13: memref<2x64x32xbf16, #tpu.memory_space<vmem>>, %arg14: memref<2x1x32xf32, #tpu.memory_space<vmem>>, %arg15: memref<2x1x32xf32, #tpu.memory_space<vmem>>, %arg16: memref<2x1x32xf32, #tpu.memory_space<vmem>>, %arg17: memref<1x8x32xf32, #tpu.memory_space<vmem>>) attributes {dimension_semantics = [#tpu.dimension_semantics<parallel>], iteration_bounds = array<i64: 2>, scalar_prefetch = 0 : i64, scratch_operands = 0 : i64, tpu.core_type = #tpu.core_type<tc>, window_params = [{transform_indices = @transform_0, window_bounds = array<i64: 1, 8, 32>}, {transform_indices = @transform_1, window_bounds = array<i64: 1, 1, 8>}, {pipeline_mode = #tpu.pipeline_mode<synchronous>, transform_indices = @transform_2, window_bounds = array<i64: 1, 32>}, {pipeline_mode = #tpu.pipeline_mode<synchronous>, transform_indices = @transform_3, window_bounds = array<i64: 1, 32>}, {pipeline_mode = #tpu.pipeline_mode<synchronous>, transform_indices = @transform_4, window_bounds = array<i64: 2, 32, 96>}, {pipeline_mode = #tpu.pipeline_mode<synchronous>, transform_indices = @transform_5, window_bounds = array<i64: 2, 1, 96>}, {pipeline_mode = #tpu.pipeline_mode<synchronous>, transform_indices = @transform_6, window_bounds = array<i64: 2, 32, 32>}, {pipeline_mode = #tpu.pipeline_mode<synchronous>, transform_indices = @transform_7, window_bounds = array<i64: 2, 1, 32>}, {pipeline_mode = #tpu.pipeline_mode<synchronous>, transform_indices = @transform_8, window_bounds = array<i64: 2, 1, 32>}, {pipeline_mode = #tpu.pipeline_mode<synchronous>, transform_indices = @transform_9, window_bounds = array<i64: 2, 1, 32>}, {pipeline_mode = #tpu.pipeline_mode<synchronous>, transform_indices = @transform_10, window_bounds = array<i64: 2, 32, 64>}, {pipeline_mode = #tpu.pipeline_mode<synchronous>, transform_indices = @transform_11, window_bounds = array<i64: 2, 1, 64>}, {pipeline_mode = #tpu.pipeline_mode<synchronous>, transform_indices = @transform_12, window_bounds = array<i64: 2, 64, 32>}, {pipeline_mode = #tpu.pipeline_mode<synchronous>, transform_indices = @transform_13, window_bounds = array<i64: 2, 1, 32>}, {pipeline_mode = #tpu.pipeline_mode<synchronous>, transform_indices = @transform_14, window_bounds = array<i64: 2, 1, 32>}, {pipeline_mode = #tpu.pipeline_mode<synchronous>, transform_indices = @transform_15, window_bounds = array<i64: 2, 1, 32>}, {transform_indices = @transform_16, window_bounds = array<i64: 1, 8, 32>}]} {
    %c0 = arith.constant 0 : index
    %c0_0 = arith.constant 0 : index
    %c0_1 = arith.constant 0 : index
    %0 = vector.load %arg1[%c0, %c0_0, %c0_1] : memref<1x8x32xf32, #tpu.memory_space<vmem>>, vector<1x8x32xf32>
    %1 = vector.shape_cast %0 : vector<1x8x32xf32> to vector<8x32xf32>
    %c0_2 = arith.constant 0 : index
    %c0_3 = arith.constant 0 : index
    %2 = vector.load %arg3[%c0_2, %c0_3] : memref<1x32xf32, #tpu.memory_space<vmem>>, vector<1x32xf32>
    %c0_4 = arith.constant 0 : index
    %c0_5 = arith.constant 0 : index
    %3 = vector.load %arg4[%c0_4, %c0_5] : memref<1x32xf32, #tpu.memory_space<vmem>>, vector<1x32xf32>
    %cst = arith.constant dense<0.000000e+00> : vector<8xf32>
    %4 = vector.multi_reduction <add>, %1, %cst [1] : vector<8x32xf32> to vector<8xf32>
    %5 = vector.shape_cast %4 : vector<8xf32> to vector<8x1xf32>
    %cst_6 = arith.constant 3.200000e+01 : f32
    %6 = vector.broadcast %cst_6 : f32 to vector<8x1xf32>
    %7 = arith.divf %5, %6 : vector<8x1xf32>
    %8 = arith.mulf %1, %1 : vector<8x32xf32>
    %cst_7 = arith.constant dense<0.000000e+00> : vector<8xf32>
    %9 = vector.multi_reduction <add>, %8, %cst_7 [1] : vector<8x32xf32> to vector<8xf32>
    %10 = vector.shape_cast %9 : vector<8xf32> to vector<8x1xf32>
    %cst_8 = arith.constant 3.200000e+01 : f32
    %11 = vector.broadcast %cst_8 : f32 to vector<8x1xf32>
    %12 = arith.divf %10, %11 : vector<8x1xf32>
    %13 = arith.mulf %7, %7 : vector<8x1xf32>
    %14 = arith.subf %12, %13 : vector<8x1xf32>
    %cst_9 = arith.constant 0.000000e+00 : f32
    %15 = vector.broadcast %cst_9 : f32 to vector<8x1xf32>
    %16 = arith.maximumf %14, %15 : vector<8x1xf32>
    %17 = vector.broadcast %7 : vector<8x1xf32> to vector<8x32xf32>
    %18 = arith.subf %1, %17 : vector<8x32xf32>
    %cst_10 = arith.constant 9.99999996E-13 : f32
    %19 = vector.broadcast %cst_10 : f32 to vector<8x1xf32>
    %20 = arith.addf %16, %19 : vector<8x1xf32>
    %21 = math.rsqrt %20 : vector<8x1xf32>
    %22 = vector.broadcast %21 : vector<8x1xf32> to vector<8x32xf32>
    %23 = arith.mulf %18, %22 : vector<8x32xf32>
    %24 = vector.broadcast %2 : vector<1x32xf32> to vector<8x32xf32>
    %25 = arith.mulf %23, %24 : vector<8x32xf32>
    %26 = vector.broadcast %3 : vector<1x32xf32> to vector<8x32xf32>
    %27 = arith.addf %25, %26 : vector<8x32xf32>
    %c0_11 = arith.constant 0 : index
    %c0_12 = arith.constant 0 : index
    %c0_13 = arith.constant 0 : index
    %28 = vector.load %arg2[%c0_11, %c0_12, %c0_13] : memref<1x1x8xf32, #tpu.memory_space<vmem>>, vector<1x1x8xf32>
    %29 = vector.shape_cast %28 : vector<1x1x8xf32> to vector<1x8xf32>
    %30 = arith.truncf %27 : vector<8x32xf32> to vector<8x32xbf16>
    %c0_14 = arith.constant 0 : index
    %c0_15 = arith.constant 0 : index
    %c0_16 = arith.constant 0 : index
    %31 = vector.load %arg5[%c0_14, %c0_15, %c0_16] : memref<2x32x96xbf16, #tpu.memory_space<vmem>>, vector<1x32x96xbf16>
    %32 = vector.shape_cast %31 : vector<1x32x96xbf16> to vector<32x96xbf16>
    %cst_17 = arith.constant dense<0.000000e+00> : vector<8x96xf32>
    %33 = tpu.matmul %30, %32, %cst_17 {dimension_numbers = #tpu.dot_dimension_numbers<[1], [0], [0], [1], [0, 0, 1, 1], [], []>} : vector<8x32xbf16>, vector<32x96xbf16>, vector<8x96xf32> -> vector<8x96xf32>
    %c0_18 = arith.constant 0 : index
    %c0_19 = arith.constant 0 : index
    %c0_20 = arith.constant 0 : index
    %34 = vector.load %arg6[%c0_18, %c0_19, %c0_20] : memref<2x1x96xf32, #tpu.memory_space<vmem>>, vector<1x1x96xf32>
    %35 = vector.shape_cast %34 : vector<1x1x96xf32> to vector<1x96xf32>
    %36 = vector.broadcast %35 : vector<1x96xf32> to vector<8x96xf32>
    %37 = arith.addf %33, %36 : vector<8x96xf32>
    %38 = vector.extract_strided_slice %37 {offsets = [0, 0], sizes = [8, 8], strides = [1, 1]} : vector<8x96xf32> to vector<8x8xf32>
    %39 = vector.extract_strided_slice %37 {offsets = [0, 32], sizes = [8, 8], strides = [1, 1]} : vector<8x96xf32> to vector<8x8xf32>
    %40 = vector.extract_strided_slice %37 {offsets = [0, 64], sizes = [8, 8], strides = [1, 1]} : vector<8x96xf32> to vector<8x8xf32>
    %41 = arith.truncf %38 : vector<8x8xf32> to vector<8x8xbf16>
    %42 = arith.truncf %39 : vector<8x8xf32> to vector<8x8xbf16>
    %cst_21 = arith.constant dense<0.000000e+00> : vector<8x8xf32>
    %43 = tpu.matmul %41, %42, %cst_21 {dimension_numbers = #tpu.dot_dimension_numbers<[1], [1], [0], [0], [0, 0, 1, 0], [], []>} : vector<8x8xbf16>, vector<8x8xbf16>, vector<8x8xf32> -> vector<8x8xf32>
    %44 = vector.broadcast %29 : vector<1x8xf32> to vector<8x8xf32>
    %45 = arith.addf %43, %44 : vector<8x8xf32>
    %cst_22 = arith.constant dense<0xFF800000> : vector<8xf32>
    %46 = vector.multi_reduction <maximumf>, %45, %cst_22 [1] : vector<8x8xf32> to vector<8xf32>
    %47 = vector.shape_cast %46 : vector<8xf32> to vector<8x1xf32>
    %48 = vector.broadcast %47 : vector<8x1xf32> to vector<8x8xf32>
    %49 = arith.subf %45, %48 : vector<8x8xf32>
    %50 = math.exp %49 : vector<8x8xf32>
    %cst_23 = arith.constant dense<0.000000e+00> : vector<8xf32>
    %51 = vector.multi_reduction <add>, %50, %cst_23 [1] : vector<8x8xf32> to vector<8xf32>
    %52 = vector.shape_cast %51 : vector<8xf32> to vector<8x1xf32>
    %53 = tpu.reciprocal %52 {approx = true} : vector<8x1xf32> -> vector<8x1xf32>
    %54 = vector.broadcast %53 : vector<8x1xf32> to vector<8x8xf32>
    %55 = arith.mulf %50, %54 : vector<8x8xf32>
    %56 = arith.truncf %55 : vector<8x8xf32> to vector<8x8xbf16>
    %57 = arith.truncf %40 : vector<8x8xf32> to vector<8x8xbf16>
    %cst_24 = arith.constant dense<0.000000e+00> : vector<8x8xf32>
    %58 = tpu.matmul %56, %57, %cst_24 {dimension_numbers = #tpu.dot_dimension_numbers<[1], [0], [0], [1], [0, 0, 1, 1], [], []>} : vector<8x8xbf16>, vector<8x8xbf16>, vector<8x8xf32> -> vector<8x8xf32>
    %59 = vector.extract_strided_slice %37 {offsets = [0, 8], sizes = [8, 8], strides = [1, 1]} : vector<8x96xf32> to vector<8x8xf32>
    %60 = vector.extract_strided_slice %37 {offsets = [0, 40], sizes = [8, 8], strides = [1, 1]} : vector<8x96xf32> to vector<8x8xf32>
    %61 = vector.extract_strided_slice %37 {offsets = [0, 72], sizes = [8, 8], strides = [1, 1]} : vector<8x96xf32> to vector<8x8xf32>
    %62 = arith.truncf %59 : vector<8x8xf32> to vector<8x8xbf16>
    %63 = arith.truncf %60 : vector<8x8xf32> to vector<8x8xbf16>
    %cst_25 = arith.constant dense<0.000000e+00> : vector<8x8xf32>
    %64 = tpu.matmul %62, %63, %cst_25 {dimension_numbers = #tpu.dot_dimension_numbers<[1], [1], [0], [0], [0, 0, 1, 0], [], []>} : vector<8x8xbf16>, vector<8x8xbf16>, vector<8x8xf32> -> vector<8x8xf32>
    %65 = vector.broadcast %29 : vector<1x8xf32> to vector<8x8xf32>
    %66 = arith.addf %64, %65 : vector<8x8xf32>
    %cst_26 = arith.constant dense<0xFF800000> : vector<8xf32>
    %67 = vector.multi_reduction <maximumf>, %66, %cst_26 [1] : vector<8x8xf32> to vector<8xf32>
    %68 = vector.shape_cast %67 : vector<8xf32> to vector<8x1xf32>
    %69 = vector.broadcast %68 : vector<8x1xf32> to vector<8x8xf32>
    %70 = arith.subf %66, %69 : vector<8x8xf32>
    %71 = math.exp %70 : vector<8x8xf32>
    %cst_27 = arith.constant dense<0.000000e+00> : vector<8xf32>
    %72 = vector.multi_reduction <add>, %71, %cst_27 [1] : vector<8x8xf32> to vector<8xf32>
    %73 = vector.shape_cast %72 : vector<8xf32> to vector<8x1xf32>
    %74 = tpu.reciprocal %73 {approx = true} : vector<8x1xf32> -> vector<8x1xf32>
    %75 = vector.broadcast %74 : vector<8x1xf32> to vector<8x8xf32>
    %76 = arith.mulf %71, %75 : vector<8x8xf32>
    %77 = arith.truncf %76 : vector<8x8xf32> to vector<8x8xbf16>
    %78 = arith.truncf %61 : vector<8x8xf32> to vector<8x8xbf16>
    %cst_28 = arith.constant dense<0.000000e+00> : vector<8x8xf32>
    %79 = tpu.matmul %77, %78, %cst_28 {dimension_numbers = #tpu.dot_dimension_numbers<[1], [0], [0], [1], [0, 0, 1, 1], [], []>} : vector<8x8xbf16>, vector<8x8xbf16>, vector<8x8xf32> -> vector<8x8xf32>
    %80 = vector.extract_strided_slice %37 {offsets = [0, 16], sizes = [8, 8], strides = [1, 1]} : vector<8x96xf32> to vector<8x8xf32>
    %81 = vector.extract_strided_slice %37 {offsets = [0, 48], sizes = [8, 8], strides = [1, 1]} : vector<8x96xf32> to vector<8x8xf32>
    %82 = vector.extract_strided_slice %37 {offsets = [0, 80], sizes = [8, 8], strides = [1, 1]} : vector<8x96xf32> to vector<8x8xf32>
    %83 = arith.truncf %80 : vector<8x8xf32> to vector<8x8xbf16>
    %84 = arith.truncf %81 : vector<8x8xf32> to vector<8x8xbf16>
    %cst_29 = arith.constant dense<0.000000e+00> : vector<8x8xf32>
    %85 = tpu.matmul %83, %84, %cst_29 {dimension_numbers = #tpu.dot_dimension_numbers<[1], [1], [0], [0], [0, 0, 1, 0], [], []>} : vector<8x8xbf16>, vector<8x8xbf16>, vector<8x8xf32> -> vector<8x8xf32>
    %86 = vector.broadcast %29 : vector<1x8xf32> to vector<8x8xf32>
    %87 = arith.addf %85, %86 : vector<8x8xf32>
    %cst_30 = arith.constant dense<0xFF800000> : vector<8xf32>
    %88 = vector.multi_reduction <maximumf>, %87, %cst_30 [1] : vector<8x8xf32> to vector<8xf32>
    %89 = vector.shape_cast %88 : vector<8xf32> to vector<8x1xf32>
    %90 = vector.broadcast %89 : vector<8x1xf32> to vector<8x8xf32>
    %91 = arith.subf %87, %90 : vector<8x8xf32>
    %92 = math.exp %91 : vector<8x8xf32>
    %cst_31 = arith.constant dense<0.000000e+00> : vector<8xf32>
    %93 = vector.multi_reduction <add>, %92, %cst_31 [1] : vector<8x8xf32> to vector<8xf32>
    %94 = vector.shape_cast %93 : vector<8xf32> to vector<8x1xf32>
    %95 = tpu.reciprocal %94 {approx = true} : vector<8x1xf32> -> vector<8x1xf32>
    %96 = vector.broadcast %95 : vector<8x1xf32> to vector<8x8xf32>
    %97 = arith.mulf %92, %96 : vector<8x8xf32>
    %98 = arith.truncf %97 : vector<8x8xf32> to vector<8x8xbf16>
    %99 = arith.truncf %82 : vector<8x8xf32> to vector<8x8xbf16>
    %cst_32 = arith.constant dense<0.000000e+00> : vector<8x8xf32>
    %100 = tpu.matmul %98, %99, %cst_32 {dimension_numbers = #tpu.dot_dimension_numbers<[1], [0], [0], [1], [0, 0, 1, 1], [], []>} : vector<8x8xbf16>, vector<8x8xbf16>, vector<8x8xf32> -> vector<8x8xf32>
    %101 = vector.extract_strided_slice %37 {offsets = [0, 24], sizes = [8, 8], strides = [1, 1]} : vector<8x96xf32> to vector<8x8xf32>
    %102 = vector.extract_strided_slice %37 {offsets = [0, 56], sizes = [8, 8], strides = [1, 1]} : vector<8x96xf32> to vector<8x8xf32>
    %103 = vector.extract_strided_slice %37 {offsets = [0, 88], sizes = [8, 8], strides = [1, 1]} : vector<8x96xf32> to vector<8x8xf32>
    %104 = arith.truncf %101 : vector<8x8xf32> to vector<8x8xbf16>
    %105 = arith.truncf %102 : vector<8x8xf32> to vector<8x8xbf16>
    %cst_33 = arith.constant dense<0.000000e+00> : vector<8x8xf32>
    %106 = tpu.matmul %104, %105, %cst_33 {dimension_numbers = #tpu.dot_dimension_numbers<[1], [1], [0], [0], [0, 0, 1, 0], [], []>} : vector<8x8xbf16>, vector<8x8xbf16>, vector<8x8xf32> -> vector<8x8xf32>
    %107 = vector.broadcast %29 : vector<1x8xf32> to vector<8x8xf32>
    %108 = arith.addf %106, %107 : vector<8x8xf32>
    %cst_34 = arith.constant dense<0xFF800000> : vector<8xf32>
    %109 = vector.multi_reduction <maximumf>, %108, %cst_34 [1] : vector<8x8xf32> to vector<8xf32>
    %110 = vector.shape_cast %109 : vector<8xf32> to vector<8x1xf32>
    %111 = vector.broadcast %110 : vector<8x1xf32> to vector<8x8xf32>
    %112 = arith.subf %108, %111 : vector<8x8xf32>
    %113 = math.exp %112 : vector<8x8xf32>
    %cst_35 = arith.constant dense<0.000000e+00> : vector<8xf32>
    %114 = vector.multi_reduction <add>, %113, %cst_35 [1] : vector<8x8xf32> to vector<8xf32>
    %115 = vector.shape_cast %114 : vector<8xf32> to vector<8x1xf32>
    %116 = tpu.reciprocal %115 {approx = true} : vector<8x1xf32> -> vector<8x1xf32>
    %117 = vector.broadcast %116 : vector<8x1xf32> to vector<8x8xf32>
    %118 = arith.mulf %113, %117 : vector<8x8xf32>
    %119 = arith.truncf %118 : vector<8x8xf32> to vector<8x8xbf16>
    %120 = arith.truncf %103 : vector<8x8xf32> to vector<8x8xbf16>
    %cst_36 = arith.constant dense<0.000000e+00> : vector<8x8xf32>
    %121 = tpu.matmul %119, %120, %cst_36 {dimension_numbers = #tpu.dot_dimension_numbers<[1], [0], [0], [1], [0, 0, 1, 1], [], []>} : vector<8x8xbf16>, vector<8x8xbf16>, vector<8x8xf32> -> vector<8x8xf32>
    %122 = tpu.concatenate %58, %79, %100, %121 in 1 : vector<8x8xf32>, vector<8x8xf32>, vector<8x8xf32>, vector<8x8xf32> -> vector<8x32xf32>
    %123 = arith.truncf %122 : vector<8x32xf32> to vector<8x32xbf16>
    %c0_37 = arith.constant 0 : index
    %c0_38 = arith.constant 0 : index
    %c0_39 = arith.constant 0 : index
    %124 = vector.load %arg7[%c0_37, %c0_38, %c0_39] : memref<2x32x32xbf16, #tpu.memory_space<vmem>>, vector<1x32x32xbf16>
    %125 = vector.shape_cast %124 : vector<1x32x32xbf16> to vector<32x32xbf16>
    %cst_40 = arith.constant dense<0.000000e+00> : vector<8x32xf32>
    %126 = tpu.matmul %123, %125, %cst_40 {dimension_numbers = #tpu.dot_dimension_numbers<[1], [0], [0], [1], [0, 0, 1, 1], [], []>} : vector<8x32xbf16>, vector<32x32xbf16>, vector<8x32xf32> -> vector<8x32xf32>
    %c0_41 = arith.constant 0 : index
    %c0_42 = arith.constant 0 : index
    %c0_43 = arith.constant 0 : index
    %127 = vector.load %arg8[%c0_41, %c0_42, %c0_43] : memref<2x1x32xf32, #tpu.memory_space<vmem>>, vector<1x1x32xf32>
    %128 = vector.shape_cast %127 : vector<1x1x32xf32> to vector<1x32xf32>
    %129 = vector.broadcast %128 : vector<1x32xf32> to vector<8x32xf32>
    %130 = arith.addf %126, %129 : vector<8x32xf32>
    %131 = arith.addf %130, %27 : vector<8x32xf32>
    %c0_44 = arith.constant 0 : index
    %c0_45 = arith.constant 0 : index
    %c0_46 = arith.constant 0 : index
    %132 = vector.load %arg9[%c0_44, %c0_45, %c0_46] : memref<2x1x32xf32, #tpu.memory_space<vmem>>, vector<1x1x32xf32>
    %133 = vector.shape_cast %132 : vector<1x1x32xf32> to vector<1x32xf32>
    %c0_47 = arith.constant 0 : index
    %c0_48 = arith.constant 0 : index
    %c0_49 = arith.constant 0 : index
    %134 = vector.load %arg10[%c0_47, %c0_48, %c0_49] : memref<2x1x32xf32, #tpu.memory_space<vmem>>, vector<1x1x32xf32>
    %135 = vector.shape_cast %134 : vector<1x1x32xf32> to vector<1x32xf32>
    %cst_50 = arith.constant dense<0.000000e+00> : vector<8xf32>
    %136 = vector.multi_reduction <add>, %131, %cst_50 [1] : vector<8x32xf32> to vector<8xf32>
    %137 = vector.shape_cast %136 : vector<8xf32> to vector<8x1xf32>
    %cst_51 = arith.constant 3.200000e+01 : f32
    %138 = vector.broadcast %cst_51 : f32 to vector<8x1xf32>
    %139 = arith.divf %137, %138 : vector<8x1xf32>
    %140 = arith.mulf %131, %131 : vector<8x32xf32>
    %cst_52 = arith.constant dense<0.000000e+00> : vector<8xf32>
    %141 = vector.multi_reduction <add>, %140, %cst_52 [1] : vector<8x32xf32> to vector<8xf32>
    %142 = vector.shape_cast %141 : vector<8xf32> to vector<8x1xf32>
    %cst_53 = arith.constant 3.200000e+01 : f32
    %143 = vector.broadcast %cst_53 : f32 to vector<8x1xf32>
    %144 = arith.divf %142, %143 : vector<8x1xf32>
    %145 = arith.mulf %139, %139 : vector<8x1xf32>
    %146 = arith.subf %144, %145 : vector<8x1xf32>
    %cst_54 = arith.constant 0.000000e+00 : f32
    %147 = vector.broadcast %cst_54 : f32 to vector<8x1xf32>
    %148 = arith.maximumf %146, %147 : vector<8x1xf32>
    %149 = vector.broadcast %139 : vector<8x1xf32> to vector<8x32xf32>
    %150 = arith.subf %131, %149 : vector<8x32xf32>
    %cst_55 = arith.constant 9.99999996E-13 : f32
    %151 = vector.broadcast %cst_55 : f32 to vector<8x1xf32>
    %152 = arith.addf %148, %151 : vector<8x1xf32>
    %153 = math.rsqrt %152 : vector<8x1xf32>
    %154 = vector.broadcast %153 : vector<8x1xf32> to vector<8x32xf32>
    %155 = arith.mulf %150, %154 : vector<8x32xf32>
    %156 = vector.broadcast %133 : vector<1x32xf32> to vector<8x32xf32>
    %157 = arith.mulf %155, %156 : vector<8x32xf32>
    %158 = vector.broadcast %135 : vector<1x32xf32> to vector<8x32xf32>
    %159 = arith.addf %157, %158 : vector<8x32xf32>
    %160 = arith.truncf %159 : vector<8x32xf32> to vector<8x32xbf16>
    %c0_56 = arith.constant 0 : index
    %c0_57 = arith.constant 0 : index
    %c0_58 = arith.constant 0 : index
    %161 = vector.load %arg11[%c0_56, %c0_57, %c0_58] : memref<2x32x64xbf16, #tpu.memory_space<vmem>>, vector<1x32x64xbf16>
    %162 = vector.shape_cast %161 : vector<1x32x64xbf16> to vector<32x64xbf16>
    %cst_59 = arith.constant dense<0.000000e+00> : vector<8x64xf32>
    %163 = tpu.matmul %160, %162, %cst_59 {dimension_numbers = #tpu.dot_dimension_numbers<[1], [0], [0], [1], [0, 0, 1, 1], [], []>} : vector<8x32xbf16>, vector<32x64xbf16>, vector<8x64xf32> -> vector<8x64xf32>
    %c0_60 = arith.constant 0 : index
    %c0_61 = arith.constant 0 : index
    %c0_62 = arith.constant 0 : index
    %164 = vector.load %arg12[%c0_60, %c0_61, %c0_62] : memref<2x1x64xf32, #tpu.memory_space<vmem>>, vector<1x1x64xf32>
    %165 = vector.shape_cast %164 : vector<1x1x64xf32> to vector<1x64xf32>
    %166 = vector.broadcast %165 : vector<1x64xf32> to vector<8x64xf32>
    %167 = arith.addf %163, %166 : vector<8x64xf32>
    %cst_63 = arith.constant 5.000000e-01 : f32
    %168 = vector.broadcast %cst_63 : f32 to vector<8x64xf32>
    %169 = arith.mulf %168, %167 : vector<8x64xf32>
    %cst_64 = arith.constant 0.707106769 : f32
    %170 = vector.broadcast %cst_64 : f32 to vector<8x64xf32>
    %171 = arith.mulf %167, %170 : vector<8x64xf32>
    %172 = math.erf %171 : vector<8x64xf32>
    %cst_65 = arith.constant 1.000000e+00 : f32
    %173 = vector.broadcast %cst_65 : f32 to vector<8x64xf32>
    %174 = arith.addf %173, %172 : vector<8x64xf32>
    %175 = arith.mulf %169, %174 : vector<8x64xf32>
    %176 = arith.truncf %175 : vector<8x64xf32> to vector<8x64xbf16>
    %c0_66 = arith.constant 0 : index
    %c0_67 = arith.constant 0 : index
    %c0_68 = arith.constant 0 : index
    %177 = vector.load %arg13[%c0_66, %c0_67, %c0_68] : memref<2x64x32xbf16, #tpu.memory_space<vmem>>, vector<1x64x32xbf16>
    %178 = vector.shape_cast %177 : vector<1x64x32xbf16> to vector<64x32xbf16>
    %cst_69 = arith.constant dense<0.000000e+00> : vector<8x32xf32>
    %179 = tpu.matmul %176, %178, %cst_69 {dimension_numbers = #tpu.dot_dimension_numbers<[1], [0], [0], [1], [0, 0, 1, 1], [], []>} : vector<8x64xbf16>, vector<64x32xbf16>, vector<8x32xf32> -> vector<8x32xf32>
    %c0_70 = arith.constant 0 : index
    %c0_71 = arith.constant 0 : index
    %c0_72 = arith.constant 0 : index
    %180 = vector.load %arg14[%c0_70, %c0_71, %c0_72] : memref<2x1x32xf32, #tpu.memory_space<vmem>>, vector<1x1x32xf32>
    %181 = vector.shape_cast %180 : vector<1x1x32xf32> to vector<1x32xf32>
    %182 = vector.broadcast %181 : vector<1x32xf32> to vector<8x32xf32>
    %183 = arith.addf %179, %182 : vector<8x32xf32>
    %184 = arith.addf %183, %159 : vector<8x32xf32>
    %c0_73 = arith.constant 0 : index
    %c0_74 = arith.constant 0 : index
    %c0_75 = arith.constant 0 : index
    %185 = vector.load %arg15[%c0_73, %c0_74, %c0_75] : memref<2x1x32xf32, #tpu.memory_space<vmem>>, vector<1x1x32xf32>
    %186 = vector.shape_cast %185 : vector<1x1x32xf32> to vector<1x32xf32>
    %c0_76 = arith.constant 0 : index
    %c0_77 = arith.constant 0 : index
    %c0_78 = arith.constant 0 : index
    %187 = vector.load %arg16[%c0_76, %c0_77, %c0_78] : memref<2x1x32xf32, #tpu.memory_space<vmem>>, vector<1x1x32xf32>
    %188 = vector.shape_cast %187 : vector<1x1x32xf32> to vector<1x32xf32>
    %cst_79 = arith.constant dense<0.000000e+00> : vector<8xf32>
    %189 = vector.multi_reduction <add>, %184, %cst_79 [1] : vector<8x32xf32> to vector<8xf32>
    %190 = vector.shape_cast %189 : vector<8xf32> to vector<8x1xf32>
    %cst_80 = arith.constant 3.200000e+01 : f32
    %191 = vector.broadcast %cst_80 : f32 to vector<8x1xf32>
    %192 = arith.divf %190, %191 : vector<8x1xf32>
    %193 = arith.mulf %184, %184 : vector<8x32xf32>
    %cst_81 = arith.constant dense<0.000000e+00> : vector<8xf32>
    %194 = vector.multi_reduction <add>, %193, %cst_81 [1] : vector<8x32xf32> to vector<8xf32>
    %195 = vector.shape_cast %194 : vector<8xf32> to vector<8x1xf32>
    %cst_82 = arith.constant 3.200000e+01 : f32
    %196 = vector.broadcast %cst_82 : f32 to vector<8x1xf32>
    %197 = arith.divf %195, %196 : vector<8x1xf32>
    %198 = arith.mulf %192, %192 : vector<8x1xf32>
    %199 = arith.subf %197, %198 : vector<8x1xf32>
    %cst_83 = arith.constant 0.000000e+00 : f32
    %200 = vector.broadcast %cst_83 : f32 to vector<8x1xf32>
    %201 = arith.maximumf %199, %200 : vector<8x1xf32>
    %202 = vector.broadcast %192 : vector<8x1xf32> to vector<8x32xf32>
    %203 = arith.subf %184, %202 : vector<8x32xf32>
    %cst_84 = arith.constant 9.99999996E-13 : f32
    %204 = vector.broadcast %cst_84 : f32 to vector<8x1xf32>
    %205 = arith.addf %201, %204 : vector<8x1xf32>
    %206 = math.rsqrt %205 : vector<8x1xf32>
    %207 = vector.broadcast %206 : vector<8x1xf32> to vector<8x32xf32>
    %208 = arith.mulf %203, %207 : vector<8x32xf32>
    %209 = vector.broadcast %186 : vector<1x32xf32> to vector<8x32xf32>
    %210 = arith.mulf %208, %209 : vector<8x32xf32>
    %211 = vector.broadcast %188 : vector<1x32xf32> to vector<8x32xf32>
    %212 = arith.addf %210, %211 : vector<8x32xf32>
    %213 = arith.truncf %212 : vector<8x32xf32> to vector<8x32xbf16>
    %c1 = arith.constant 1 : index
    %c0_85 = arith.constant 0 : index
    %c0_86 = arith.constant 0 : index
    %214 = vector.load %arg5[%c1, %c0_85, %c0_86] : memref<2x32x96xbf16, #tpu.memory_space<vmem>>, vector<1x32x96xbf16>
    %215 = vector.shape_cast %214 : vector<1x32x96xbf16> to vector<32x96xbf16>
    %cst_87 = arith.constant dense<0.000000e+00> : vector<8x96xf32>
    %216 = tpu.matmul %213, %215, %cst_87 {dimension_numbers = #tpu.dot_dimension_numbers<[1], [0], [0], [1], [0, 0, 1, 1], [], []>} : vector<8x32xbf16>, vector<32x96xbf16>, vector<8x96xf32> -> vector<8x96xf32>
    %c1_88 = arith.constant 1 : index
    %c0_89 = arith.constant 0 : index
    %c0_90 = arith.constant 0 : index
    %217 = vector.load %arg6[%c1_88, %c0_89, %c0_90] : memref<2x1x96xf32, #tpu.memory_space<vmem>>, vector<1x1x96xf32>
    %218 = vector.shape_cast %217 : vector<1x1x96xf32> to vector<1x96xf32>
    %219 = vector.broadcast %218 : vector<1x96xf32> to vector<8x96xf32>
    %220 = arith.addf %216, %219 : vector<8x96xf32>
    %221 = vector.extract_strided_slice %220 {offsets = [0, 0], sizes = [8, 8], strides = [1, 1]} : vector<8x96xf32> to vector<8x8xf32>
    %222 = vector.extract_strided_slice %220 {offsets = [0, 32], sizes = [8, 8], strides = [1, 1]} : vector<8x96xf32> to vector<8x8xf32>
    %223 = vector.extract_strided_slice %220 {offsets = [0, 64], sizes = [8, 8], strides = [1, 1]} : vector<8x96xf32> to vector<8x8xf32>
    %224 = arith.truncf %221 : vector<8x8xf32> to vector<8x8xbf16>
    %225 = arith.truncf %222 : vector<8x8xf32> to vector<8x8xbf16>
    %cst_91 = arith.constant dense<0.000000e+00> : vector<8x8xf32>
    %226 = tpu.matmul %224, %225, %cst_91 {dimension_numbers = #tpu.dot_dimension_numbers<[1], [1], [0], [0], [0, 0, 1, 0], [], []>} : vector<8x8xbf16>, vector<8x8xbf16>, vector<8x8xf32> -> vector<8x8xf32>
    %227 = vector.broadcast %29 : vector<1x8xf32> to vector<8x8xf32>
    %228 = arith.addf %226, %227 : vector<8x8xf32>
    %cst_92 = arith.constant dense<0xFF800000> : vector<8xf32>
    %229 = vector.multi_reduction <maximumf>, %228, %cst_92 [1] : vector<8x8xf32> to vector<8xf32>
    %230 = vector.shape_cast %229 : vector<8xf32> to vector<8x1xf32>
    %231 = vector.broadcast %230 : vector<8x1xf32> to vector<8x8xf32>
    %232 = arith.subf %228, %231 : vector<8x8xf32>
    %233 = math.exp %232 : vector<8x8xf32>
    %cst_93 = arith.constant dense<0.000000e+00> : vector<8xf32>
    %234 = vector.multi_reduction <add>, %233, %cst_93 [1] : vector<8x8xf32> to vector<8xf32>
    %235 = vector.shape_cast %234 : vector<8xf32> to vector<8x1xf32>
    %236 = tpu.reciprocal %235 {approx = true} : vector<8x1xf32> -> vector<8x1xf32>
    %237 = vector.broadcast %236 : vector<8x1xf32> to vector<8x8xf32>
    %238 = arith.mulf %233, %237 : vector<8x8xf32>
    %239 = arith.truncf %238 : vector<8x8xf32> to vector<8x8xbf16>
    %240 = arith.truncf %223 : vector<8x8xf32> to vector<8x8xbf16>
    %cst_94 = arith.constant dense<0.000000e+00> : vector<8x8xf32>
    %241 = tpu.matmul %239, %240, %cst_94 {dimension_numbers = #tpu.dot_dimension_numbers<[1], [0], [0], [1], [0, 0, 1, 1], [], []>} : vector<8x8xbf16>, vector<8x8xbf16>, vector<8x8xf32> -> vector<8x8xf32>
    %242 = vector.extract_strided_slice %220 {offsets = [0, 8], sizes = [8, 8], strides = [1, 1]} : vector<8x96xf32> to vector<8x8xf32>
    %243 = vector.extract_strided_slice %220 {offsets = [0, 40], sizes = [8, 8], strides = [1, 1]} : vector<8x96xf32> to vector<8x8xf32>
    %244 = vector.extract_strided_slice %220 {offsets = [0, 72], sizes = [8, 8], strides = [1, 1]} : vector<8x96xf32> to vector<8x8xf32>
    %245 = arith.truncf %242 : vector<8x8xf32> to vector<8x8xbf16>
    %246 = arith.truncf %243 : vector<8x8xf32> to vector<8x8xbf16>
    %cst_95 = arith.constant dense<0.000000e+00> : vector<8x8xf32>
    %247 = tpu.matmul %245, %246, %cst_95 {dimension_numbers = #tpu.dot_dimension_numbers<[1], [1], [0], [0], [0, 0, 1, 0], [], []>} : vector<8x8xbf16>, vector<8x8xbf16>, vector<8x8xf32> -> vector<8x8xf32>
    %248 = vector.broadcast %29 : vector<1x8xf32> to vector<8x8xf32>
    %249 = arith.addf %247, %248 : vector<8x8xf32>
    %cst_96 = arith.constant dense<0xFF800000> : vector<8xf32>
    %250 = vector.multi_reduction <maximumf>, %249, %cst_96 [1] : vector<8x8xf32> to vector<8xf32>
    %251 = vector.shape_cast %250 : vector<8xf32> to vector<8x1xf32>
    %252 = vector.broadcast %251 : vector<8x1xf32> to vector<8x8xf32>
    %253 = arith.subf %249, %252 : vector<8x8xf32>
    %254 = math.exp %253 : vector<8x8xf32>
    %cst_97 = arith.constant dense<0.000000e+00> : vector<8xf32>
    %255 = vector.multi_reduction <add>, %254, %cst_97 [1] : vector<8x8xf32> to vector<8xf32>
    %256 = vector.shape_cast %255 : vector<8xf32> to vector<8x1xf32>
    %257 = tpu.reciprocal %256 {approx = true} : vector<8x1xf32> -> vector<8x1xf32>
    %258 = vector.broadcast %257 : vector<8x1xf32> to vector<8x8xf32>
    %259 = arith.mulf %254, %258 : vector<8x8xf32>
    %260 = arith.truncf %259 : vector<8x8xf32> to vector<8x8xbf16>
    %261 = arith.truncf %244 : vector<8x8xf32> to vector<8x8xbf16>
    %cst_98 = arith.constant dense<0.000000e+00> : vector<8x8xf32>
    %262 = tpu.matmul %260, %261, %cst_98 {dimension_numbers = #tpu.dot_dimension_numbers<[1], [0], [0], [1], [0, 0, 1, 1], [], []>} : vector<8x8xbf16>, vector<8x8xbf16>, vector<8x8xf32> -> vector<8x8xf32>
    %263 = vector.extract_strided_slice %220 {offsets = [0, 16], sizes = [8, 8], strides = [1, 1]} : vector<8x96xf32> to vector<8x8xf32>
    %264 = vector.extract_strided_slice %220 {offsets = [0, 48], sizes = [8, 8], strides = [1, 1]} : vector<8x96xf32> to vector<8x8xf32>
    %265 = vector.extract_strided_slice %220 {offsets = [0, 80], sizes = [8, 8], strides = [1, 1]} : vector<8x96xf32> to vector<8x8xf32>
    %266 = arith.truncf %263 : vector<8x8xf32> to vector<8x8xbf16>
    %267 = arith.truncf %264 : vector<8x8xf32> to vector<8x8xbf16>
    %cst_99 = arith.constant dense<0.000000e+00> : vector<8x8xf32>
    %268 = tpu.matmul %266, %267, %cst_99 {dimension_numbers = #tpu.dot_dimension_numbers<[1], [1], [0], [0], [0, 0, 1, 0], [], []>} : vector<8x8xbf16>, vector<8x8xbf16>, vector<8x8xf32> -> vector<8x8xf32>
    %269 = vector.broadcast %29 : vector<1x8xf32> to vector<8x8xf32>
    %270 = arith.addf %268, %269 : vector<8x8xf32>
    %cst_100 = arith.constant dense<0xFF800000> : vector<8xf32>
    %271 = vector.multi_reduction <maximumf>, %270, %cst_100 [1] : vector<8x8xf32> to vector<8xf32>
    %272 = vector.shape_cast %271 : vector<8xf32> to vector<8x1xf32>
    %273 = vector.broadcast %272 : vector<8x1xf32> to vector<8x8xf32>
    %274 = arith.subf %270, %273 : vector<8x8xf32>
    %275 = math.exp %274 : vector<8x8xf32>
    %cst_101 = arith.constant dense<0.000000e+00> : vector<8xf32>
    %276 = vector.multi_reduction <add>, %275, %cst_101 [1] : vector<8x8xf32> to vector<8xf32>
    %277 = vector.shape_cast %276 : vector<8xf32> to vector<8x1xf32>
    %278 = tpu.reciprocal %277 {approx = true} : vector<8x1xf32> -> vector<8x1xf32>
    %279 = vector.broadcast %278 : vector<8x1xf32> to vector<8x8xf32>
    %280 = arith.mulf %275, %279 : vector<8x8xf32>
    %281 = arith.truncf %280 : vector<8x8xf32> to vector<8x8xbf16>
    %282 = arith.truncf %265 : vector<8x8xf32> to vector<8x8xbf16>
    %cst_102 = arith.constant dense<0.000000e+00> : vector<8x8xf32>
    %283 = tpu.matmul %281, %282, %cst_102 {dimension_numbers = #tpu.dot_dimension_numbers<[1], [0], [0], [1], [0, 0, 1, 1], [], []>} : vector<8x8xbf16>, vector<8x8xbf16>, vector<8x8xf32> -> vector<8x8xf32>
    %284 = vector.extract_strided_slice %220 {offsets = [0, 24], sizes = [8, 8], strides = [1, 1]} : vector<8x96xf32> to vector<8x8xf32>
    %285 = vector.extract_strided_slice %220 {offsets = [0, 56], sizes = [8, 8], strides = [1, 1]} : vector<8x96xf32> to vector<8x8xf32>
    %286 = vector.extract_strided_slice %220 {offsets = [0, 88], sizes = [8, 8], strides = [1, 1]} : vector<8x96xf32> to vector<8x8xf32>
    %287 = arith.truncf %284 : vector<8x8xf32> to vector<8x8xbf16>
    %288 = arith.truncf %285 : vector<8x8xf32> to vector<8x8xbf16>
    %cst_103 = arith.constant dense<0.000000e+00> : vector<8x8xf32>
    %289 = tpu.matmul %287, %288, %cst_103 {dimension_numbers = #tpu.dot_dimension_numbers<[1], [1], [0], [0], [0, 0, 1, 0], [], []>} : vector<8x8xbf16>, vector<8x8xbf16>, vector<8x8xf32> -> vector<8x8xf32>
    %290 = vector.broadcast %29 : vector<1x8xf32> to vector<8x8xf32>
    %291 = arith.addf %289, %290 : vector<8x8xf32>
    %cst_104 = arith.constant dense<0xFF800000> : vector<8xf32>
    %292 = vector.multi_reduction <maximumf>, %291, %cst_104 [1] : vector<8x8xf32> to vector<8xf32>
    %293 = vector.shape_cast %292 : vector<8xf32> to vector<8x1xf32>
    %294 = vector.broadcast %293 : vector<8x1xf32> to vector<8x8xf32>
    %295 = arith.subf %291, %294 : vector<8x8xf32>
    %296 = math.exp %295 : vector<8x8xf32>
    %cst_105 = arith.constant dense<0.000000e+00> : vector<8xf32>
    %297 = vector.multi_reduction <add>, %296, %cst_105 [1] : vector<8x8xf32> to vector<8xf32>
    %298 = vector.shape_cast %297 : vector<8xf32> to vector<8x1xf32>
    %299 = tpu.reciprocal %298 {approx = true} : vector<8x1xf32> -> vector<8x1xf32>
    %300 = vector.broadcast %299 : vector<8x1xf32> to vector<8x8xf32>
    %301 = arith.mulf %296, %300 : vector<8x8xf32>
    %302 = arith.truncf %301 : vector<8x8xf32> to vector<8x8xbf16>
    %303 = arith.truncf %286 : vector<8x8xf32> to vector<8x8xbf16>
    %cst_106 = arith.constant dense<0.000000e+00> : vector<8x8xf32>
    %304 = tpu.matmul %302, %303, %cst_106 {dimension_numbers = #tpu.dot_dimension_numbers<[1], [0], [0], [1], [0, 0, 1, 1], [], []>} : vector<8x8xbf16>, vector<8x8xbf16>, vector<8x8xf32> -> vector<8x8xf32>
    %305 = tpu.concatenate %241, %262, %283, %304 in 1 : vector<8x8xf32>, vector<8x8xf32>, vector<8x8xf32>, vector<8x8xf32> -> vector<8x32xf32>
    %306 = arith.truncf %305 : vector<8x32xf32> to vector<8x32xbf16>
    %c1_107 = arith.constant 1 : index
    %c0_108 = arith.constant 0 : index
    %c0_109 = arith.constant 0 : index
    %307 = vector.load %arg7[%c1_107, %c0_108, %c0_109] : memref<2x32x32xbf16, #tpu.memory_space<vmem>>, vector<1x32x32xbf16>
    %308 = vector.shape_cast %307 : vector<1x32x32xbf16> to vector<32x32xbf16>
    %cst_110 = arith.constant dense<0.000000e+00> : vector<8x32xf32>
    %309 = tpu.matmul %306, %308, %cst_110 {dimension_numbers = #tpu.dot_dimension_numbers<[1], [0], [0], [1], [0, 0, 1, 1], [], []>} : vector<8x32xbf16>, vector<32x32xbf16>, vector<8x32xf32> -> vector<8x32xf32>
    %c1_111 = arith.constant 1 : index
    %c0_112 = arith.constant 0 : index
    %c0_113 = arith.constant 0 : index
    %310 = vector.load %arg8[%c1_111, %c0_112, %c0_113] : memref<2x1x32xf32, #tpu.memory_space<vmem>>, vector<1x1x32xf32>
    %311 = vector.shape_cast %310 : vector<1x1x32xf32> to vector<1x32xf32>
    %312 = vector.broadcast %311 : vector<1x32xf32> to vector<8x32xf32>
    %313 = arith.addf %309, %312 : vector<8x32xf32>
    %314 = arith.addf %313, %212 : vector<8x32xf32>
    %c1_114 = arith.constant 1 : index
    %c0_115 = arith.constant 0 : index
    %c0_116 = arith.constant 0 : index
    %315 = vector.load %arg9[%c1_114, %c0_115, %c0_116] : memref<2x1x32xf32, #tpu.memory_space<vmem>>, vector<1x1x32xf32>
    %316 = vector.shape_cast %315 : vector<1x1x32xf32> to vector<1x32xf32>
    %c1_117 = arith.constant 1 : index
    %c0_118 = arith.constant 0 : index
    %c0_119 = arith.constant 0 : index
    %317 = vector.load %arg10[%c1_117, %c0_118, %c0_119] : memref<2x1x32xf32, #tpu.memory_space<vmem>>, vector<1x1x32xf32>
    %318 = vector.shape_cast %317 : vector<1x1x32xf32> to vector<1x32xf32>
    %cst_120 = arith.constant dense<0.000000e+00> : vector<8xf32>
    %319 = vector.multi_reduction <add>, %314, %cst_120 [1] : vector<8x32xf32> to vector<8xf32>
    %320 = vector.shape_cast %319 : vector<8xf32> to vector<8x1xf32>
    %cst_121 = arith.constant 3.200000e+01 : f32
    %321 = vector.broadcast %cst_121 : f32 to vector<8x1xf32>
    %322 = arith.divf %320, %321 : vector<8x1xf32>
    %323 = arith.mulf %314, %314 : vector<8x32xf32>
    %cst_122 = arith.constant dense<0.000000e+00> : vector<8xf32>
    %324 = vector.multi_reduction <add>, %323, %cst_122 [1] : vector<8x32xf32> to vector<8xf32>
    %325 = vector.shape_cast %324 : vector<8xf32> to vector<8x1xf32>
    %cst_123 = arith.constant 3.200000e+01 : f32
    %326 = vector.broadcast %cst_123 : f32 to vector<8x1xf32>
    %327 = arith.divf %325, %326 : vector<8x1xf32>
    %328 = arith.mulf %322, %322 : vector<8x1xf32>
    %329 = arith.subf %327, %328 : vector<8x1xf32>
    %cst_124 = arith.constant 0.000000e+00 : f32
    %330 = vector.broadcast %cst_124 : f32 to vector<8x1xf32>
    %331 = arith.maximumf %329, %330 : vector<8x1xf32>
    %332 = vector.broadcast %322 : vector<8x1xf32> to vector<8x32xf32>
    %333 = arith.subf %314, %332 : vector<8x32xf32>
    %cst_125 = arith.constant 9.99999996E-13 : f32
    %334 = vector.broadcast %cst_125 : f32 to vector<8x1xf32>
    %335 = arith.addf %331, %334 : vector<8x1xf32>
    %336 = math.rsqrt %335 : vector<8x1xf32>
    %337 = vector.broadcast %336 : vector<8x1xf32> to vector<8x32xf32>
    %338 = arith.mulf %333, %337 : vector<8x32xf32>
    %339 = vector.broadcast %316 : vector<1x32xf32> to vector<8x32xf32>
    %340 = arith.mulf %338, %339 : vector<8x32xf32>
    %341 = vector.broadcast %318 : vector<1x32xf32> to vector<8x32xf32>
    %342 = arith.addf %340, %341 : vector<8x32xf32>
    %343 = arith.truncf %342 : vector<8x32xf32> to vector<8x32xbf16>
    %c1_126 = arith.constant 1 : index
    %c0_127 = arith.constant 0 : index
    %c0_128 = arith.constant 0 : index
    %344 = vector.load %arg11[%c1_126, %c0_127, %c0_128] : memref<2x32x64xbf16, #tpu.memory_space<vmem>>, vector<1x32x64xbf16>
    %345 = vector.shape_cast %344 : vector<1x32x64xbf16> to vector<32x64xbf16>
    %cst_129 = arith.constant dense<0.000000e+00> : vector<8x64xf32>
    %346 = tpu.matmul %343, %345, %cst_129 {dimension_numbers = #tpu.dot_dimension_numbers<[1], [0], [0], [1], [0, 0, 1, 1], [], []>} : vector<8x32xbf16>, vector<32x64xbf16>, vector<8x64xf32> -> vector<8x64xf32>
    %c1_130 = arith.constant 1 : index
    %c0_131 = arith.constant 0 : index
    %c0_132 = arith.constant 0 : index
    %347 = vector.load %arg12[%c1_130, %c0_131, %c0_132] : memref<2x1x64xf32, #tpu.memory_space<vmem>>, vector<1x1x64xf32>
    %348 = vector.shape_cast %347 : vector<1x1x64xf32> to vector<1x64xf32>
    %349 = vector.broadcast %348 : vector<1x64xf32> to vector<8x64xf32>
    %350 = arith.addf %346, %349 : vector<8x64xf32>
    %cst_133 = arith.constant 5.000000e-01 : f32
    %351 = vector.broadcast %cst_133 : f32 to vector<8x64xf32>
    %352 = arith.mulf %351, %350 : vector<8x64xf32>
    %cst_134 = arith.constant 0.707106769 : f32
    %353 = vector.broadcast %cst_134 : f32 to vector<8x64xf32>
    %354 = arith.mulf %350, %353 : vector<8x64xf32>
    %355 = math.erf %354 : vector<8x64xf32>
    %cst_135 = arith.constant 1.000000e+00 : f32
    %356 = vector.broadcast %cst_135 : f32 to vector<8x64xf32>
    %357 = arith.addf %356, %355 : vector<8x64xf32>
    %358 = arith.mulf %352, %357 : vector<8x64xf32>
    %359 = arith.truncf %358 : vector<8x64xf32> to vector<8x64xbf16>
    %c1_136 = arith.constant 1 : index
    %c0_137 = arith.constant 0 : index
    %c0_138 = arith.constant 0 : index
    %360 = vector.load %arg13[%c1_136, %c0_137, %c0_138] : memref<2x64x32xbf16, #tpu.memory_space<vmem>>, vector<1x64x32xbf16>
    %361 = vector.shape_cast %360 : vector<1x64x32xbf16> to vector<64x32xbf16>
    %cst_139 = arith.constant dense<0.000000e+00> : vector<8x32xf32>
    %362 = tpu.matmul %359, %361, %cst_139 {dimension_numbers = #tpu.dot_dimension_numbers<[1], [0], [0], [1], [0, 0, 1, 1], [], []>} : vector<8x64xbf16>, vector<64x32xbf16>, vector<8x32xf32> -> vector<8x32xf32>
    %c1_140 = arith.constant 1 : index
    %c0_141 = arith.constant 0 : index
    %c0_142 = arith.constant 0 : index
    %363 = vector.load %arg14[%c1_140, %c0_141, %c0_142] : memref<2x1x32xf32, #tpu.memory_space<vmem>>, vector<1x1x32xf32>
    %364 = vector.shape_cast %363 : vector<1x1x32xf32> to vector<1x32xf32>
    %365 = vector.broadcast %364 : vector<1x32xf32> to vector<8x32xf32>
    %366 = arith.addf %362, %365 : vector<8x32xf32>
    %367 = arith.addf %366, %342 : vector<8x32xf32>
    %c1_143 = arith.constant 1 : index
    %c0_144 = arith.constant 0 : index
    %c0_145 = arith.constant 0 : index
    %368 = vector.load %arg15[%c1_143, %c0_144, %c0_145] : memref<2x1x32xf32, #tpu.memory_space<vmem>>, vector<1x1x32xf32>
    %369 = vector.shape_cast %368 : vector<1x1x32xf32> to vector<1x32xf32>
    %c1_146 = arith.constant 1 : index
    %c0_147 = arith.constant 0 : index
    %c0_148 = arith.constant 0 : index
    %370 = vector.load %arg16[%c1_146, %c0_147, %c0_148] : memref<2x1x32xf32, #tpu.memory_space<vmem>>, vector<1x1x32xf32>
    %371 = vector.shape_cast %370 : vector<1x1x32xf32> to vector<1x32xf32>
    %cst_149 = arith.constant dense<0.000000e+00> : vector<8xf32>
    %372 = vector.multi_reduction <add>, %367, %cst_149 [1] : vector<8x32xf32> to vector<8xf32>
    %373 = vector.shape_cast %372 : vector<8xf32> to vector<8x1xf32>
    %cst_150 = arith.constant 3.200000e+01 : f32
    %374 = vector.broadcast %cst_150 : f32 to vector<8x1xf32>
    %375 = arith.divf %373, %374 : vector<8x1xf32>
    %376 = arith.mulf %367, %367 : vector<8x32xf32>
    %cst_151 = arith.constant dense<0.000000e+00> : vector<8xf32>
    %377 = vector.multi_reduction <add>, %376, %cst_151 [1] : vector<8x32xf32> to vector<8xf32>
    %378 = vector.shape_cast %377 : vector<8xf32> to vector<8x1xf32>
    %cst_152 = arith.constant 3.200000e+01 : f32
    %379 = vector.broadcast %cst_152 : f32 to vector<8x1xf32>
    %380 = arith.divf %378, %379 : vector<8x1xf32>
    %381 = arith.mulf %375, %375 : vector<8x1xf32>
    %382 = arith.subf %380, %381 : vector<8x1xf32>
    %cst_153 = arith.constant 0.000000e+00 : f32
    %383 = vector.broadcast %cst_153 : f32 to vector<8x1xf32>
    %384 = arith.maximumf %382, %383 : vector<8x1xf32>
    %385 = vector.broadcast %375 : vector<8x1xf32> to vector<8x32xf32>
    %386 = arith.subf %367, %385 : vector<8x32xf32>
    %cst_154 = arith.constant 9.99999996E-13 : f32
    %387 = vector.broadcast %cst_154 : f32 to vector<8x1xf32>
    %388 = arith.addf %384, %387 : vector<8x1xf32>
    %389 = math.rsqrt %388 : vector<8x1xf32>
    %390 = vector.broadcast %389 : vector<8x1xf32> to vector<8x32xf32>
    %391 = arith.mulf %386, %390 : vector<8x32xf32>
    %392 = vector.broadcast %369 : vector<1x32xf32> to vector<8x32xf32>
    %393 = arith.mulf %391, %392 : vector<8x32xf32>
    %394 = vector.broadcast %371 : vector<1x32xf32> to vector<8x32xf32>
    %395 = arith.addf %393, %394 : vector<8x32xf32>
    %396 = vector.shape_cast %395 : vector<8x32xf32> to vector<1x8x32xf32>
    %c0_155 = arith.constant 0 : index
    %c0_156 = arith.constant 0 : index
    %c0_157 = arith.constant 0 : index
    %397 = vector.load %arg17[%c0_155, %c0_156, %c0_157] : memref<1x8x32xf32, #tpu.memory_space<vmem>>, vector<1x8x32xf32>
    tpu.vector_store %arg17[%c0_155, %c0_156, %c0_157], %396 {strides = array<i32>} : memref<1x8x32xf32, #tpu.memory_space<vmem>>, vector<1x8x32xf32>,
    return
  }
  func.func @transform_0(%arg0: i32) -> (i32, i32, i32) {
    %c0_i32 = arith.constant 0 : i32
    %c0_i32_0 = arith.constant 0 : i32
    %c0_i32_1 = arith.constant 0 : i32
    return %arg0, %c0_i32, %c0_i32_0 : i32, i32, i32
  }
  func.func @transform_1(%arg0: i32) -> (i32, i32, i32) {
    %c0_i32 = arith.constant 0 : i32
    %c0_i32_0 = arith.constant 0 : i32
    %c0_i32_1 = arith.constant 0 : i32
    return %arg0, %c0_i32, %c0_i32_0 : i32, i32, i32
  }
  func.func @transform_2(%arg0: i32) -> (i32, i32) {
    %c0_i32 = arith.constant 0 : i32
    %c0_i32_0 = arith.constant 0 : i32
    %c0_i32_1 = arith.constant 0 : i32
    return %c0_i32, %c0_i32_0 : i32, i32
  }
  func.func @transform_3(%arg0: i32) -> (i32, i32) {
    %c0_i32 = arith.constant 0 : i32
    %c0_i32_0 = arith.constant 0 : i32
    %c0_i32_1 = arith.constant 0 : i32
    return %c0_i32, %c0_i32_0 : i32, i32
  }
  func.func @transform_4(%arg0: i32) -> (i32, i32, i32) {
    %c0_i32 = arith.constant 0 : i32
    %c0_i32_0 = arith.constant 0 : i32
    %c0_i32_1 = arith.constant 0 : i32
    %c0_i32_2 = arith.constant 0 : i32
    return %c0_i32, %c0_i32_0, %c0_i32_1 : i32, i32, i32
  }
  func.func @transform_5(%arg0: i32) -> (i32, i32, i32) {
    %c0_i32 = arith.constant 0 : i32
    %c0_i32_0 = arith.constant 0 : i32
    %c0_i32_1 = arith.constant 0 : i32
    %c0_i32_2 = arith.constant 0 : i32
    return %c0_i32, %c0_i32_0, %c0_i32_1 : i32, i32, i32
  }
  func.func @transform_6(%arg0: i32) -> (i32, i32, i32) {
    %c0_i32 = arith.constant 0 : i32
    %c0_i32_0 = arith.constant 0 : i32
    %c0_i32_1 = arith.constant 0 : i32
    %c0_i32_2 = arith.constant 0 : i32
    return %c0_i32, %c0_i32_0, %c0_i32_1 : i32, i32, i32
  }
  func.func @transform_7(%arg0: i32) -> (i32, i32, i32) {
    %c0_i32 = arith.constant 0 : i32
    %c0_i32_0 = arith.constant 0 : i32
    %c0_i32_1 = arith.constant 0 : i32
    %c0_i32_2 = arith.constant 0 : i32
    return %c0_i32, %c0_i32_0, %c0_i32_1 : i32, i32, i32
  }
  func.func @transform_8(%arg0: i32) -> (i32, i32, i32) {
    %c0_i32 = arith.constant 0 : i32
    %c0_i32_0 = arith.constant 0 : i32
    %c0_i32_1 = arith.constant 0 : i32
    %c0_i32_2 = arith.constant 0 : i32
    return %c0_i32, %c0_i32_0, %c0_i32_1 : i32, i32, i32
  }
  func.func @transform_9(%arg0: i32) -> (i32, i32, i32) {
    %c0_i32 = arith.constant 0 : i32
    %c0_i32_0 = arith.constant 0 : i32
    %c0_i32_1 = arith.constant 0 : i32
    %c0_i32_2 = arith.constant 0 : i32
    return %c0_i32, %c0_i32_0, %c0_i32_1 : i32, i32, i32
  }
  func.func @transform_10(%arg0: i32) -> (i32, i32, i32) {
    %c0_i32 = arith.constant 0 : i32
    %c0_i32_0 = arith.constant 0 : i32
    %c0_i32_1 = arith.constant 0 : i32
    %c0_i32_2 = arith.constant 0 : i32
    return %c0_i32, %c0_i32_0, %c0_i32_1 : i32, i32, i32
  }
  func.func @transform_11(%arg0: i32) -> (i32, i32, i32) {
    %c0_i32 = arith.constant 0 : i32
    %c0_i32_0 = arith.constant 0 : i32
    %c0_i32_1 = arith.constant 0 : i32
    %c0_i32_2 = arith.constant 0 : i32
    return %c0_i32, %c0_i32_0, %c0_i32_1 : i32, i32, i32
  }
  func.func @transform_12(%arg0: i32) -> (i32, i32, i32) {
    %c0_i32 = arith.constant 0 : i32
    %c0_i32_0 = arith.constant 0 : i32
    %c0_i32_1 = arith.constant 0 : i32
    %c0_i32_2 = arith.constant 0 : i32
    return %c0_i32, %c0_i32_0, %c0_i32_1 : i32, i32, i32
  }
  func.func @transform_13(%arg0: i32) -> (i32, i32, i32) {
    %c0_i32 = arith.constant 0 : i32
    %c0_i32_0 = arith.constant 0 : i32
    %c0_i32_1 = arith.constant 0 : i32
    %c0_i32_2 = arith.constant 0 : i32
    return %c0_i32, %c0_i32_0, %c0_i32_1 : i32, i32, i32
  }
  func.func @transform_14(%arg0: i32) -> (i32, i32, i32) {
    %c0_i32 = arith.constant 0 : i32
    %c0_i32_0 = arith.constant 0 : i32
    %c0_i32_1 = arith.constant 0 : i32
    %c0_i32_2 = arith.constant 0 : i32
    return %c0_i32, %c0_i32_0, %c0_i32_1 : i32, i32, i32
  }
  func.func @transform_15(%arg0: i32) -> (i32, i32, i32) {
    %c0_i32 = arith.constant 0 : i32
    %c0_i32_0 = arith.constant 0 : i32
    %c0_i32_1 = arith.constant 0 : i32
    %c0_i32_2 = arith.constant 0 : i32
    return %c0_i32, %c0_i32_0, %c0_i32_1 : i32, i32, i32
  }
  func.func @transform_16(%arg0: i32) -> (i32, i32, i32) {
    %c0_i32 = arith.constant 0 : i32
    %c0_i32_0 = arith.constant 0 : i32
    %c0_i32_1 = arith.constant 0 : i32
    return %arg0, %c0_i32, %c0_i32_0 : i32, i32, i32
  }
}

</mosaic_0001>

<llo_original>
// kernel: text_encoder_forward.1
$region0: #{text_encoder_forward.1}
  #allocation0 [shape = 'u32[]', space=smem, size = 0x4, offset = 0x4, fixed_abs, tag = 'smem constant byte address 0x4 - core index']
  #allocation1 [shape = 'u32[144,128]{1,0:T(1,128)}', space=vmem, size = 0x12000, scoped, tag = 'internal scratch']
  %s0 = inlined_call_operand.vmem [shape: f32[2,8,32], index: 0, kind: input, shape index: {}]
  %s1 = inlined_call_operand.vmem [shape: f32[2,1,8], index: 1, kind: input, shape index: {}]
  %s2 = inlined_call_operand.vmem [shape: f32[1,32], index: 2, kind: input, shape index: {}]
  %s3 = inlined_call_operand.vmem [shape: f32[1,32], index: 3, kind: input, shape index: {}]
  %s4 = inlined_call_operand.vmem [shape: bf16[2,32,96], index: 4, kind: input, shape index: {}]
  %s5 = inlined_call_operand.vmem [shape: f32[2,1,96], index: 5, kind: input, shape index: {}]
  %s6 = inlined_call_operand.vmem [shape: bf16[2,32,32], index: 6, kind: input, shape index: {}]
  %s7 = inlined_call_operand.vmem [shape: f32[2,1,32], index: 7, kind: input, shape index: {}]
  %s8 = inlined_call_operand.vmem [shape: f32[2,1,32], index: 8, kind: input, shape index: {}]
  %s9 = inlined_call_operand.vmem [shape: f32[2,1,32], index: 9, kind: input, shape index: {}]
  %s10 = inlined_call_operand.vmem [shape: bf16[2,32,64], index: 10, kind: input, shape index: {}]
  %s11 = inlined_call_operand.vmem [shape: f32[2,1,64], index: 11, kind: input, shape index: {}]
  %s12 = inlined_call_operand.vmem [shape: bf16[2,64,32], index: 12, kind: input, shape index: {}]
  %s13 = inlined_call_operand.vmem [shape: f32[2,1,32], index: 13, kind: input, shape index: {}]
  %s14 = inlined_call_operand.vmem [shape: f32[2,1,32], index: 14, kind: input, shape index: {}]
  %s15 = inlined_call_operand.vmem [shape: f32[2,1,32], index: 15, kind: input, shape index: {}]
  %s16 = inlined_call_operand.hbm [shape: f32[2,8,32], index: 16, kind: output, shape index: {}]
  %s17 = sld [smem:[#allocation0]]
  $region97: #{text_encoder_forward.1} parent=0
    _
  %s19 = ssub.s32 1, %s17
  %s20 = scalar_select 0, %s19, %s17
  $region1: #{text_encoder_forward.1} parent=0
    #allocation2 [shape = 'u8[8192]{0}', space=vmem, size = 0x2000, scoped, tag = 'output window, operand 0']
    #allocation3 [shape = 's32[2]{0}', space=sflag, size = 0x8, scoped, tag = 'scoped memory for text_encoder_forward.1']
    %21 = vsyncpa [#allocation3], 0
    %s22 = scalar_lea.sflag [#allocation3], 1
    %23 = vsyncpa %s22, 0
    loop: start=0, step=1, limit=4
    $region2: #{text_encoder_forward.1} parent=1 // loop_pre_header
      _
    $region3: #{text_encoder_forward.1} parent=1 // loop_header
      %s25 = sphi 0, %s29
      %p26 = scmp.ge.s32.totalorder %s25, 4
      %s35 = sphi 0, %s37
      %s38 = sphi 0, %s35
      %s39 = sphi 0, %s38
      %s55 = sphi 0, %s39
      %s61 = sphi 0, %s63
      %s64 = sphi 0, %s61
      %s65 = sphi 0, %s64
      %s81 = sphi 0, %s65
      %s85 = sphi 0, %s85
      %s87 = sphi 0, %s85
      %s88 = sphi 0, %s87
      %s102 = sphi 0, %s88
      %s106 = sphi 0, %s106
      %s108 = sphi 0, %s106
      %s109 = sphi 0, %s108
      %s123 = sphi 0, %s109
      %s127 = sphi 0, %s127
      %s129 = sphi 0, %s127
      %s130 = sphi 0, %s129
      %s144 = sphi 0, %s130
      %s148 = sphi 0, %s148
      %s150 = sphi 0, %s148
      %s151 = sphi 0, %s150
      %s165 = sphi 0, %s151
      %s169 = sphi 0, %s169
      %s171 = sphi 0, %s169
      %s172 = sphi 0, %s171
      %s186 = sphi 0, %s172
      %s190 = sphi 0, %s190
      %s192 = sphi 0, %s190
      %s193 = sphi 0, %s192
      %s207 = sphi 0, %s193
      %s211 = sphi 0, %s211
      %s213 = sphi 0, %s211
      %s214 = sphi 0, %s213
      %s228 = sphi 0, %s214
      %s232 = sphi 0, %s232
      %s234 = sphi 0, %s232
      %s235 = sphi 0, %s234
      %s249 = sphi 0, %s235
      %s253 = sphi 0, %s253
      %s255 = sphi 0, %s253
      %s256 = sphi 0, %s255
      %s270 = sphi 0, %s256
      %s274 = sphi 0, %s274
      %s276 = sphi 0, %s274
      %s277 = sphi 0, %s276
      %s291 = sphi 0, %s277
      %s295 = sphi 0, %s295
      %s297 = sphi 0, %s295
      %s298 = sphi 0, %s297
      %s312 = sphi 0, %s298
      %s316 = sphi 0, %s316
      %s318 = sphi 0, %s316
      %s319 = sphi 0, %s318
      %s333 = sphi 0, %s319
      %s337 = sphi 0, %s337
      %s339 = sphi 0, %s337
      %s340 = sphi 0, %s339
      %s354 = sphi 0, %s340
      %s358 = sphi 0, %s358
      %s360 = sphi 0, %s358
      %s361 = sphi 0, %s360
      %s375 = sphi 0, %s361
      %s381 = sphi 0, %s383
      %s384 = sphi 0, %s381
      %s385 = sphi 0, %s384
      %s401 = sphi 0, %s385
    $region4: #{text_encoder_forward.1} parent=1 // loop_header_branch
      %28 = sbr.rel (%p26) target = $region8
    $region5: #{text_encoder_forward.1} parent=1 // loop_body
      %s30 = ssub.s32 %s25, 1
      %s31 = ssub.s32 %s25, 2
      %s32 = sadd.s32 %s25, 1
      %s33 = ssub.s32 %s25, %s32
      %p34 = scmp.eq.s32.totalorder %s33, 0
      %s36 = sadd.s32 %s35, 1
      %s37 = scalar_select %p34, %s35, %s36
      %p40 = pneg %p34
      %p41 = scmp.eq.s32.totalorder %s25, 1
      %p42 = por %p40, %p41
      %p43 = scmp.ne.s32.totalorder %s35, %s38
      %p44 = scmp.eq.s32.totalorder %s25, 0
      %p45 = por %p43, %p44
      %p46 = scmp.ne.s32.totalorder %s35, %s38
      %p47 = scmp.eq.s32.totalorder %s30, 1
      %p48 = por %p46, %p47
      %p49 = scmp.ne.s32.totalorder %s38, %s39
      %p50 = scmp.eq.s32.totalorder %s30, 0
      %p51 = por %p49, %p50
      %p52 = scmp.ne.s32.totalorder %s38, %s39
      %p53 = scmp.eq.s32.totalorder %s31, 1
      %p54 = por %p52, %p53
      %p56 = scmp.ne.s32.totalorder %s39, %s55
      %p57 = scmp.eq.s32.totalorder %s31, 0
      %p58 = por %p56, %p57
      %s59 = ssub.s32 %s25, %s32
      %p60 = scmp.eq.s32.totalorder %s59, 0
      %s62 = sadd.s32 %s61, 1
      %s63 = scalar_select %p60, %s61, %s62
      %p66 = pneg %p60
      %p67 = scmp.eq.s32.totalorder %s25, 1
      %p68 = por %p66, %p67
      %p69 = scmp.ne.s32.totalorder %s61, %s64
      %p70 = scmp.eq.s32.totalorder %s25, 0
      %p71 = por %p69, %p70
      %p72 = scmp.ne.s32.totalorder %s61, %s64
      %p73 = scmp.eq.s32.totalorder %s30, 1
      %p74 = por %p72, %p73
      %p75 = scmp.ne.s32.totalorder %s64, %s65
      %p76 = scmp.eq.s32.totalorder %s30, 0
      %p77 = por %p75, %p76
      %p78 = scmp.ne.s32.totalorder %s64, %s65
      %p79 = scmp.eq.s32.totalorder %s31, 1
      %p80 = por %p78, %p79
      %p82 = scmp.ne.s32.totalorder %s65, %s81
      %p83 = scmp.eq.s32.totalorder %s31, 0
      %p84 = por %p82, %p83
      %s86 = sadd.s32 %s85, 1
      %p89 = scmp.eq.s32.totalorder %s25, 1
      %p90 = scmp.ne.s32.totalorder %s85, %s87
      %p91 = scmp.eq.s32.totalorder %s25, 0
      %p92 = por %p90, %p91
      %p93 = scmp.ne.s32.totalorder %s85, %s87
      %p94 = scmp.eq.s32.totalorder %s30, 1
      %p95 = por %p93, %p94
      %p96 = scmp.ne.s32.totalorder %s87, %s88
      %p97 = scmp.eq.s32.totalorder %s30, 0
      %p98 = por %p96, %p97
      %p99 = scmp.ne.s32.totalorder %s87, %s88
      %p100 = scmp.eq.s32.totalorder %s31, 1
      %p101 = por %p99, %p100
      %p103 = scmp.ne.s32.totalorder %s88, %s102
      %p104 = scmp.eq.s32.totalorder %s31, 0
      %p105 = por %p103, %p104
      %s107 = sadd.s32 %s106, 1
      %p110 = scmp.eq.s32.totalorder %s25, 1
      %p111 = scmp.ne.s32.totalorder %s106, %s108
      %p112 = scmp.eq.s32.totalorder %s25, 0
      %p113 = por %p111, %p112
      %p114 = scmp.ne.s32.totalorder %s106, %s108
      %p115 = scmp.eq.s32.totalorder %s30, 1
      %p116 = por %p114, %p115
      %p117 = scmp.ne.s32.totalorder %s108, %s109
      %p118 = scmp.eq.s32.totalorder %s30, 0
      %p119 = por %p117, %p118
      %p120 = scmp.ne.s32.totalorder %s108, %s109
      %p121 = scmp.eq.s32.totalorder %s31, 1
      %p122 = por %p120, %p121
      %p124 = scmp.ne.s32.totalorder %s109, %s123
      %p125 = scmp.eq.s32.totalorder %s31, 0
      %p126 = por %p124, %p125
      %s128 = sadd.s32 %s127, 1
      %p131 = scmp.eq.s32.totalorder %s25, 1
      %p132 = scmp.ne.s32.totalorder %s127, %s129
      %p133 = scmp.eq.s32.totalorder %s25, 0
      %p134 = por %p132, %p133
      %p135 = scmp.ne.s32.totalorder %s127, %s129
      %p136 = scmp.eq.s32.totalorder %s30, 1
      %p137 = por %p135, %p136
      %p138 = scmp.ne.s32.totalorder %s129, %s130
      %p139 = scmp.eq.s32.totalorder %s30, 0
      %p140 = por %p138, %p139
      %p141 = scmp.ne.s32.totalorder %s129, %s130
      %p142 = scmp.eq.s32.totalorder %s31, 1
      %p143 = por %p141, %p142
      %p145 = scmp.ne.s32.totalorder %s130, %s144
      %p146 = scmp.eq.s32.totalorder %s31, 0
      %p147 = por %p145, %p146
      %s149 = sadd.s32 %s148, 1
      %p152 = scmp.eq.s32.totalorder %s25, 1
      %p153 = scmp.ne.s32.totalorder %s148, %s150
      %p154 = scmp.eq.s32.totalorder %s25, 0
      %p155 = por %p153, %p154
      %p156 = scmp.ne.s32.totalorder %s148, %s150
      %p157 = scmp.eq.s32.totalorder %s30, 1
      %p158 = por %p156, %p157
      %p159 = scmp.ne.s32.totalorder %s150, %s151
      %p160 = scmp.eq.s32.totalorder %s30, 0
      %p161 = por %p159, %p160
      %p162 = scmp.ne.s32.totalorder %s150, %s151
      %p163 = scmp.eq.s32.totalorder %s31, 1
      %p164 = por %p162, %p163
      %p166 = scmp.ne.s32.totalorder %s151, %s165
      %p167 = scmp.eq.s32.totalorder %s31, 0
      %p168 = por %p166, %p167
      %s170 = sadd.s32 %s169, 1
      %p173 = scmp.eq.s32.totalorder %s25, 1
      %p174 = scmp.ne.s32.totalorder %s169, %s171
      %p175 = scmp.eq.s32.totalorder %s25, 0
      %p176 = por %p174, %p175
      %p177 = scmp.ne.s32.totalorder %s169, %s171
      %p178 = scmp.eq.s32.totalorder %s30, 1
      %p179 = por %p177, %p178
      %p180 = scmp.ne.s32.totalorder %s171, %s172
      %p181 = scmp.eq.s32.totalorder %s30, 0
      %p182 = por %p180, %p181
      %p183 = scmp.ne.s32.totalorder %s171, %s172
      %p184 = scmp.eq.s32.totalorder %s31, 1
      %p185 = por %p183, %p184
      %p187 = scmp.ne.s32.totalorder %s172, %s186
      %p188 = scmp.eq.s32.totalorder %s31, 0
      %p189 = por %p187, %p188
      %s191 = sadd.s32 %s190, 1
      %p194 = scmp.eq.s32.totalorder %s25, 1
      %p195 = scmp.ne.s32.totalorder %s190, %s192
      %p196 = scmp.eq.s32.totalorder %s25, 0
      %p197 = por %p195, %p196
      %p198 = scmp.ne.s32.totalorder %s190, %s192
      %p199 = scmp.eq.s32.totalorder %s30, 1
      %p200 = por %p198, %p199
      %p201 = scmp.ne.s32.totalorder %s192, %s193
      %p202 = scmp.eq.s32.totalorder %s30, 0
      %p203 = por %p201, %p202
      %p204 = scmp.ne.s32.totalorder %s192, %s193
      %p205 = scmp.eq.s32.totalorder %s31, 1
      %p206 = por %p204, %p205
      %p208 = scmp.ne.s32.totalorder %s193, %s207
      %p209 = scmp.eq.s32.totalorder %s31, 0
      %p210 = por %p208, %p209
      %s212 = sadd.s32 %s211, 1
      %p215 = scmp.eq.s32.totalorder %s25, 1
      %p216 = scmp.ne.s32.totalorder %s211, %s213
      %p217 = scmp.eq.s32.totalorder %s25, 0
      %p218 = por %p216, %p217
      %p219 = scmp.ne.s32.totalorder %s211, %s213
      %p220 = scmp.eq.s32.totalorder %s30, 1
      %p221 = por %p219, %p220
      %p222 = scmp.ne.s32.totalorder %s213, %s214
      %p223 = scmp.eq.s32.totalorder %s30, 0
      %p224 = por %p222, %p223
      %p225 = scmp.ne.s32.totalorder %s213, %s214
      %p226 = scmp.eq.s32.totalorder %s31, 1
      %p227 = por %p225, %p226
      %p229 = scmp.ne.s32.totalorder %s214, %s228
      %p230 = scmp.eq.s32.totalorder %s31, 0
      %p231 = por %p229, %p230
      %s233 = sadd.s32 %s232, 1
      %p236 = scmp.eq.s32.totalorder %s25, 1
      %p237 = scmp.ne.s32.totalorder %s232, %s234
      %p238 = scmp.eq.s32.totalorder %s25, 0
      %p239 = por %p237, %p238
      %p240 = scmp.ne.s32.totalorder %s232, %s234
      %p241 = scmp.eq.s32.totalorder %s30, 1
      %p242 = por %p240, %p241
      %p243 = scmp.ne.s32.totalorder %s234, %s235
      %p244 = scmp.eq.s32.totalorder %s30, 0
      %p245 = por %p243, %p244
      %p246 = scmp.ne.s32.totalorder %s234, %s235
      %p247 = scmp.eq.s32.totalorder %s31, 1
      %p248 = por %p246, %p247
      %p250 = scmp.ne.s32.totalorder %s235, %s249
      %p251 = scmp.eq.s32.totalorder %s31, 0
      %p252 = por %p250, %p251
      %s254 = sadd.s32 %s253, 1
      %p257 = scmp.eq.s32.totalorder %s25, 1
      %p258 = scmp.ne.s32.totalorder %s253, %s255
      %p259 = scmp.eq.s32.totalorder %s25, 0
      %p260 = por %p258, %p259
      %p261 = scmp.ne.s32.totalorder %s253, %s255
      %p262 = scmp.eq.s32.totalorder %s30, 1
      %p263 = por %p261, %p262
      %p264 = scmp.ne.s32.totalorder %s255, %s256
      %p265 = scmp.eq.s32.totalorder %s30, 0
      %p266 = por %p264, %p265
      %p267 = scmp.ne.s32.totalorder %s255, %s256
      %p268 = scmp.eq.s32.totalorder %s31, 1
      %p269 = por %p267, %p268
      %p271 = scmp.ne.s32.totalorder %s256, %s270
      %p272 = scmp.eq.s32.totalorder %s31, 0
      %p273 = por %p271, %p272
      %s275 = sadd.s32 %s274, 1
      %p278 = scmp.eq.s32.totalorder %s25, 1
      %p279 = scmp.ne.s32.totalorder %s274, %s276
      %p280 = scmp.eq.s32.totalorder %s25, 0
      %p281 = por %p279, %p280
      %p282 = scmp.ne.s32.totalorder %s274, %s276
      %p283 = scmp.eq.s32.totalorder %s30, 1
      %p284 = por %p282, %p283
      %p285 = scmp.ne.s32.totalorder %s276, %s277
      %p286 = scmp.eq.s32.totalorder %s30, 0
      %p287 = por %p285, %p286
      %p288 = scmp.ne.s32.totalorder %s276, %s277
      %p289 = scmp.eq.s32.totalorder %s31, 1
      %p290 = por %p288, %p289
      %p292 = scmp.ne.s32.totalorder %s277, %s291
      %p293 = scmp.eq.s32.totalorder %s31, 0
      %p294 = por %p292, %p293
      %s296 = sadd.s32 %s295, 1
      %p299 = scmp.eq.s32.totalorder %s25, 1
      %p300 = scmp.ne.s32.totalorder %s295, %s297
      %p301 = scmp.eq.s32.totalorder %s25, 0
      %p302 = por %p300, %p301
      %p303 = scmp.ne.s32.totalorder %s295, %s297
      %p304 = scmp.eq.s32.totalorder %s30, 1
      %p305 = por %p303, %p304
      %p306 = scmp.ne.s32.totalorder %s297, %s298
      %p307 = scmp.eq.s32.totalorder %s30, 0
      %p308 = por %p306, %p307
      %p309 = scmp.ne.s32.totalorder %s297, %s298
      %p310 = scmp.eq.s32.totalorder %s31, 1
      %p311 = por %p309, %p310
      %p313 = scmp.ne.s32.totalorder %s298, %s312
      %p314 = scmp.eq.s32.totalorder %s31, 0
      %p315 = por %p313, %p314
      %s317 = sadd.s32 %s316, 1
      %p320 = scmp.eq.s32.totalorder %s25, 1
      %p321 = scmp.ne.s32.totalorder %s316, %s318
      %p322 = scmp.eq.s32.totalorder %s25, 0
      %p323 = por %p321, %p322
      %p324 = scmp.ne.s32.totalorder %s316, %s318
      %p325 = scmp.eq.s32.totalorder %s30, 1
      %p326 = por %p324, %p325
      %p327 = scmp.ne.s32.totalorder %s318, %s319
      %p328 = scmp.eq.s32.totalorder %s30, 0
      %p329 = por %p327, %p328
      %p330 = scmp.ne.s32.totalorder %s318, %s319
      %p331 = scmp.eq.s32.totalorder %s31, 1
      %p332 = por %p330, %p331
      %p334 = scmp.ne.s32.totalorder %s319, %s333
      %p335 = scmp.eq.s32.totalorder %s31, 0
      %p336 = por %p334, %p335
      %s338 = sadd.s32 %s337, 1
      %p341 = scmp.eq.s32.totalorder %s25, 1
      %p342 = scmp.ne.s32.totalorder %s337, %s339
      %p343 = scmp.eq.s32.totalorder %s25, 0
      %p344 = por %p342, %p343
      %p345 = scmp.ne.s32.totalorder %s337, %s339
      %p346 = scmp.eq.s32.totalorder %s30, 1
      %p347 = por %p345, %p346
      %p348 = scmp.ne.s32.totalorder %s339, %s340
      %p349 = scmp.eq.s32.totalorder %s30, 0
      %p350 = por %p348, %p349
      %p351 = scmp.ne.s32.totalorder %s339, %s340
      %p352 = scmp.eq.s32.totalorder %s31, 1
      %p353 = por %p351, %p352
      %p355 = scmp.ne.s32.totalorder %s340, %s354
      %p356 = scmp.eq.s32.totalorder %s31, 0
      %p357 = por %p355, %p356
      %s359 = sadd.s32 %s358, 1
      %p362 = scmp.eq.s32.totalorder %s25, 1
      %p363 = scmp.ne.s32.totalorder %s358, %s360
      %p364 = scmp.eq.s32.totalorder %s25, 0
      %p365 = por %p363, %p364
      %p366 = scmp.ne.s32.totalorder %s358, %s360
      %p367 = scmp.eq.s32.totalorder %s30, 1
      %p368 = por %p366, %p367
      %p369 = scmp.ne.s32.totalorder %s360, %s361
      %p370 = scmp.eq.s32.totalorder %s30, 0
      %p371 = por %p369, %p370
      %p372 = scmp.ne.s32.totalorder %s360, %s361
      %p373 = scmp.eq.s32.totalorder %s31, 1
      %p374 = por %p372, %p373
      %p376 = scmp.ne.s32.totalorder %s361, %s375
      %p377 = scmp.eq.s32.totalorder %s31, 0
      %p378 = por %p376, %p377
      %s379 = ssub.s32 %s25, %s32
      %p380 = scmp.eq.s32.totalorder %s379, 0
      %s382 = sadd.s32 %s381, 1
      %s383 = scalar_select %p380, %s381, %s382
      %p386 = pneg %p380
      %p387 = scmp.eq.s32.totalorder %s25, 1
      %p388 = por %p386, %p387
      %p389 = scmp.ne.s32.totalorder %s381, %s384
      %p390 = scmp.eq.s32.totalorder %s25, 0
      %p391 = por %p389, %p390
      %p392 = scmp.ne.s32.totalorder %s381, %s384
      %p393 = scmp.eq.s32.totalorder %s30, 1
      %p394 = por %p392, %p393
      %p395 = scmp.ne.s32.totalorder %s384, %s385
      %p396 = scmp.eq.s32.totalorder %s30, 0
      %p397 = por %p395, %p396
      %p398 = scmp.ne.s32.totalorder %s384, %s385
      %p399 = scmp.eq.s32.totalorder %s31, 1
      %p400 = por %p398, %p399
      %p402 = scmp.ne.s32.totalorder %s385, %s401
      %p403 = scmp.eq.s32.totalorder %s31, 0
      %p404 = por %p402, %p403
      %p405 = scmp.le.s32.totalorder 1, %s25
      %p406 = scmp.lt.s32.totalorder %s25, 3
      %p407 = pnand %p405, %p406
      %p408 = pneg %p407
      // Predicated region
      $region9: #{text_encoder_forward.1} parent=5 // pred_check
        _
      $region10: #{text_encoder_forward.1} parent=5 // pred_check_branch
        %410 = sbr.rel (%p407) target = $region12
      $region11: #{text_encoder_forward.1} parent=5 // pred_region
        %s411 = ssub.s32 %s25, 1
        // Predicated region
        $region13: #{text_encoder_forward.1} parent=11 // pred_check
          %p412 = pneg %p98
        $region14: #{text_encoder_forward.1} parent=11 // pred_check_branch
          %414 = sbr.rel (%p412) target = $region16
        $region15: #{text_encoder_forward.1} parent=11 // pred_region
          _
        $region16: #{text_encoder_forward.1} parent=11 // pred_fallthru
          _
        // Predicated region
        $region17: #{text_encoder_forward.1} parent=11 // pred_check
          %p415 = pneg %p119
        $region18: #{text_encoder_forward.1} parent=11 // pred_check_branch
          %417 = sbr.rel (%p415) target = $region20
        $region19: #{text_encoder_forward.1} parent=11 // pred_region
          _
        $region20: #{text_encoder_forward.1} parent=11 // pred_fallthru
          _
        // Predicated region
        $region21: #{text_encoder_forward.1} parent=11 // pred_check
          %p418 = pneg %p140
        $region22: #{text_encoder_forward.1} parent=11 // pred_check_branch
          %420 = sbr.rel (%p418) target = $region24
        $region23: #{text_encoder_forward.1} parent=11 // pred_region
          _
        $region24: #{text_encoder_forward.1} parent=11 // pred_fallthru
          _
        // Predicated region
        $region25: #{text_encoder_forward.1} parent=11 // pred_check
          %p421 = pneg %p161
        $region26: #{text_encoder_forward.1} parent=11 // pred_check_branch
          %423 = sbr.rel (%p421) target = $region28
        $region27: #{text_encoder_forward.1} parent=11 // pred_region
          _
        $region28: #{text_encoder_forward.1} parent=11 // pred_fallthru
          _
        // Predicated region
        $region29: #{text_encoder_forward.1} parent=11 // pred_check
          %p424 = pneg %p182
        $region30: #{text_encoder_forward.1} parent=11 // pred_check_branch
          %426 = sbr.rel (%p424) target = $region32
        $region31: #{text_encoder_forward.1} parent=11 // pred_region
          _
        $region32: #{text_encoder_forward.1} parent=11 // pred_fallthru
          _
        // Predicated region
        $region33: #{text_encoder_forward.1} parent=11 // pred_check
          %p427 = pneg %p203
        $region34: #{text_encoder_forward.1} parent=11 // pred_check_branch
          %429 = sbr.rel (%p427) target = $region36
        $region35: #{text_encoder_forward.1} parent=11 // pred_region
          _
        $region36: #{text_encoder_forward.1} parent=11 // pred_fallthru
          _
        // Predicated region
        $region37: #{text_encoder_forward.1} parent=11 // pred_check
          %p430 = pneg %p224
        $region38: #{text_encoder_forward.1} parent=11 // pred_check_branch
          %432 = sbr.rel (%p430) target = $region40
        $region39: #{text_encoder_forward.1} parent=11 // pred_region
          _
        $region40: #{text_encoder_forward.1} parent=11 // pred_fallthru
          _
        // Predicated region
        $region41: #{text_encoder_forward.1} parent=11 // pred_check
          %p433 = pneg %p245
        $region42: #{text_encoder_forward.1} parent=11 // pred_check_branch
          %435 = sbr.rel (%p433) target = $region44
        $region43: #{text_encoder_forward.1} parent=11 // pred_region
          _
        $region44: #{text_encoder_forward.1} parent=11 // pred_fallthru
          _
        // Predicated region
        $region45: #{text_encoder_forward.1} parent=11 // pred_check
          %p436 = pneg %p266
        $region46: #{text_encoder_forward.1} parent=11 // pred_check_branch
          %438 = sbr.rel (%p436) target = $region48
        $region47: #{text_encoder_forward.1} parent=11 // pred_region
          _
        $region48: #{text_encoder_forward.1} parent=11 // pred_fallthru
          _
        // Predicated region
        $region49: #{text_encoder_forward.1} parent=11 // pred_check
          %p439 = pneg %p287
        $region50: #{text_encoder_forward.1} parent=11 // pred_check_branch
          %441 = sbr.rel (%p439) target = $region52
        $region51: #{text_encoder_forward.1} parent=11 // pred_region
          _
        $region52: #{text_encoder_forward.1} parent=11 // pred_fallthru
          _
        // Predicated region
        $region53: #{text_encoder_forward.1} parent=11 // pred_check
          %p442 = pneg %p308
        $region54: #{text_encoder_forward.1} parent=11 // pred_check_branch
          %444 = sbr.rel (%p442) target = $region56
        $region55: #{text_encoder_forward.1} parent=11 // pred_region
          _
        $region56: #{text_encoder_forward.1} parent=11 // pred_fallthru
          _
        // Predicated region
        $region57: #{text_encoder_forward.1} parent=11 // pred_check
          %p445 = pneg %p329
        $region58: #{text_encoder_forward.1} parent=11 // pred_check_branch
          %447 = sbr.rel (%p445) target = $region60
        $region59: #{text_encoder_forward.1} parent=11 // pred_region
          _
        $region60: #{text_encoder_forward.1} parent=11 // pred_fallthru
          _
        // Predicated region
        $region61: #{text_encoder_forward.1} parent=11 // pred_check
          %p448 = pneg %p350
        $region62: #{text_encoder_forward.1} parent=11 // pred_check_branch
          %450 = sbr.rel (%p448) target = $region64
        $region63: #{text_encoder_forward.1} parent=11 // pred_region
          _
        $region64: #{text_encoder_forward.1} parent=11 // pred_fallthru
          _
        // Predicated region
        $region65: #{text_encoder_forward.1} parent=11 // pred_check
          %p451 = pneg %p371
        $region66: #{text_encoder_forward.1} parent=11 // pred_check_branch
          %453 = sbr.rel (%p451) target = $region68
        $region67: #{text_encoder_forward.1} parent=11 // pred_region
          _
        $region68: #{text_encoder_forward.1} parent=11 // pred_fallthru
          _
      $region12: #{text_encoder_forward.1} parent=5 // pred_fallthru
        _
      %p454 = scmp.lt.s32.totalorder %s25, 2
      // Predicated region
      $region69: #{text_encoder_forward.1} parent=5 // pred_check
        %p455 = pneg %p454
      $region70: #{text_encoder_forward.1} parent=5 // pred_check_branch
        %457 = sbr.rel (%p455) target = $region72
      $region71: #{text_encoder_forward.1} parent=5 // pred_region
        // Predicated region
        $region73: #{text_encoder_forward.1} parent=71 // pred_check
          %p458 = pneg %p45
        $region74: #{text_encoder_forward.1} parent=71 // pred_check_branch
          %460 = sbr.rel (%p458) target = $region76
        $region75: #{text_encoder_forward.1} parent=71 // pred_region
          %p461 = scmp.lt.s32.totalorder %s25, 1
          %s462 = scalar_select %p461, %s25, 1
          %s463 = smul.addr %s462, 8
          %s464 = scalar_lea.vmem %s0, %s463
        $region76: #{text_encoder_forward.1} parent=71 // pred_fallthru
          _
        // Predicated region
        $region77: #{text_encoder_forward.1} parent=71 // pred_check
          %p465 = pneg %p71
        $region78: #{text_encoder_forward.1} parent=71 // pred_check_branch
          %467 = sbr.rel (%p465) target = $region80
        $region79: #{text_encoder_forward.1} parent=71 // pred_region
          %p468 = scmp.lt.s32.totalorder %s25, 1
          %s469 = scalar_select %p468, %s25, 1
          %s470 = scalar_lea.vmem %s1, %s469
        $region80: #{text_encoder_forward.1} parent=71 // pred_fallthru
          _
      $region72: #{text_encoder_forward.1} parent=5 // pred_fallthru
        _
      %p471 = scmp.le.s32.totalorder 1, %s25
      %p472 = scmp.lt.s32.totalorder %s25, 3
      %p473 = pnand %p471, %p472
      %p474 = pneg %p473
      // Predicated region
      $region81: #{text_encoder_forward.1} parent=5 // pred_check
        _
      $region82: #{text_encoder_forward.1} parent=5 // pred_check_branch
        %476 = sbr.rel (%p473) target = $region84
      $region83: #{text_encoder_forward.1} parent=5 // pred_region
        %s477 = ssub.s32 %s25, 1
        %p478 = scmp.lt.s32.totalorder %s30, 1
        %s479 = scalar_select %p478, %s30, 1
        %s480 = smul.addr %s479, 8
        %s481 = scalar_lea.vmem %s0, %s480
        %p482 = pneg %p51
        %p483 = pneg %p48
        %p484 = scmp.lt.s32.totalorder %s30, 1
        %s485 = scalar_select %p484, %s30, 1
        %s486 = scalar_lea.vmem %s1, %s485
        %p487 = pneg %p77
        %p488 = pneg %p74
        %p489 = pneg %p98
        %p490 = pneg %p95
        %p491 = pneg %p119
        %p492 = pneg %p116
        %p493 = pneg %p140
        %p494 = pneg %p137
        %p495 = pneg %p161
        %p496 = pneg %p158
        %p497 = pneg %p182
        %p498 = pneg %p179
        %p499 = pneg %p203
        %p500 = pneg %p200
        %p501 = pneg %p224
        %p502 = pneg %p221
        %p503 = pneg %p245
        %p504 = pneg %p242
        %p505 = pneg %p266
        %p506 = pneg %p263
        %p507 = pneg %p287
        %p508 = pneg %p284
        %p509 = pneg %p308
        %p510 = pneg %p305
        %p511 = pneg %p329
        %p512 = pneg %p326
        %p513 = pneg %p350
        %p514 = pneg %p347
        %p515 = pneg %p371
        %p516 = pneg %p368
        %p517 = pneg %p397
        %p518 = pneg %p394
        %s519 = sand.u32 %s384, 1
        %s520 = scalar_lea.sflag [#allocation3], %s519
        %s521 = sand.u32 %s384, 1
        %s522 = smul.addr %s521, 8
        %s523 = scalar_lea.vmem [#allocation2], %s522
        %p524 = scmp.lt.s32.totalorder %s30, 1
        %s525 = scalar_select %p524, %s30, 1
        %s526 = smul.addr %s525, 8
        %s527 = scalar_lea.vmem %s0, %s526
        %p528 = scmp.lt.s32.totalorder %s30, 1
        %s529 = scalar_select %p528, %s30, 1
        %s530 = scalar_lea.vmem %s1, %s529
        %v532 = vld [vmem:[%s527] sm:$0xff]
        %v533 = vld [vmem:[%s2] sm:$0x1]
        %v534 = vld [vmem:[%s3] sm:$0x1]
        %vm535 = vcmask 261120
        %v536 = vsel %vm535, %v532, 0.0
        %537 = vadd.xlane.f32.xlu0 %v536
        %v538 = vpop.xlane.xlu0 %537
        %v539 = vrcp.pop 32.0
        %v540 = vmul.f32 %v538, %v539
        %v541 = vmul.f32 %v532, %v532
        %v542 = vsel %vm535, %v541, 0.0
        %543 = vadd.xlane.f32.xlu0 %v542
        %v544 = vpop.xlane.xlu0 %543
        %v545 = vmul.f32 %v544, %v539
        %v546 = vmul.f32 %v540, %v540
        %v547 = vsub.f32 %v545, %v546
        %v548 = vmax.f32 %v547, 0.0
        %v549 = vsub.f32 %v532, %v540
        %v550 = vadd.f32 %v548, 1e-12
        %v551 = vrsqrt.pop %v550
        %v552 = vmul.f32 %v549, %v551
        %v554 = vlaneseq
        %v555 = vshrl.u32 %v554, 7
        %v556 = vsub.s32 0, %v555
        %v557 = vrot.slane %v533, %v556
        %v559 = vmul.f32 %v552, %v557
        %v561 = vlaneseq
        %v562 = vshrl.u32 %v561, 7
        %v563 = vsub.s32 0, %v562
        %v564 = vrot.slane %v534, %v563
        %v566 = vadd.f32 %v559, %v564
        %v567 = vld [vmem:[%s530] sm:$0x1]
        %v568 = vpack.c.bf16 %v566, %v566
        %v569 = vld [vmem:[%s4] sm:$0xf]
        %v570 = vld [vmem:[%s4 + $0x4] sm:$0xf]
        %v571 = vld [vmem:[%s4 + $0x8] sm:$0xf]
        %v572 = vld [vmem:[%s4 + $0xc] sm:$0xf]
        %v573 = vld [vmem:[%s5] sm:$0x1]
        %v575 = vlaneseq
        %v576 = vshrl.u32 %v575, 7
        %v577 = vsub.s32 0, %v576
        %v578 = vrot.slane %v573, %v577
        %v584 = vunpack.c.l.b16 %v569
        %v585 = vunpack.c.l.b16 %v570
        %v586 = vunpack.c.l.b16 %v571
        %v587 = vunpack.c.l.b16 %v572
        %v588 = vpack.c.b16 %v585, %v584
        %v589 = vpack.c.b16 %v587, %v586
        %v593 = vsel %vm535, %v568, 0
        %595 = vmatprep.subr.bf16.mxu0 0
        %596 = vmatpush1.bf16.msra.mxu0 0
        %597 = vmatprep.subr.bf16.mxu0 0
        %598 = vmatpush1.bf16.msra.mxu0 0
        %599 = vmatprep.subr.bf16.mxu0 0
        %600 = vmatpush1.bf16.msra.mxu0 0
        %601 = vmatprep.subr.bf16.mxu0 0
        %602 = vmatpush1.bf16.msra.mxu0 0
        %603 = vmatprep.subr.bf16.mxu0 0
        %604 = vmatpush1.bf16.msra.mxu0 0
        %605 = vmatprep.subr.bf16.mxu0 0
        %606 = vmatpush1.bf16.msra.mxu0 0
        %607 = vmatprep.subr.bf16.mxu0 0
        %608 = vmatpush1.bf16.msra.mxu0 %v589
        %609 = vmatprep.subr.bf16.mxu0 0
        %610 = vmatpush1.bf16.msra.mxu0 %v588
        %611 = vmatprep.subr.bf16.mxu0 0
        %612 = vmatpush2.bf16.msra.mxu0 0
        %613 = vmatprep.subr.bf16.mxu0 0
        %614 = vmatpush2.bf16.msra.mxu0 0
        %615 = vmatprep.subr.bf16.mxu0 0
        %616 = vmatpush2.bf16.msra.mxu0 0
        %617 = vmatprep.subr.bf16.mxu0 0
        %618 = vmatpush2.bf16.msra.mxu0 0
        %619 = vmatprep.subr.bf16.mxu0 0
        %620 = vmatpush2.bf16.msra.mxu0 0
        %621 = vmatprep.subr.bf16.mxu0 0
        %622 = vmatpush2.bf16.msra.mxu0 0
        %623 = vmatprep.subr.bf16.mxu0 0
        %624 = vmatpush2.bf16.msra.mxu0 0
        %625 = vmatprep.subr.bf16.mxu0 0
        %626 = vmatpush2.bf16.msra.mxu0 0
        %627 = vmatprep.mubr.bf16.mxu0 0
        %628 = vmatmul.mubr.bf16.gmra.mxu0 %v593
        %v629 = vpop.f32.mrf.mxu0
        %v630 = vadd.f32 %v578, %v629
        %v631 = vpop.f32.mrf.mxu0
        %v632 = vpop.f32.mrf.mxu0
        %v633 = vpop.f32.mrf.mxu0
        %634 = vdwg.mxu0
        %v635 = vpack.c.bf16 %v630, %v630
        %v637 = vlaneseq
        %v638 = vshrl.u32 %v637, 7
        %v639 = vsub.s32 0, %v638
        %v640 = vrot.slane %v567, %v639
        %643 = vrot.lane.b32.xlu0 %v635, 96
        %v644 = vpop.permute.xlu0 %643
        %vm645 = vcmask 64512
        %v647 = vsel %vm645, %v635, 0
        %v650 = vsel %vm645, %v644, 0
        %652 = vmatprep.subr.bf16.mxu0 0
        %653 = vmatpush1.bf16.xpose.msra.mxu0 0
        %654 = vmatprep.subr.bf16.mxu0 0
        %655 = vmatpush1.bf16.xpose.msra.mxu0 0
        %656 = vmatprep.subr.bf16.mxu0 0
        %657 = vmatpush1.bf16.xpose.msra.mxu0 0
        %658 = vmatprep.subr.bf16.mxu0 0
        %659 = vmatpush1.bf16.xpose.msra.mxu0 0
        %660 = vmatprep.subr.bf16.mxu0 0
        %661 = vmatpush1.bf16.xpose.msra.mxu0 0
        %662 = vmatprep.subr.bf16.mxu0 0
        %663 = vmatpush1.bf16.xpose.msra.mxu0 0
        %664 = vmatprep.subr.bf16.mxu0 0
        %665 = vmatpush1.bf16.xpose.msra.mxu0 0
        %666 = vmatprep.subr.bf16.mxu0 0
        %667 = vmatpush1.bf16.xpose.msra.mxu0 %v650
        %668 = vmatprep.subr.bf16.mxu0 0
        %669 = vmatpush2.bf16.xpose.msra.mxu0 0
        %670 = vmatprep.subr.bf16.mxu0 0
        %671 = vmatpush2.bf16.xpose.msra.mxu0 0
        %672 = vmatprep.subr.bf16.mxu0 0
        %673 = vmatpush2.bf16.xpose.msra.mxu0 0
        %674 = vmatprep.subr.bf16.mxu0 0
        %675 = vmatpush2.bf16.xpose.msra.mxu0 0
        %676 = vmatprep.subr.bf16.mxu0 0
        %677 = vmatpush2.bf16.xpose.msra.mxu0 0
        %678 = vmatprep.subr.bf16.mxu0 0
        %679 = vmatpush2.bf16.xpose.msra.mxu0 0
        %680 = vmatprep.subr.bf16.mxu0 0
        %681 = vmatpush2.bf16.xpose.msra.mxu0 0
        %682 = vmatprep.subr.bf16.mxu0 0
        %683 = vmatpush2.bf16.xpose.msra.mxu0 0
        %684 = vmatprep.mubr.bf16.mxu0 0
        %685 = vmatmul.mubr.bf16.gmra.mxu0 %v647
        %v686 = vpop.f32.mrf.mxu0
        %v687 = vadd.f32 %v640, %v686
        %v688 = vpop.f32.mrf.mxu0
        %v689 = vpop.f32.mrf.mxu0
        %v690 = vpop.f32.mrf.mxu0
        %691 = vdwg.mxu0
        %v692 = vsel %vm645, %v687, -inf
        %693 = vmax.xlane.f32.xlu0 %v692
        %v694 = vpop.xlane.xlu0 %693
        %v695 = vsub.f32 %v687, %v694
        %v696 = vmul.f32 %v695, 1.442695
        %v697 = vpow.pop %v696
        %v698 = vsel %vm645, %v697, 0.0
        %699 = vadd.xlane.f32.xlu0 %v698
        %v700 = vpop.xlane.xlu0 %699
        %v701 = vrcp.pop %v700
        %v702 = vmul.f32 %v697, %v701
        %v703 = vpack.c.bf16 %v702, %v702
        %704 = vrot.lane.b32.xlu0 %v635, 64
        %v705 = vpop.permute.xlu0 %704
        %v707 = vsel %vm645, %v703, 0
        %vm709 = vcmask 1043456
        %v711 = vsel %vm709, %v705, 0
        %713 = vmatprep.subr.bf16.mxu0 0
        %714 = vmatpush1.bf16.msra.mxu0 0
        %715 = vmatprep.subr.bf16.mxu0 0
        %716 = vmatpush1.bf16.msra.mxu0 0
        %717 = vmatprep.subr.bf16.mxu0 0
        %718 = vmatpush1.bf16.msra.mxu0 0
        %719 = vmatprep.subr.bf16.mxu0 0
        %720 = vmatpush1.bf16.msra.mxu0 0
        %721 = vmatprep.subr.bf16.mxu0 0
        %722 = vmatpush1.bf16.msra.mxu0 0
        %723 = vmatprep.subr.bf16.mxu0 0
        %724 = vmatpush1.bf16.msra.mxu0 0
        %725 = vmatprep.subr.bf16.mxu0 0
        %726 = vmatpush1.bf16.msra.mxu0 0
        %727 = vmatprep.subr.bf16.mxu0 0
        %728 = vmatpush1.bf16.msra.mxu0 %v711
        %729 = vmatprep.subr.bf16.mxu0 0
        %730 = vmatpush2.bf16.msra.mxu0 0
        %731 = vmatprep.subr.bf16.mxu0 0
        %732 = vmatpush2.bf16.msra.mxu0 0
        %733 = vmatprep.subr.bf16.mxu0 0
        %734 = vmatpush2.bf16.msra.mxu0 0
        %735 = vmatprep.subr.bf16.mxu0 0
        %736 = vmatpush2.bf16.msra.mxu0 0
        %737 = vmatprep.subr.bf16.mxu0 0
        %738 = vmatpush2.bf16.msra.mxu0 0
        %739 = vmatprep.subr.bf16.mxu0 0
        %740 = vmatpush2.bf16.msra.mxu0 0
        %741 = vmatprep.subr.bf16.mxu0 0
        %742 = vmatpush2.bf16.msra.mxu0 0
        %743 = vmatprep.subr.bf16.mxu0 0
        %744 = vmatpush2.bf16.msra.mxu0 0
        %745 = vmatprep.mubr.bf16.mxu0 0
        %746 = vmatmul.mubr.bf16.gmra.mxu0 %v707
        %v747 = vpop.f32.mrf.mxu0
        %v748 = vadd.f32 0.0, %v747
        %v749 = vpop.f32.mrf.mxu0
        %v750 = vpop.f32.mrf.mxu0
        %v751 = vpop.f32.mrf.mxu0
        %752 = vdwg.mxu0
        %753 = vrot.lane.b32.xlu0 %v635, 120
        %v754 = vpop.permute.xlu0 %753
        %755 = vrot.lane.b32.xlu0 %v635, 88
        %v756 = vpop.permute.xlu0 %755
        %v758 = vsel %vm645, %v754, 0
        %v761 = vsel %vm645, %v756, 0
        %763 = vmatprep.subr.bf16.mxu0 0
        %764 = vmatpush1.bf16.xpose.msra.mxu0 0
        %765 = vmatprep.subr.bf16.mxu0 0
        %766 = vmatpush1.bf16.xpose.msra.mxu0 0
        %767 = vmatprep.subr.bf16.mxu0 0
        %768 = vmatpush1.bf16.xpose.msra.mxu0 0
        %769 = vmatprep.subr.bf16.mxu0 0
        %770 = vmatpush1.bf16.xpose.msra.mxu0 0
        %771 = vmatprep.subr.bf16.mxu0 0
        %772 = vmatpush1.bf16.xpose.msra.mxu0 0
        %773 = vmatprep.subr.bf16.mxu0 0
        %774 = vmatpush1.bf16.xpose.msra.mxu0 0
        %775 = vmatprep.subr.bf16.mxu0 0
        %776 = vmatpush1.bf16.xpose.msra.mxu0 0
        %777 = vmatprep.subr.bf16.mxu0 0
        %778 = vmatpush1.bf16.xpose.msra.mxu0 %v761
        %779 = vmatprep.subr.bf16.mxu0 0
        %780 = vmatpush2.bf16.xpose.msra.mxu0 0
        %781 = vmatprep.subr.bf16.mxu0 0
        %782 = vmatpush2.bf16.xpose.msra.mxu0 0
        %783 = vmatprep.subr.bf16.mxu0 0
        %784 = vmatpush2.bf16.xpose.msra.mxu0 0
        %785 = vmatprep.subr.bf16.mxu0 0
        %786 = vmatpush2.bf16.xpose.msra.mxu0 0
        %787 = vmatprep.subr.bf16.mxu0 0
        %788 = vmatpush2.bf16.xpose.msra.mxu0 0
        %789 = vmatprep.subr.bf16.mxu0 0
        %790 = vmatpush2.bf16.xpose.msra.mxu0 0
        %791 = vmatprep.subr.bf16.mxu0 0
        %792 = vmatpush2.bf16.xpose.msra.mxu0 0
        %793 = vmatprep.subr.bf16.mxu0 0
        %794 = vmatpush2.bf16.xpose.msra.mxu0 0
        %795 = vmatprep.mubr.bf16.mxu0 0
        %796 = vmatmul.mubr.bf16.gmra.mxu0 %v758
        %v797 = vpop.f32.mrf.mxu0
        %v798 = vadd.f32 %v640, %v797
        %v799 = vpop.f32.mrf.mxu0
        %v800 = vpop.f32.mrf.mxu0
        %v801 = vpop.f32.mrf.mxu0
        %802 = vdwg.mxu0
        %v803 = vsel %vm645, %v798, -inf
        %804 = vmax.xlane.f32.xlu0 %v803
        %v805 = vpop.xlane.xlu0 %804
        %v806 = vsub.f32 %v798, %v805
        %v807 = vmul.f32 %v806, 1.442695
        %v808 = vpow.pop %v807
        %v809 = vsel %vm645, %v808, 0.0
        %810 = vadd.xlane.f32.xlu0 %v809
        %v811 = vpop.xlane.xlu0 %810
        %v812 = vrcp.pop %v811
        %v813 = vmul.f32 %v808, %v812
        %v814 = vpack.c.bf16 %v813, %v813
        %815 = vrot.lane.b32.xlu0 %v635, 56
        %v816 = vpop.permute.xlu0 %815
        %v818 = vsel %vm645, %v814, 0
        %v821 = vsel %vm709, %v816, 0
        %823 = vmatprep.subr.bf16.mxu0 0
        %824 = vmatpush1.bf16.msra.mxu0 0
        %825 = vmatprep.subr.bf16.mxu0 0
        %826 = vmatpush1.bf16.msra.mxu0 0
        %827 = vmatprep.subr.bf16.mxu0 0
        %828 = vmatpush1.bf16.msra.mxu0 0
        %829 = vmatprep.subr.bf16.mxu0 0
        %830 = vmatpush1.bf16.msra.mxu0 0
        %831 = vmatprep.subr.bf16.mxu0 0
        %832 = vmatpush1.bf16.msra.mxu0 0
        %833 = vmatprep.subr.bf16.mxu0 0
        %834 = vmatpush1.bf16.msra.mxu0 0
        %835 = vmatprep.subr.bf16.mxu0 0
        %836 = vmatpush1.bf16.msra.mxu0 0
        %837 = vmatprep.subr.bf16.mxu0 0
        %838 = vmatpush1.bf16.msra.mxu0 %v821
        %839 = vmatprep.subr.bf16.mxu0 0
        %840 = vmatpush2.bf16.msra.mxu0 0
        %841 = vmatprep.subr.bf16.mxu0 0
        %842 = vmatpush2.bf16.msra.mxu0 0
        %843 = vmatprep.subr.bf16.mxu0 0
        %844 = vmatpush2.bf16.msra.mxu0 0
        %845 = vmatprep.subr.bf16.mxu0 0
        %846 = vmatpush2.bf16.msra.mxu0 0
        %847 = vmatprep.subr.bf16.mxu0 0
        %848 = vmatpush2.bf16.msra.mxu0 0
        %849 = vmatprep.subr.bf16.mxu0 0
        %850 = vmatpush2.bf16.msra.mxu0 0
        %851 = vmatprep.subr.bf16.mxu0 0
        %852 = vmatpush2.bf16.msra.mxu0 0
        %853 = vmatprep.subr.bf16.mxu0 0
        %854 = vmatpush2.bf16.msra.mxu0 0
        %855 = vmatprep.mubr.bf16.mxu0 0
        %856 = vmatmul.mubr.bf16.gmra.mxu0 %v818
        %v857 = vpop.f32.mrf.mxu0
        %v858 = vadd.f32 0.0, %v857
        %v859 = vpop.f32.mrf.mxu0
        %v860 = vpop.f32.mrf.mxu0
        %v861 = vpop.f32.mrf.mxu0
        %862 = vdwg.mxu0
        %863 = vrot.lane.b32.xlu0 %v635, 112
        %v864 = vpop.permute.xlu0 %863
        %865 = vrot.lane.b32.xlu0 %v635, 80
        %v866 = vpop.permute.xlu0 %865
        %v868 = vsel %vm645, %v864, 0
        %v871 = vsel %vm645, %v866, 0
        %873 = vmatprep.subr.bf16.mxu0 0
        %874 = vmatpush1.bf16.xpose.msra.mxu0 0
        %875 = vmatprep.subr.bf16.mxu0 0
        %876 = vmatpush1.bf16.xpose.msra.mxu0 0
        %877 = vmatprep.subr.bf16.mxu0 0
        %878 = vmatpush1.bf16.xpose.msra.mxu0 0
        %879 = vmatprep.subr.bf16.mxu0 0
        %880 = vmatpush1.bf16.xpose.msra.mxu0 0
        %881 = vmatprep.subr.bf16.mxu0 0
        %882 = vmatpush1.bf16.xpose.msra.mxu0 0
        %883 = vmatprep.subr.bf16.mxu0 0
        %884 = vmatpush1.bf16.xpose.msra.mxu0 0
        %885 = vmatprep.subr.bf16.mxu0 0
        %886 = vmatpush1.bf16.xpose.msra.mxu0 0
        %887 = vmatprep.subr.bf16.mxu0 0
        %888 = vmatpush1.bf16.xpose.msra.mxu0 %v871
        %889 = vmatprep.subr.bf16.mxu0 0
        %890 = vmatpush2.bf16.xpose.msra.mxu0 0
        %891 = vmatprep.subr.bf16.mxu0 0
        %892 = vmatpush2.bf16.xpose.msra.mxu0 0
        %893 = vmatprep.subr.bf16.mxu0 0
        %894 = vmatpush2.bf16.xpose.msra.mxu0 0
        %895 = vmatprep.subr.bf16.mxu0 0
        %896 = vmatpush2.bf16.xpose.msra.mxu0 0
        %897 = vmatprep.subr.bf16.mxu0 0
        %898 = vmatpush2.bf16.xpose.msra.mxu0 0
        %899 = vmatprep.subr.bf16.mxu0 0
        %900 = vmatpush2.bf16.xpose.msra.mxu0 0
        %901 = vmatprep.subr.bf16.mxu0 0
        %902 = vmatpush2.bf16.xpose.msra.mxu0 0
        %903 = vmatprep.subr.bf16.mxu0 0
        %904 = vmatpush2.bf16.xpose.msra.mxu0 0
        %905 = vmatprep.mubr.bf16.mxu0 0
        %906 = vmatmul.mubr.bf16.gmra.mxu0 %v868
        %v907 = vpop.f32.mrf.mxu0
        %v908 = vadd.f32 %v640, %v907
        %v909 = vpop.f32.mrf.mxu0
        %v910 = vpop.f32.mrf.mxu0
        %v911 = vpop.f32.mrf.mxu0
        %912 = vdwg.mxu0
        %v913 = vsel %vm645, %v908, -inf
        %914 = vmax.xlane.f32.xlu0 %v913
        %v915 = vpop.xlane.xlu0 %914
        %v916 = vsub.f32 %v908, %v915
        %v917 = vmul.f32 %v916, 1.442695
        %v918 = vpow.pop %v917
        %v919 = vsel %vm645, %v918, 0.0
        %920 = vadd.xlane.f32.xlu0 %v919
        %v921 = vpop.xlane.xlu0 %920
        %v922 = vrcp.pop %v921
        %v923 = vmul.f32 %v918, %v922
        %v924 = vpack.c.bf16 %v923, %v923
        %925 = vrot.lane.b32.xlu0 %v635, 48
        %v926 = vpop.permute.xlu0 %925
        %v928 = vsel %vm645, %v924, 0
        %v931 = vsel %vm709, %v926, 0
        %933 = vmatprep.subr.bf16.mxu0 0
        %934 = vmatpush1.bf16.msra.mxu0 0
        %935 = vmatprep.subr.bf16.mxu0 0
        %936 = vmatpush1.bf16.msra.mxu0 0
        %937 = vmatprep.subr.bf16.mxu0 0
        %938 = vmatpush1.bf16.msra.mxu0 0
        %939 = vmatprep.subr.bf16.mxu0 0
        %940 = vmatpush1.bf16.msra.mxu0 0
        %941 = vmatprep.subr.bf16.mxu0 0
        %942 = vmatpush1.bf16.msra.mxu0 0
        %943 = vmatprep.subr.bf16.mxu0 0
        %944 = vmatpush1.bf16.msra.mxu0 0
        %945 = vmatprep.subr.bf16.mxu0 0
        %946 = vmatpush1.bf16.msra.mxu0 0
        %947 = vmatprep.subr.bf16.mxu0 0
        %948 = vmatpush1.bf16.msra.mxu0 %v931
        %949 = vmatprep.subr.bf16.mxu0 0
        %950 = vmatpush2.bf16.msra.mxu0 0
        %951 = vmatprep.subr.bf16.mxu0 0
        %952 = vmatpush2.bf16.msra.mxu0 0
        %953 = vmatprep.subr.bf16.mxu0 0
        %954 = vmatpush2.bf16.msra.mxu0 0
        %955 = vmatprep.subr.bf16.mxu0 0
        %956 = vmatpush2.bf16.msra.mxu0 0
        %957 = vmatprep.subr.bf16.mxu0 0
        %958 = vmatpush2.bf16.msra.mxu0 0
        %959 = vmatprep.subr.bf16.mxu0 0
        %960 = vmatpush2.bf16.msra.mxu0 0
        %961 = vmatprep.subr.bf16.mxu0 0
        %962 = vmatpush2.bf16.msra.mxu0 0
        %963 = vmatprep.subr.bf16.mxu0 0
        %964 = vmatpush2.bf16.msra.mxu0 0
        %965 = vmatprep.mubr.bf16.mxu0 0
        %966 = vmatmul.mubr.bf16.gmra.mxu0 %v928
        %v967 = vpop.f32.mrf.mxu0
        %v968 = vadd.f32 0.0, %v967
        %v969 = vpop.f32.mrf.mxu0
        %v970 = vpop.f32.mrf.mxu0
        %v971 = vpop.f32.mrf.mxu0
        %972 = vdwg.mxu0
        %973 = vrot.lane.b32.xlu0 %v635, 104
        %v974 = vpop.permute.xlu0 %973
        %975 = vrot.lane.b32.xlu0 %v635, 72
        %v976 = vpop.permute.xlu0 %975
        %v978 = vsel %vm645, %v974, 0
        %v981 = vsel %vm645, %v976, 0
        %983 = vmatprep.subr.bf16.mxu0 0
        %984 = vmatpush1.bf16.xpose.msra.mxu0 0
        %985 = vmatprep.subr.bf16.mxu0 0
        %986 = vmatpush1.bf16.xpose.msra.mxu0 0
        %987 = vmatprep.subr.bf16.mxu0 0
        %988 = vmatpush1.bf16.xpose.msra.mxu0 0
        %989 = vmatprep.subr.bf16.mxu0 0
        %990 = vmatpush1.bf16.xpose.msra.mxu0 0
        %991 = vmatprep.subr.bf16.mxu0 0
        %992 = vmatpush1.bf16.xpose.msra.mxu0 0
        %993 = vmatprep.subr.bf16.mxu0 0
        %994 = vmatpush1.bf16.xpose.msra.mxu0 0
        %995 = vmatprep.subr.bf16.mxu0 0
        %996 = vmatpush1.bf16.xpose.msra.mxu0 0
        %997 = vmatprep.subr.bf16.mxu0 0
        %998 = vmatpush1.bf16.xpose.msra.mxu0 %v981
        %999 = vmatprep.subr.bf16.mxu0 0
        %1000 = vmatpush2.bf16.xpose.msra.mxu0 0
        %1001 = vmatprep.subr.bf16.mxu0 0
        %1002 = vmatpush2.bf16.xpose.msra.mxu0 0
        %1003 = vmatprep.subr.bf16.mxu0 0
        %1004 = vmatpush2.bf16.xpose.msra.mxu0 0
        %1005 = vmatprep.subr.bf16.mxu0 0
        %1006 = vmatpush2.bf16.xpose.msra.mxu0 0
        %1007 = vmatprep.subr.bf16.mxu0 0
        %1008 = vmatpush2.bf16.xpose.msra.mxu0 0
        %1009 = vmatprep.subr.bf16.mxu0 0
        %1010 = vmatpush2.bf16.xpose.msra.mxu0 0
        %1011 = vmatprep.subr.bf16.mxu0 0
        %1012 = vmatpush2.bf16.xpose.msra.mxu0 0
        %1013 = vmatprep.subr.bf16.mxu0 0
        %1014 = vmatpush2.bf16.xpose.msra.mxu0 0
        %1015 = vmatprep.mubr.bf16.mxu0 0
        %1016 = vmatmul.mubr.bf16.gmra.mxu0 %v978
        %v1017 = vpop.f32.mrf.mxu0
        %v1018 = vadd.f32 %v640, %v1017
        %v1019 = vpop.f32.mrf.mxu0
        %v1020 = vpop.f32.mrf.mxu0
        %v1021 = vpop.f32.mrf.mxu0
        %1022 = vdwg.mxu0
        %v1023 = vsel %vm645, %v1018, -inf
        %1024 = vmax.xlane.f32.xlu0 %v1023
        %v1025 = vpop.xlane.xlu0 %1024
        %v1026 = vsub.f32 %v1018, %v1025
        %v1027 = vmul.f32 %v1026, 1.442695
        %v1028 = vpow.pop %v1027
        %v1029 = vsel %vm645, %v1028, 0.0
        %1030 = vadd.xlane.f32.xlu0 %v1029
        %v1031 = vpop.xlane.xlu0 %1030
        %v1032 = vrcp.pop %v1031
        %v1033 = vmul.f32 %v1028, %v1032
        %v1034 = vpack.c.bf16 %v1033, %v1033
        %1035 = vrot.lane.b32.xlu0 %v635, 40
        %v1036 = vpop.permute.xlu0 %1035
        %v1038 = vsel %vm645, %v1034, 0
        %v1041 = vsel %vm709, %v1036, 0
        %1043 = vmatprep.subr.bf16.mxu0 0
        %1044 = vmatpush1.bf16.msra.mxu0 0
        %1045 = vmatprep.subr.bf16.mxu0 0
        %1046 = vmatpush1.bf16.msra.mxu0 0
        %1047 = vmatprep.subr.bf16.mxu0 0
        %1048 = vmatpush1.bf16.msra.mxu0 0
        %1049 = vmatprep.subr.bf16.mxu0 0
        %1050 = vmatpush1.bf16.msra.mxu0 0
        %1051 = vmatprep.subr.bf16.mxu0 0
        %1052 = vmatpush1.bf16.msra.mxu0 0
        %1053 = vmatprep.subr.bf16.mxu0 0
        %1054 = vmatpush1.bf16.msra.mxu0 0
        %1055 = vmatprep.subr.bf16.mxu0 0
        %1056 = vmatpush1.bf16.msra.mxu0 0
        %1057 = vmatprep.subr.bf16.mxu0 0
        %1058 = vmatpush1.bf16.msra.mxu0 %v1041
        %1059 = vmatprep.subr.bf16.mxu0 0
        %1060 = vmatpush2.bf16.msra.mxu0 0
        %1061 = vmatprep.subr.bf16.mxu0 0
        %1062 = vmatpush2.bf16.msra.mxu0 0
        %1063 = vmatprep.subr.bf16.mxu0 0
        %1064 = vmatpush2.bf16.msra.mxu0 0
        %1065 = vmatprep.subr.bf16.mxu0 0
        %1066 = vmatpush2.bf16.msra.mxu0 0
        %1067 = vmatprep.subr.bf16.mxu0 0
        %1068 = vmatpush2.bf16.msra.mxu0 0
        %1069 = vmatprep.subr.bf16.mxu0 0
        %1070 = vmatpush2.bf16.msra.mxu0 0
        %1071 = vmatprep.subr.bf16.mxu0 0
        %1072 = vmatpush2.bf16.msra.mxu0 0
        %1073 = vmatprep.subr.bf16.mxu0 0
        %1074 = vmatpush2.bf16.msra.mxu0 0
        %1075 = vmatprep.mubr.bf16.mxu0 0
        %1076 = vmatmul.mubr.bf16.gmra.mxu0 %v1038
        %v1077 = vpop.f32.mrf.mxu0
        %v1078 = vadd.f32 0.0, %v1077
        %v1079 = vpop.f32.mrf.mxu0
        %v1080 = vpop.f32.mrf.mxu0
        %v1081 = vpop.f32.mrf.mxu0
        %1082 = vdwg.mxu0
        %1084 = vrot.lane.b32.xlu0 %v858, 8
        %v1085 = vpop.permute.xlu0 %1084
        %1088 = vrot.lane.b32.xlu0 %v968, 16
        %v1089 = vpop.permute.xlu0 %1088
        %1092 = vrot.lane.b32.xlu0 %v1078, 24
        %v1093 = vpop.permute.xlu0 %1092
        %v1095 = vsel %vm645, %v748, %v1085
        %vm1096 = vcmask 130048
        %v1097 = vsel %vm1096, %v1095, %v1089
        %vm1098 = vcmask 195584
        %v1099 = vsel %vm1098, %v1097, %v1093
        %v1100 = vpack.c.bf16 %v1099, %v1099
        %v1101 = vld [vmem:[%s6] sm:$0xf]
        %v1102 = vld [vmem:[%s6 + $0x4] sm:$0xf]
        %v1103 = vld [vmem:[%s6 + $0x8] sm:$0xf]
        %v1104 = vld [vmem:[%s6 + $0xc] sm:$0xf]
        %v1105 = vld [vmem:[%s7] sm:$0x1]
        %v1107 = vlaneseq
        %v1108 = vshrl.u32 %v1107, 7
        %v1109 = vsub.s32 0, %v1108
        %v1110 = vrot.slane %v1105, %v1109
        %v1116 = vunpack.c.l.b16 %v1101
        %v1117 = vunpack.c.l.b16 %v1102
        %v1118 = vunpack.c.l.b16 %v1103
        %v1119 = vunpack.c.l.b16 %v1104
        %v1120 = vpack.c.b16 %v1117, %v1116
        %v1121 = vpack.c.b16 %v1119, %v1118
        %v1125 = vsel %vm535, %v1100, 0
        %1127 = vmatprep.subr.bf16.mxu0 0
        %1128 = vmatpush1.bf16.msra.mxu0 0
        %1129 = vmatprep.subr.bf16.mxu0 0
        %1130 = vmatpush1.bf16.msra.mxu0 0
        %1131 = vmatprep.subr.bf16.mxu0 0
        %1132 = vmatpush1.bf16.msra.mxu0 0
        %1133 = vmatprep.subr.bf16.mxu0 0
        %1134 = vmatpush1.bf16.msra.mxu0 0
        %1135 = vmatprep.subr.bf16.mxu0 0
        %1136 = vmatpush1.bf16.msra.mxu0 0
        %1137 = vmatprep.subr.bf16.mxu0 0
        %1138 = vmatpush1.bf16.msra.mxu0 0
        %1139 = vmatprep.subr.bf16.mxu0 0
        %1140 = vmatpush1.bf16.msra.mxu0 %v1121
        %1141 = vmatprep.subr.bf16.mxu0 0
        %1142 = vmatpush1.bf16.msra.mxu0 %v1120
        %1143 = vmatprep.subr.bf16.mxu0 0
        %1144 = vmatpush2.bf16.msra.mxu0 0
        %1145 = vmatprep.subr.bf16.mxu0 0
        %1146 = vmatpush2.bf16.msra.mxu0 0
        %1147 = vmatprep.subr.bf16.mxu0 0
        %1148 = vmatpush2.bf16.msra.mxu0 0
        %1149 = vmatprep.subr.bf16.mxu0 0
        %1150 = vmatpush2.bf16.msra.mxu0 0
        %1151 = vmatprep.subr.bf16.mxu0 0
        %1152 = vmatpush2.bf16.msra.mxu0 0
        %1153 = vmatprep.subr.bf16.mxu0 0
        %1154 = vmatpush2.bf16.msra.mxu0 0
        %1155 = vmatprep.subr.bf16.mxu0 0
        %1156 = vmatpush2.bf16.msra.mxu0 0
        %1157 = vmatprep.subr.bf16.mxu0 0
        %1158 = vmatpush2.bf16.msra.mxu0 0
        %1159 = vmatprep.mubr.bf16.mxu0 0
        %1160 = vmatmul.mubr.bf16.gmra.mxu0 %v1125
        %v1161 = vpop.f32.mrf.mxu0
        %v1162 = vadd.f32 %v1110, %v1161
        %v1163 = vpop.f32.mrf.mxu0
        %v1164 = vpop.f32.mrf.mxu0
        %v1165 = vpop.f32.mrf.mxu0
        %1166 = vdwg.mxu0
        %v1167 = vadd.f32 %v1162, %v566
        %v1168 = vld [vmem:[%s8] sm:$0x1]
        %v1169 = vld [vmem:[%s9] sm:$0x1]
        %v1170 = vsel %vm535, %v1167, 0.0
        %1171 = vadd.xlane.f32.xlu0 %v1170
        %v1172 = vpop.xlane.xlu0 %1171
        %v1173 = vmul.f32 %v1172, %v539
        %v1174 = vmul.f32 %v1167, %v1167
        %v1175 = vsel %vm535, %v1174, 0.0
        %1176 = vadd.xlane.f32.xlu0 %v1175
        %v1177 = vpop.xlane.xlu0 %1176
        %v1178 = vmul.f32 %v1177, %v539
        %v1179 = vmul.f32 %v1173, %v1173
        %v1180 = vsub.f32 %v1178, %v1179
        %v1181 = vmax.f32 %v1180, 0.0
        %v1182 = vsub.f32 %v1167, %v1173
        %v1183 = vadd.f32 %v1181, 1e-12
        %v1184 = vrsqrt.pop %v1183
        %v1185 = vmul.f32 %v1182, %v1184
        %v1187 = vlaneseq
        %v1188 = vshrl.u32 %v1187, 7
        %v1189 = vsub.s32 0, %v1188
        %v1190 = vrot.slane %v1168, %v1189
        %v1192 = vmul.f32 %v1185, %v1190
        %v1194 = vlaneseq
        %v1195 = vshrl.u32 %v1194, 7
        %v1196 = vsub.s32 0, %v1195
        %v1197 = vrot.slane %v1169, %v1196
        %v1199 = vadd.f32 %v1192, %v1197
        %v1200 = vpack.c.bf16 %v1199, %v1199
        %v1201 = vld [vmem:[%s10] sm:$0xf]
        %v1202 = vld [vmem:[%s10 + $0x4] sm:$0xf]
        %v1203 = vld [vmem:[%s10 + $0x8] sm:$0xf]
        %v1204 = vld [vmem:[%s10 + $0xc] sm:$0xf]
        %v1205 = vld [vmem:[%s11] sm:$0x1]
        %v1207 = vlaneseq
        %v1208 = vshrl.u32 %v1207, 7
        %v1209 = vsub.s32 0, %v1208
        %v1210 = vrot.slane %v1205, %v1209
        %v1216 = vunpack.c.l.b16 %v1201
        %v1217 = vunpack.c.l.b16 %v1202
        %v1218 = vunpack.c.l.b16 %v1203
        %v1219 = vunpack.c.l.b16 %v1204
        %v1220 = vpack.c.b16 %v1217, %v1216
        %v1221 = vpack.c.b16 %v1219, %v1218
        %v1225 = vsel %vm535, %v1200, 0
        %1227 = vmatprep.subr.bf16.mxu0 0
        %1228 = vmatpush1.bf16.msra.mxu0 0
        %1229 = vmatprep.subr.bf16.mxu0 0
        %1230 = vmatpush1.bf16.msra.mxu0 0
        %1231 = vmatprep.subr.bf16.mxu0 0
        %1232 = vmatpush1.bf16.msra.mxu0 0
        %1233 = vmatprep.subr.bf16.mxu0 0
        %1234 = vmatpush1.bf16.msra.mxu0 0
        %1235 = vmatprep.subr.bf16.mxu0 0
        %1236 = vmatpush1.bf16.msra.mxu0 0
        %1237 = vmatprep.subr.bf16.mxu0 0
        %1238 = vmatpush1.bf16.msra.mxu0 0
        %1239 = vmatprep.subr.bf16.mxu0 0
        %1240 = vmatpush1.bf16.msra.mxu0 %v1221
        %1241 = vmatprep.subr.bf16.mxu0 0
        %1242 = vmatpush1.bf16.msra.mxu0 %v1220
        %1243 = vmatprep.subr.bf16.mxu0 0
        %1244 = vmatpush2.bf16.msra.mxu0 0
        %1245 = vmatprep.subr.bf16.mxu0 0
        %1246 = vmatpush2.bf16.msra.mxu0 0
        %1247 = vmatprep.subr.bf16.mxu0 0
        %1248 = vmatpush2.bf16.msra.mxu0 0
        %1249 = vmatprep.subr.bf16.mxu0 0
        %1250 = vmatpush2.bf16.msra.mxu0 0
        %1251 = vmatprep.subr.bf16.mxu0 0
        %1252 = vmatpush2.bf16.msra.mxu0 0
        %1253 = vmatprep.subr.bf16.mxu0 0
        %1254 = vmatpush2.bf16.msra.mxu0 0
        %1255 = vmatprep.subr.bf16.mxu0 0
        %1256 = vmatpush2.bf16.msra.mxu0 0
        %1257 = vmatprep.subr.bf16.mxu0 0
        %1258 = vmatpush2.bf16.msra.mxu0 0
        %1259 = vmatprep.mubr.bf16.mxu0 0
        %1260 = vmatmul.mubr.bf16.gmra.mxu0 %v1225
        %v1261 = vpop.f32.mrf.mxu0
        %v1262 = vadd.f32 %v1210, %v1261
        %v1263 = vpop.f32.mrf.mxu0
        %v1264 = vpop.f32.mrf.mxu0
        %v1265 = vpop.f32.mrf.mxu0
        %1266 = vdwg.mxu0
        %v1267 = vmul.f32 %v1262, 0.5
        %v1268 = vmul.f32 %v1262, 0.70710677
        %v1269 = verf.f32.pop %v1268
        %v1270 = vadd.f32 %v1269, 1.0
        %v1271 = vmul.f32 %v1267, %v1270
        %v1272 = vpack.c.bf16 %v1271, %v1271
        %v1273 = vld [vmem:[%s12] sm:$0xf]
        %v1274 = vld [vmem:[%s12 + $0x4] sm:$0xf]
        %v1275 = vld [vmem:[%s12 + $0x8] sm:$0xf]
        %v1276 = vld [vmem:[%s12 + $0xc] sm:$0xf]
        %v1277 = vld [vmem:[%s12 + $0x10] sm:$0xf]
        %v1278 = vld [vmem:[%s12 + $0x14] sm:$0xf]
        %v1279 = vld [vmem:[%s12 + $0x18] sm:$0xf]
        %v1280 = vld [vmem:[%s12 + $0x1c] sm:$0xf]
        %v1281 = vld [vmem:[%s13] sm:$0x1]
        %v1283 = vlaneseq
        %v1284 = vshrl.u32 %v1283, 7
        %v1285 = vsub.s32 0, %v1284
        %v1286 = vrot.slane %v1281, %v1285
        %v1296 = vunpack.c.l.b16 %v1273
        %v1297 = vunpack.c.l.b16 %v1274
        %v1298 = vunpack.c.l.b16 %v1275
        %v1299 = vunpack.c.l.b16 %v1276
        %v1300 = vunpack.c.l.b16 %v1277
        %v1301 = vunpack.c.l.b16 %v1278
        %v1302 = vunpack.c.l.b16 %v1279
        %v1303 = vunpack.c.l.b16 %v1280
        %v1304 = vpack.c.b16 %v1297, %v1296
        %v1305 = vpack.c.b16 %v1299, %v1298
        %v1306 = vpack.c.b16 %v1301, %v1300
        %v1307 = vpack.c.b16 %v1303, %v1302
        %vm1312 = vcmask 523264
        %v1314 = vsel %vm1312, %v1272, 0
        %1316 = vmatprep.subr.bf16.mxu0 0
        %1317 = vmatpush1.bf16.msra.mxu0 0
        %1318 = vmatprep.subr.bf16.mxu0 0
        %1319 = vmatpush1.bf16.msra.mxu0 0
        %1320 = vmatprep.subr.bf16.mxu0 0
        %1321 = vmatpush1.bf16.msra.mxu0 0
        %1322 = vmatprep.subr.bf16.mxu0 0
        %1323 = vmatpush1.bf16.msra.mxu0 0
        %1324 = vmatprep.subr.bf16.mxu0 0
        %1325 = vmatpush1.bf16.msra.mxu0 %v1307
        %1326 = vmatprep.subr.bf16.mxu0 0
        %1327 = vmatpush1.bf16.msra.mxu0 %v1306
        %1328 = vmatprep.subr.bf16.mxu0 0
        %1329 = vmatpush1.bf16.msra.mxu0 %v1305
        %1330 = vmatprep.subr.bf16.mxu0 0
        %1331 = vmatpush1.bf16.msra.mxu0 %v1304
        %1332 = vmatprep.subr.bf16.mxu0 0
        %1333 = vmatpush2.bf16.msra.mxu0 0
        %1334 = vmatprep.subr.bf16.mxu0 0
        %1335 = vmatpush2.bf16.msra.mxu0 0
        %1336 = vmatprep.subr.bf16.mxu0 0
        %1337 = vmatpush2.bf16.msra.mxu0 0
        %1338 = vmatprep.subr.bf16.mxu0 0
        %1339 = vmatpush2.bf16.msra.mxu0 0
        %1340 = vmatprep.subr.bf16.mxu0 0
        %1341 = vmatpush2.bf16.msra.mxu0 0
        %1342 = vmatprep.subr.bf16.mxu0 0
        %1343 = vmatpush2.bf16.msra.mxu0 0
        %1344 = vmatprep.subr.bf16.mxu0 0
        %1345 = vmatpush2.bf16.msra.mxu0 0
        %1346 = vmatprep.subr.bf16.mxu0 0
        %1347 = vmatpush2.bf16.msra.mxu0 0
        %1348 = vmatprep.mubr.bf16.mxu0 0
        %1349 = vmatmul.mubr.bf16.gmra.mxu0 %v1314
        %v1350 = vpop.f32.mrf.mxu0
        %v1351 = vadd.f32 %v1286, %v1350
        %v1352 = vpop.f32.mrf.mxu0
        %v1353 = vpop.f32.mrf.mxu0
        %v1354 = vpop.f32.mrf.mxu0
        %1355 = vdwg.mxu0
        %v1356 = vadd.f32 %v1351, %v1199
        %v1357 = vld [vmem:[%s14] sm:$0x1]
        %v1358 = vld [vmem:[%s15] sm:$0x1]
        %v1359 = vsel %vm535, %v1356, 0.0
        %1360 = vadd.xlane.f32.xlu0 %v1359
        %v1361 = vpop.xlane.xlu0 %1360
        %v1362 = vmul.f32 %v1361, %v539
        %v1363 = vmul.f32 %v1356, %v1356
        %v1364 = vsel %vm535, %v1363, 0.0
        %1365 = vadd.xlane.f32.xlu0 %v1364
        %v1366 = vpop.xlane.xlu0 %1365
        %v1367 = vmul.f32 %v1366, %v539
        %v1368 = vmul.f32 %v1362, %v1362
        %v1369 = vsub.f32 %v1367, %v1368
        %v1370 = vmax.f32 %v1369, 0.0
        %v1371 = vsub.f32 %v1356, %v1362
        %v1372 = vadd.f32 %v1370, 1e-12
        %v1373 = vrsqrt.pop %v1372
        %v1374 = vmul.f32 %v1371, %v1373
        %v1376 = vlaneseq
        %v1377 = vshrl.u32 %v1376, 7
        %v1378 = vsub.s32 0, %v1377
        %v1379 = vrot.slane %v1357, %v1378
        %v1381 = vmul.f32 %v1374, %v1379
        %v1383 = vlaneseq
        %v1384 = vshrl.u32 %v1383, 7
        %v1385 = vsub.s32 0, %v1384
        %v1386 = vrot.slane %v1358, %v1385
        %v1388 = vadd.f32 %v1381, %v1386
        %v1389 = vpack.c.bf16 %v1388, %v1388
        %s1390 = scalar_lea.vmem %s4, 16
        %v1391 = vld [vmem:[%s1390] sm:$0xf]
        %v1392 = vld [vmem:[%s1390 + $0x4] sm:$0xf]
        %v1393 = vld [vmem:[%s1390 + $0x8] sm:$0xf]
        %v1394 = vld [vmem:[%s1390 + $0xc] sm:$0xf]
        %s1395 = scalar_lea.vmem %s5, 1
        %v1396 = vld [vmem:[%s1395] sm:$0x1]
        %v1398 = vlaneseq
        %v1399 = vshrl.u32 %v1398, 7
        %v1400 = vsub.s32 0, %v1399
        %v1401 = vrot.slane %v1396, %v1400
        %v1407 = vunpack.c.l.b16 %v1391
        %v1408 = vunpack.c.l.b16 %v1392
        %v1409 = vunpack.c.l.b16 %v1393
        %v1410 = vunpack.c.l.b16 %v1394
        %v1411 = vpack.c.b16 %v1408, %v1407
        %v1412 = vpack.c.b16 %v1410, %v1409
        %v1416 = vsel %vm535, %v1389, 0
        %1418 = vmatprep.subr.bf16.mxu0 0
        %1419 = vmatpush1.bf16.msra.mxu0 0
        %1420 = vmatprep.subr.bf16.mxu0 0
        %1421 = vmatpush1.bf16.msra.mxu0 0
        %1422 = vmatprep.subr.bf16.mxu0 0
        %1423 = vmatpush1.bf16.msra.mxu0 0
        %1424 = vmatprep.subr.bf16.mxu0 0
        %1425 = vmatpush1.bf16.msra.mxu0 0
        %1426 = vmatprep.subr.bf16.mxu0 0
        %1427 = vmatpush1.bf16.msra.mxu0 0
        %1428 = vmatprep.subr.bf16.mxu0 0
        %1429 = vmatpush1.bf16.msra.mxu0 0
        %1430 = vmatprep.subr.bf16.mxu0 0
        %1431 = vmatpush1.bf16.msra.mxu0 %v1412
        %1432 = vmatprep.subr.bf16.mxu0 0
        %1433 = vmatpush1.bf16.msra.mxu0 %v1411
        %1434 = vmatprep.subr.bf16.mxu0 0
        %1435 = vmatpush2.bf16.msra.mxu0 0
        %1436 = vmatprep.subr.bf16.mxu0 0
        %1437 = vmatpush2.bf16.msra.mxu0 0
        %1438 = vmatprep.subr.bf16.mxu0 0
        %1439 = vmatpush2.bf16.msra.mxu0 0
        %1440 = vmatprep.subr.bf16.mxu0 0
        %1441 = vmatpush2.bf16.msra.mxu0 0
        %1442 = vmatprep.subr.bf16.mxu0 0
        %1443 = vmatpush2.bf16.msra.mxu0 0
        %1444 = vmatprep.subr.bf16.mxu0 0
        %1445 = vmatpush2.bf16.msra.mxu0 0
        %1446 = vmatprep.subr.bf16.mxu0 0
        %1447 = vmatpush2.bf16.msra.mxu0 0
        %1448 = vmatprep.subr.bf16.mxu0 0
        %1449 = vmatpush2.bf16.msra.mxu0 0
        %1450 = vmatprep.mubr.bf16.mxu0 0
        %1451 = vmatmul.mubr.bf16.gmra.mxu0 %v1416
        %v1452 = vpop.f32.mrf.mxu0
        %v1453 = vadd.f32 %v1401, %v1452
        %v1454 = vpop.f32.mrf.mxu0
        %v1455 = vpop.f32.mrf.mxu0
        %v1456 = vpop.f32.mrf.mxu0
        %1457 = vdwg.mxu0
        %v1458 = vpack.c.bf16 %v1453, %v1453
        %1460 = vrot.lane.b32.xlu0 %v1458, 96
        %v1461 = vpop.permute.xlu0 %1460
        %v1463 = vsel %vm645, %v1458, 0
        %v1466 = vsel %vm645, %v1461, 0
        %1468 = vmatprep.subr.bf16.mxu0 0
        %1469 = vmatpush1.bf16.xpose.msra.mxu0 0
        %1470 = vmatprep.subr.bf16.mxu0 0
        %1471 = vmatpush1.bf16.xpose.msra.mxu0 0
        %1472 = vmatprep.subr.bf16.mxu0 0
        %1473 = vmatpush1.bf16.xpose.msra.mxu0 0
        %1474 = vmatprep.subr.bf16.mxu0 0
        %1475 = vmatpush1.bf16.xpose.msra.mxu0 0
        %1476 = vmatprep.subr.bf16.mxu0 0
        %1477 = vmatpush1.bf16.xpose.msra.mxu0 0
        %1478 = vmatprep.subr.bf16.mxu0 0
        %1479 = vmatpush1.bf16.xpose.msra.mxu0 0
        %1480 = vmatprep.subr.bf16.mxu0 0
        %1481 = vmatpush1.bf16.xpose.msra.mxu0 0
        %1482 = vmatprep.subr.bf16.mxu0 0
        %1483 = vmatpush1.bf16.xpose.msra.mxu0 %v1466
        %1484 = vmatprep.subr.bf16.mxu0 0
        %1485 = vmatpush2.bf16.xpose.msra.mxu0 0
        %1486 = vmatprep.subr.bf16.mxu0 0
        %1487 = vmatpush2.bf16.xpose.msra.mxu0 0
        %1488 = vmatprep.subr.bf16.mxu0 0
        %1489 = vmatpush2.bf16.xpose.msra.mxu0 0
        %1490 = vmatprep.subr.bf16.mxu0 0
        %1491 = vmatpush2.bf16.xpose.msra.mxu0 0
        %1492 = vmatprep.subr.bf16.mxu0 0
        %1493 = vmatpush2.bf16.xpose.msra.mxu0 0
        %1494 = vmatprep.subr.bf16.mxu0 0
        %1495 = vmatpush2.bf16.xpose.msra.mxu0 0
        %1496 = vmatprep.subr.bf16.mxu0 0
        %1497 = vmatpush2.bf16.xpose.msra.mxu0 0
        %1498 = vmatprep.subr.bf16.mxu0 0
        %1499 = vmatpush2.bf16.xpose.msra.mxu0 0
        %1500 = vmatprep.mubr.bf16.mxu0 0
        %1501 = vmatmul.mubr.bf16.gmra.mxu0 %v1463
        %v1502 = vpop.f32.mrf.mxu0
        %v1503 = vadd.f32 %v640, %v1502
        %v1504 = vpop.f32.mrf.mxu0
        %v1505 = vpop.f32.mrf.mxu0
        %v1506 = vpop.f32.mrf.mxu0
        %1507 = vdwg.mxu0
        %v1508 = vsel %vm645, %v1503, -inf
        %1509 = vmax.xlane.f32.xlu0 %v1508
        %v1510 = vpop.xlane.xlu0 %1509
        %v1511 = vsub.f32 %v1503, %v1510
        %v1512 = vmul.f32 %v1511, 1.442695
        %v1513 = vpow.pop %v1512
        %v1514 = vsel %vm645, %v1513, 0.0
        %1515 = vadd.xlane.f32.xlu0 %v1514
        %v1516 = vpop.xlane.xlu0 %1515
        %v1517 = vrcp.pop %v1516
        %v1518 = vmul.f32 %v1513, %v1517
        %v1519 = vpack.c.bf16 %v1518, %v1518
        %1520 = vrot.lane.b32.xlu0 %v1458, 64
        %v1521 = vpop.permute.xlu0 %1520
        %v1523 = vsel %vm645, %v1519, 0
        %v1526 = vsel %vm709, %v1521, 0
        %1528 = vmatprep.subr.bf16.mxu0 0
        %1529 = vmatpush1.bf16.msra.mxu0 0
        %1530 = vmatprep.subr.bf16.mxu0 0
        %1531 = vmatpush1.bf16.msra.mxu0 0
        %1532 = vmatprep.subr.bf16.mxu0 0
        %1533 = vmatpush1.bf16.msra.mxu0 0
        %1534 = vmatprep.subr.bf16.mxu0 0
        %1535 = vmatpush1.bf16.msra.mxu0 0
        %1536 = vmatprep.subr.bf16.mxu0 0
        %1537 = vmatpush1.bf16.msra.mxu0 0
        %1538 = vmatprep.subr.bf16.mxu0 0
        %1539 = vmatpush1.bf16.msra.mxu0 0
        %1540 = vmatprep.subr.bf16.mxu0 0
        %1541 = vmatpush1.bf16.msra.mxu0 0
        %1542 = vmatprep.subr.bf16.mxu0 0
        %1543 = vmatpush1.bf16.msra.mxu0 %v1526
        %1544 = vmatprep.subr.bf16.mxu0 0
        %1545 = vmatpush2.bf16.msra.mxu0 0
        %1546 = vmatprep.subr.bf16.mxu0 0
        %1547 = vmatpush2.bf16.msra.mxu0 0
        %1548 = vmatprep.subr.bf16.mxu0 0
        %1549 = vmatpush2.bf16.msra.mxu0 0
        %1550 = vmatprep.subr.bf16.mxu0 0
        %1551 = vmatpush2.bf16.msra.mxu0 0
        %1552 = vmatprep.subr.bf16.mxu0 0
        %1553 = vmatpush2.bf16.msra.mxu0 0
        %1554 = vmatprep.subr.bf16.mxu0 0
        %1555 = vmatpush2.bf16.msra.mxu0 0
        %1556 = vmatprep.subr.bf16.mxu0 0
        %1557 = vmatpush2.bf16.msra.mxu0 0
        %1558 = vmatprep.subr.bf16.mxu0 0
        %1559 = vmatpush2.bf16.msra.mxu0 0
        %1560 = vmatprep.mubr.bf16.mxu0 0
        %1561 = vmatmul.mubr.bf16.gmra.mxu0 %v1523
        %v1562 = vpop.f32.mrf.mxu0
        %v1563 = vadd.f32 0.0, %v1562
        %v1564 = vpop.f32.mrf.mxu0
        %v1565 = vpop.f32.mrf.mxu0
        %v1566 = vpop.f32.mrf.mxu0
        %1567 = vdwg.mxu0
        %1568 = vrot.lane.b32.xlu0 %v1458, 120
        %v1569 = vpop.permute.xlu0 %1568
        %1570 = vrot.lane.b32.xlu0 %v1458, 88
        %v1571 = vpop.permute.xlu0 %1570
        %v1573 = vsel %vm645, %v1569, 0
        %v1576 = vsel %vm645, %v1571, 0
        %1578 = vmatprep.subr.bf16.mxu0 0
        %1579 = vmatpush1.bf16.xpose.msra.mxu0 0
        %1580 = vmatprep.subr.bf16.mxu0 0
        %1581 = vmatpush1.bf16.xpose.msra.mxu0 0
        %1582 = vmatprep.subr.bf16.mxu0 0
        %1583 = vmatpush1.bf16.xpose.msra.mxu0 0
        %1584 = vmatprep.subr.bf16.mxu0 0
        %1585 = vmatpush1.bf16.xpose.msra.mxu0 0
        %1586 = vmatprep.subr.bf16.mxu0 0
        %1587 = vmatpush1.bf16.xpose.msra.mxu0 0
        %1588 = vmatprep.subr.bf16.mxu0 0
        %1589 = vmatpush1.bf16.xpose.msra.mxu0 0
        %1590 = vmatprep.subr.bf16.mxu0 0
        %1591 = vmatpush1.bf16.xpose.msra.mxu0 0
        %1592 = vmatprep.subr.bf16.mxu0 0
        %1593 = vmatpush1.bf16.xpose.msra.mxu0 %v1576
        %1594 = vmatprep.subr.bf16.mxu0 0
        %1595 = vmatpush2.bf16.xpose.msra.mxu0 0
        %1596 = vmatprep.subr.bf16.mxu0 0
        %1597 = vmatpush2.bf16.xpose.msra.mxu0 0
        %1598 = vmatprep.subr.bf16.mxu0 0
        %1599 = vmatpush2.bf16.xpose.msra.mxu0 0
        %1600 = vmatprep.subr.bf16.mxu0 0
        %1601 = vmatpush2.bf16.xpose.msra.mxu0 0
        %1602 = vmatprep.subr.bf16.mxu0 0
        %1603 = vmatpush2.bf16.xpose.msra.mxu0 0
        %1604 = vmatprep.subr.bf16.mxu0 0
        %1605 = vmatpush2.bf16.xpose.msra.mxu0 0
        %1606 = vmatprep.subr.bf16.mxu0 0
        %1607 = vmatpush2.bf16.xpose.msra.mxu0 0
        %1608 = vmatprep.subr.bf16.mxu0 0
        %1609 = vmatpush2.bf16.xpose.msra.mxu0 0
        %1610 = vmatprep.mubr.bf16.mxu0 0
        %1611 = vmatmul.mubr.bf16.gmra.mxu0 %v1573
        %v1612 = vpop.f32.mrf.mxu0
        %v1613 = vadd.f32 %v640, %v1612
        %v1614 = vpop.f32.mrf.mxu0
        %v1615 = vpop.f32.mrf.mxu0
        %v1616 = vpop.f32.mrf.mxu0
        %1617 = vdwg.mxu0
        %v1618 = vsel %vm645, %v1613, -inf
        %1619 = vmax.xlane.f32.xlu0 %v1618
        %v1620 = vpop.xlane.xlu0 %1619
        %v1621 = vsub.f32 %v1613, %v1620
        %v1622 = vmul.f32 %v1621, 1.442695
        %v1623 = vpow.pop %v1622
        %v1624 = vsel %vm645, %v1623, 0.0
        %1625 = vadd.xlane.f32.xlu0 %v1624
        %v1626 = vpop.xlane.xlu0 %1625
        %v1627 = vrcp.pop %v1626
        %v1628 = vmul.f32 %v1623, %v1627
        %v1629 = vpack.c.bf16 %v1628, %v1628
        %1630 = vrot.lane.b32.xlu0 %v1458, 56
        %v1631 = vpop.permute.xlu0 %1630
        %v1633 = vsel %vm645, %v1629, 0
        %v1636 = vsel %vm709, %v1631, 0
        %1638 = vmatprep.subr.bf16.mxu0 0
        %1639 = vmatpush1.bf16.msra.mxu0 0
        %1640 = vmatprep.subr.bf16.mxu0 0
        %1641 = vmatpush1.bf16.msra.mxu0 0
        %1642 = vmatprep.subr.bf16.mxu0 0
        %1643 = vmatpush1.bf16.msra.mxu0 0
        %1644 = vmatprep.subr.bf16.mxu0 0
        %1645 = vmatpush1.bf16.msra.mxu0 0
        %1646 = vmatprep.subr.bf16.mxu0 0
        %1647 = vmatpush1.bf16.msra.mxu0 0
        %1648 = vmatprep.subr.bf16.mxu0 0
        %1649 = vmatpush1.bf16.msra.mxu0 0
        %1650 = vmatprep.subr.bf16.mxu0 0
        %1651 = vmatpush1.bf16.msra.mxu0 0
        %1652 = vmatprep.subr.bf16.mxu0 0
        %1653 = vmatpush1.bf16.msra.mxu0 %v1636
        %1654 = vmatprep.subr.bf16.mxu0 0
        %1655 = vmatpush2.bf16.msra.mxu0 0
        %1656 = vmatprep.subr.bf16.mxu0 0
        %1657 = vmatpush2.bf16.msra.mxu0 0
        %1658 = vmatprep.subr.bf16.mxu0 0
        %1659 = vmatpush2.bf16.msra.mxu0 0
        %1660 = vmatprep.subr.bf16.mxu0 0
        %1661 = vmatpush2.bf16.msra.mxu0 0
        %1662 = vmatprep.subr.bf16.mxu0 0
        %1663 = vmatpush2.bf16.msra.mxu0 0
        %1664 = vmatprep.subr.bf16.mxu0 0
        %1665 = vmatpush2.bf16.msra.mxu0 0
        %1666 = vmatprep.subr.bf16.mxu0 0
        %1667 = vmatpush2.bf16.msra.mxu0 0
        %1668 = vmatprep.subr.bf16.mxu0 0
        %1669 = vmatpush2.bf16.msra.mxu0 0
        %1670 = vmatprep.mubr.bf16.mxu0 0
        %1671 = vmatmul.mubr.bf16.gmra.mxu0 %v1633
        %v1672 = vpop.f32.mrf.mxu0
        %v1673 = vadd.f32 0.0, %v1672
        %v1674 = vpop.f32.mrf.mxu0
        %v1675 = vpop.f32.mrf.mxu0
        %v1676 = vpop.f32.mrf.mxu0
        %1677 = vdwg.mxu0
        %1678 = vrot.lane.b32.xlu0 %v1458, 112
        %v1679 = vpop.permute.xlu0 %1678
        %1680 = vrot.lane.b32.xlu0 %v1458, 80
        %v1681 = vpop.permute.xlu0 %1680
        %v1683 = vsel %vm645, %v1679, 0
        %v1686 = vsel %vm645, %v1681, 0
        %1688 = vmatprep.subr.bf16.mxu0 0
        %1689 = vmatpush1.bf16.xpose.msra.mxu0 0
        %1690 = vmatprep.subr.bf16.mxu0 0
        %1691 = vmatpush1.bf16.xpose.msra.mxu0 0
        %1692 = vmatprep.subr.bf16.mxu0 0
        %1693 = vmatpush1.bf16.xpose.msra.mxu0 0
        %1694 = vmatprep.subr.bf16.mxu0 0
        %1695 = vmatpush1.bf16.xpose.msra.mxu0 0
        %1696 = vmatprep.subr.bf16.mxu0 0
        %1697 = vmatpush1.bf16.xpose.msra.mxu0 0
        %1698 = vmatprep.subr.bf16.mxu0 0
        %1699 = vmatpush1.bf16.xpose.msra.mxu0 0
        %1700 = vmatprep.subr.bf16.mxu0 0
        %1701 = vmatpush1.bf16.xpose.msra.mxu0 0
        %1702 = vmatprep.subr.bf16.mxu0 0
        %1703 = vmatpush1.bf16.xpose.msra.mxu0 %v1686
        %1704 = vmatprep.subr.bf16.mxu0 0
        %1705 = vmatpush2.bf16.xpose.msra.mxu0 0
        %1706 = vmatprep.subr.bf16.mxu0 0
        %1707 = vmatpush2.bf16.xpose.msra.mxu0 0
        %1708 = vmatprep.subr.bf16.mxu0 0
        %1709 = vmatpush2.bf16.xpose.msra.mxu0 0
        %1710 = vmatprep.subr.bf16.mxu0 0
        %1711 = vmatpush2.bf16.xpose.msra.mxu0 0
        %1712 = vmatprep.subr.bf16.mxu0 0
        %1713 = vmatpush2.bf16.xpose.msra.mxu0 0
        %1714 = vmatprep.subr.bf16.mxu0 0
        %1715 = vmatpush2.bf16.xpose.msra.mxu0 0
        %1716 = vmatprep.subr.bf16.mxu0 0
        %1717 = vmatpush2.bf16.xpose.msra.mxu0 0
        %1718 = vmatprep.subr.bf16.mxu0 0
        %1719 = vmatpush2.bf16.xpose.msra.mxu0 0
        %1720 = vmatprep.mubr.bf16.mxu0 0
        %1721 = vmatmul.mubr.bf16.gmra.mxu0 %v1683
        %v1722 = vpop.f32.mrf.mxu0
        %v1723 = vadd.f32 %v640, %v1722
        %v1724 = vpop.f32.mrf.mxu0
        %v1725 = vpop.f32.mrf.mxu0
        %v1726 = vpop.f32.mrf.mxu0
        %1727 = vdwg.mxu0
        %v1728 = vsel %vm645, %v1723, -inf
        %1729 = vmax.xlane.f32.xlu0 %v1728
        %v1730 = vpop.xlane.xlu0 %1729
        %v1731 = vsub.f32 %v1723, %v1730
        %v1732 = vmul.f32 %v1731, 1.442695
        %v1733 = vpow.pop %v1732
        %v1734 = vsel %vm645, %v1733, 0.0
        %1735 = vadd.xlane.f32.xlu0 %v1734
        %v1736 = vpop.xlane.xlu0 %1735
        %v1737 = vrcp.pop %v1736
        %v1738 = vmul.f32 %v1733, %v1737
        %v1739 = vpack.c.bf16 %v1738, %v1738
        %1740 = vrot.lane.b32.xlu0 %v1458, 48
        %v1741 = vpop.permute.xlu0 %1740
        %v1743 = vsel %vm645, %v1739, 0
        %v1746 = vsel %vm709, %v1741, 0
        %1748 = vmatprep.subr.bf16.mxu0 0
        %1749 = vmatpush1.bf16.msra.mxu0 0
        %1750 = vmatprep.subr.bf16.mxu0 0
        %1751 = vmatpush1.bf16.msra.mxu0 0
        %1752 = vmatprep.subr.bf16.mxu0 0
        %1753 = vmatpush1.bf16.msra.mxu0 0
        %1754 = vmatprep.subr.bf16.mxu0 0
        %1755 = vmatpush1.bf16.msra.mxu0 0
        %1756 = vmatprep.subr.bf16.mxu0 0
        %1757 = vmatpush1.bf16.msra.mxu0 0
        %1758 = vmatprep.subr.bf16.mxu0 0
        %1759 = vmatpush1.bf16.msra.mxu0 0
        %1760 = vmatprep.subr.bf16.mxu0 0
        %1761 = vmatpush1.bf16.msra.mxu0 0
        %1762 = vmatprep.subr.bf16.mxu0 0
        %1763 = vmatpush1.bf16.msra.mxu0 %v1746
        %1764 = vmatprep.subr.bf16.mxu0 0
        %1765 = vmatpush2.bf16.msra.mxu0 0
        %1766 = vmatprep.subr.bf16.mxu0 0
        %1767 = vmatpush2.bf16.msra.mxu0 0
        %1768 = vmatprep.subr.bf16.mxu0 0
        %1769 = vmatpush2.bf16.msra.mxu0 0
        %1770 = vmatprep.subr.bf16.mxu0 0
        %1771 = vmatpush2.bf16.msra.mxu0 0
        %1772 = vmatprep.subr.bf16.mxu0 0
        %1773 = vmatpush2.bf16.msra.mxu0 0
        %1774 = vmatprep.subr.bf16.mxu0 0
        %1775 = vmatpush2.bf16.msra.mxu0 0
        %1776 = vmatprep.subr.bf16.mxu0 0
        %1777 = vmatpush2.bf16.msra.mxu0 0
        %1778 = vmatprep.subr.bf16.mxu0 0
        %1779 = vmatpush2.bf16.msra.mxu0 0
        %1780 = vmatprep.mubr.bf16.mxu0 0
        %1781 = vmatmul.mubr.bf16.gmra.mxu0 %v1743
        %v1782 = vpop.f32.mrf.mxu0
        %v1783 = vadd.f32 0.0, %v1782
        %v1784 = vpop.f32.mrf.mxu0
        %v1785 = vpop.f32.mrf.mxu0
        %v1786 = vpop.f32.mrf.mxu0
        %1787 = vdwg.mxu0
        %1788 = vrot.lane.b32.xlu0 %v1458, 104
        %v1789 = vpop.permute.xlu0 %1788
        %1790 = vrot.lane.b32.xlu0 %v1458, 72
        %v1791 = vpop.permute.xlu0 %1790
        %v1793 = vsel %vm645, %v1789, 0
        %v1796 = vsel %vm645, %v1791, 0
        %1798 = vmatprep.subr.bf16.mxu0 0
        %1799 = vmatpush1.bf16.xpose.msra.mxu0 0
        %1800 = vmatprep.subr.bf16.mxu0 0
        %1801 = vmatpush1.bf16.xpose.msra.mxu0 0
        %1802 = vmatprep.subr.bf16.mxu0 0
        %1803 = vmatpush1.bf16.xpose.msra.mxu0 0
        %1804 = vmatprep.subr.bf16.mxu0 0
        %1805 = vmatpush1.bf16.xpose.msra.mxu0 0
        %1806 = vmatprep.subr.bf16.mxu0 0
        %1807 = vmatpush1.bf16.xpose.msra.mxu0 0
        %1808 = vmatprep.subr.bf16.mxu0 0
        %1809 = vmatpush1.bf16.xpose.msra.mxu0 0
        %1810 = vmatprep.subr.bf16.mxu0 0
        %1811 = vmatpush1.bf16.xpose.msra.mxu0 0
        %1812 = vmatprep.subr.bf16.mxu0 0
        %1813 = vmatpush1.bf16.xpose.msra.mxu0 %v1796
        %1814 = vmatprep.subr.bf16.mxu0 0
        %1815 = vmatpush2.bf16.xpose.msra.mxu0 0
        %1816 = vmatprep.subr.bf16.mxu0 0
        %1817 = vmatpush2.bf16.xpose.msra.mxu0 0
        %1818 = vmatprep.subr.bf16.mxu0 0
        %1819 = vmatpush2.bf16.xpose.msra.mxu0 0
        %1820 = vmatprep.subr.bf16.mxu0 0
        %1821 = vmatpush2.bf16.xpose.msra.mxu0 0
        %1822 = vmatprep.subr.bf16.mxu0 0
        %1823 = vmatpush2.bf16.xpose.msra.mxu0 0
        %1824 = vmatprep.subr.bf16.mxu0 0
        %1825 = vmatpush2.bf16.xpose.msra.mxu0 0
        %1826 = vmatprep.subr.bf16.mxu0 0
        %1827 = vmatpush2.bf16.xpose.msra.mxu0 0
        %1828 = vmatprep.subr.bf16.mxu0 0
        %1829 = vmatpush2.bf16.xpose.msra.mxu0 0
        %1830 = vmatprep.mubr.bf16.mxu0 0
        %1831 = vmatmul.mubr.bf16.gmra.mxu0 %v1793
        %v1832 = vpop.f32.mrf.mxu0
        %v1833 = vadd.f32 %v640, %v1832
        %v1834 = vpop.f32.mrf.mxu0
        %v1835 = vpop.f32.mrf.mxu0
        %v1836 = vpop.f32.mrf.mxu0
        %1837 = vdwg.mxu0
        %v1838 = vsel %vm645, %v1833, -inf
        %1839 = vmax.xlane.f32.xlu0 %v1838
        %v1840 = vpop.xlane.xlu0 %1839
        %v1841 = vsub.f32 %v1833, %v1840
        %v1842 = vmul.f32 %v1841, 1.442695
        %v1843 = vpow.pop %v1842
        %v1844 = vsel %vm645, %v1843, 0.0
        %1845 = vadd.xlane.f32.xlu0 %v1844
        %v1846 = vpop.xlane.xlu0 %1845
        %v1847 = vrcp.pop %v1846
        %v1848 = vmul.f32 %v1843, %v1847
        %v1849 = vpack.c.bf16 %v1848, %v1848
        %1850 = vrot.lane.b32.xlu0 %v1458, 40
        %v1851 = vpop.permute.xlu0 %1850
        %v1853 = vsel %vm645, %v1849, 0
        %v1856 = vsel %vm709, %v1851, 0
        %1858 = vmatprep.subr.bf16.mxu0 0
        %1859 = vmatpush1.bf16.msra.mxu0 0
        %1860 = vmatprep.subr.bf16.mxu0 0
        %1861 = vmatpush1.bf16.msra.mxu0 0
        %1862 = vmatprep.subr.bf16.mxu0 0
        %1863 = vmatpush1.bf16.msra.mxu0 0
        %1864 = vmatprep.subr.bf16.mxu0 0
        %1865 = vmatpush1.bf16.msra.mxu0 0
        %1866 = vmatprep.subr.bf16.mxu0 0
        %1867 = vmatpush1.bf16.msra.mxu0 0
        %1868 = vmatprep.subr.bf16.mxu0 0
        %1869 = vmatpush1.bf16.msra.mxu0 0
        %1870 = vmatprep.subr.bf16.mxu0 0
        %1871 = vmatpush1.bf16.msra.mxu0 0
        %1872 = vmatprep.subr.bf16.mxu0 0
        %1873 = vmatpush1.bf16.msra.mxu0 %v1856
        %1874 = vmatprep.subr.bf16.mxu0 0
        %1875 = vmatpush2.bf16.msra.mxu0 0
        %1876 = vmatprep.subr.bf16.mxu0 0
        %1877 = vmatpush2.bf16.msra.mxu0 0
        %1878 = vmatprep.subr.bf16.mxu0 0
        %1879 = vmatpush2.bf16.msra.mxu0 0
        %1880 = vmatprep.subr.bf16.mxu0 0
        %1881 = vmatpush2.bf16.msra.mxu0 0
        %1882 = vmatprep.subr.bf16.mxu0 0
        %1883 = vmatpush2.bf16.msra.mxu0 0
        %1884 = vmatprep.subr.bf16.mxu0 0
        %1885 = vmatpush2.bf16.msra.mxu0 0
        %1886 = vmatprep.subr.bf16.mxu0 0
        %1887 = vmatpush2.bf16.msra.mxu0 0
        %1888 = vmatprep.subr.bf16.mxu0 0
        %1889 = vmatpush2.bf16.msra.mxu0 0
        %1890 = vmatprep.mubr.bf16.mxu0 0
        %1891 = vmatmul.mubr.bf16.gmra.mxu0 %v1853
        %v1892 = vpop.f32.mrf.mxu0
        %v1893 = vadd.f32 0.0, %v1892
        %v1894 = vpop.f32.mrf.mxu0
        %v1895 = vpop.f32.mrf.mxu0
        %v1896 = vpop.f32.mrf.mxu0
        %1897 = vdwg.mxu0
        %1899 = vrot.lane.b32.xlu0 %v1673, 8
        %v1900 = vpop.permute.xlu0 %1899
        %1903 = vrot.lane.b32.xlu0 %v1783, 16
        %v1904 = vpop.permute.xlu0 %1903
        %1907 = vrot.lane.b32.xlu0 %v1893, 24
        %v1908 = vpop.permute.xlu0 %1907
        %v1910 = vsel %vm645, %v1563, %v1900
        %v1911 = vsel %vm1096, %v1910, %v1904
        %v1912 = vsel %vm1098, %v1911, %v1908
        %v1913 = vpack.c.bf16 %v1912, %v1912
        %s1914 = scalar_lea.vmem %s6, 16
        %v1915 = vld [vmem:[%s1914] sm:$0xf]
        %v1916 = vld [vmem:[%s1914 + $0x4] sm:$0xf]
        %v1917 = vld [vmem:[%s1914 + $0x8] sm:$0xf]
        %v1918 = vld [vmem:[%s1914 + $0xc] sm:$0xf]
        %s1919 = scalar_lea.vmem %s7, 1
        %v1920 = vld [vmem:[%s1919] sm:$0x1]
        %v1922 = vlaneseq
        %v1923 = vshrl.u32 %v1922, 7
        %v1924 = vsub.s32 0, %v1923
        %v1925 = vrot.slane %v1920, %v1924
        %v1931 = vunpack.c.l.b16 %v1915
        %v1932 = vunpack.c.l.b16 %v1916
        %v1933 = vunpack.c.l.b16 %v1917
        %v1934 = vunpack.c.l.b16 %v1918
        %v1935 = vpack.c.b16 %v1932, %v1931
        %v1936 = vpack.c.b16 %v1934, %v1933
        %v1940 = vsel %vm535, %v1913, 0
        %1942 = vmatprep.subr.bf16.mxu0 0
        %1943 = vmatpush1.bf16.msra.mxu0 0
        %1944 = vmatprep.subr.bf16.mxu0 0
        %1945 = vmatpush1.bf16.msra.mxu0 0
        %1946 = vmatprep.subr.bf16.mxu0 0
        %1947 = vmatpush1.bf16.msra.mxu0 0
        %1948 = vmatprep.subr.bf16.mxu0 0
        %1949 = vmatpush1.bf16.msra.mxu0 0
        %1950 = vmatprep.subr.bf16.mxu0 0
        %1951 = vmatpush1.bf16.msra.mxu0 0
        %1952 = vmatprep.subr.bf16.mxu0 0
        %1953 = vmatpush1.bf16.msra.mxu0 0
        %1954 = vmatprep.subr.bf16.mxu0 0
        %1955 = vmatpush1.bf16.msra.mxu0 %v1936
        %1956 = vmatprep.subr.bf16.mxu0 0
        %1957 = vmatpush1.bf16.msra.mxu0 %v1935
        %1958 = vmatprep.subr.bf16.mxu0 0
        %1959 = vmatpush2.bf16.msra.mxu0 0
        %1960 = vmatprep.subr.bf16.mxu0 0
        %1961 = vmatpush2.bf16.msra.mxu0 0
        %1962 = vmatprep.subr.bf16.mxu0 0
        %1963 = vmatpush2.bf16.msra.mxu0 0
        %1964 = vmatprep.subr.bf16.mxu0 0
        %1965 = vmatpush2.bf16.msra.mxu0 0
        %1966 = vmatprep.subr.bf16.mxu0 0
        %1967 = vmatpush2.bf16.msra.mxu0 0
        %1968 = vmatprep.subr.bf16.mxu0 0
        %1969 = vmatpush2.bf16.msra.mxu0 0
        %1970 = vmatprep.subr.bf16.mxu0 0
        %1971 = vmatpush2.bf16.msra.mxu0 0
        %1972 = vmatprep.subr.bf16.mxu0 0
        %1973 = vmatpush2.bf16.msra.mxu0 0
        %1974 = vmatprep.mubr.bf16.mxu0 0
        %1975 = vmatmul.mubr.bf16.gmra.mxu0 %v1940
        %v1976 = vpop.f32.mrf.mxu0
        %v1977 = vadd.f32 %v1925, %v1976
        %v1978 = vpop.f32.mrf.mxu0
        %v1979 = vpop.f32.mrf.mxu0
        %v1980 = vpop.f32.mrf.mxu0
        %1981 = vdwg.mxu0
        %v1982 = vadd.f32 %v1977, %v1388
        %s1983 = scalar_lea.vmem %s8, 1
        %v1984 = vld [vmem:[%s1983] sm:$0x1]
        %s1985 = scalar_lea.vmem %s9, 1
        %v1986 = vld [vmem:[%s1985] sm:$0x1]
        %v1987 = vsel %vm535, %v1982, 0.0
        %1988 = vadd.xlane.f32.xlu0 %v1987
        %v1989 = vpop.xlane.xlu0 %1988
        %v1990 = vmul.f32 %v1989, %v539
        %v1991 = vmul.f32 %v1982, %v1982
        %v1992 = vsel %vm535, %v1991, 0.0
        %1993 = vadd.xlane.f32.xlu0 %v1992
        %v1994 = vpop.xlane.xlu0 %1993
        %v1995 = vmul.f32 %v1994, %v539
        %v1996 = vmul.f32 %v1990, %v1990
        %v1997 = vsub.f32 %v1995, %v1996
        %v1998 = vmax.f32 %v1997, 0.0
        %v1999 = vsub.f32 %v1982, %v1990
        %v2000 = vadd.f32 %v1998, 1e-12
        %v2001 = vrsqrt.pop %v2000
        %v2002 = vmul.f32 %v1999, %v2001
        %v2004 = vlaneseq
        %v2005 = vshrl.u32 %v2004, 7
        %v2006 = vsub.s32 0, %v2005
        %v2007 = vrot.slane %v1984, %v2006
        %v2009 = vmul.f32 %v2002, %v2007
        %v2011 = vlaneseq
        %v2012 = vshrl.u32 %v2011, 7
        %v2013 = vsub.s32 0, %v2012
        %v2014 = vrot.slane %v1986, %v2013
        %v2016 = vadd.f32 %v2009, %v2014
        %v2017 = vpack.c.bf16 %v2016, %v2016
        %s2018 = scalar_lea.vmem %s10, 16
        %v2019 = vld [vmem:[%s2018] sm:$0xf]
        %v2020 = vld [vmem:[%s2018 + $0x4] sm:$0xf]
        %v2021 = vld [vmem:[%s2018 + $0x8] sm:$0xf]
        %v2022 = vld [vmem:[%s2018 + $0xc] sm:$0xf]
        %s2023 = scalar_lea.vmem %s11, 1
        %v2024 = vld [vmem:[%s2023] sm:$0x1]
        %v2026 = vlaneseq
        %v2027 = vshrl.u32 %v2026, 7
        %v2028 = vsub.s32 0, %v2027
        %v2029 = vrot.slane %v2024, %v2028
        %v2035 = vunpack.c.l.b16 %v2019
        %v2036 = vunpack.c.l.b16 %v2020
        %v2037 = vunpack.c.l.b16 %v2021
        %v2038 = vunpack.c.l.b16 %v2022
        %v2039 = vpack.c.b16 %v2036, %v2035
        %v2040 = vpack.c.b16 %v2038, %v2037
        %v2044 = vsel %vm535, %v2017, 0
        %2046 = vmatprep.subr.bf16.mxu0 0
        %2047 = vmatpush1.bf16.msra.mxu0 0
        %2048 = vmatprep.subr.bf16.mxu0 0
        %2049 = vmatpush1.bf16.msra.mxu0 0
        %2050 = vmatprep.subr.bf16.mxu0 0
        %2051 = vmatpush1.bf16.msra.mxu0 0
        %2052 = vmatprep.subr.bf16.mxu0 0
        %2053 = vmatpush1.bf16.msra.mxu0 0
        %2054 = vmatprep.subr.bf16.mxu0 0
        %2055 = vmatpush1.bf16.msra.mxu0 0
        %2056 = vmatprep.subr.bf16.mxu0 0
        %2057 = vmatpush1.bf16.msra.mxu0 0
        %2058 = vmatprep.subr.bf16.mxu0 0
        %2059 = vmatpush1.bf16.msra.mxu0 %v2040
        %2060 = vmatprep.subr.bf16.mxu0 0
        %2061 = vmatpush1.bf16.msra.mxu0 %v2039
        %2062 = vmatprep.subr.bf16.mxu0 0
        %2063 = vmatpush2.bf16.msra.mxu0 0
        %2064 = vmatprep.subr.bf16.mxu0 0
        %2065 = vmatpush2.bf16.msra.mxu0 0
        %2066 = vmatprep.subr.bf16.mxu0 0
        %2067 = vmatpush2.bf16.msra.mxu0 0
        %2068 = vmatprep.subr.bf16.mxu0 0
        %2069 = vmatpush2.bf16.msra.mxu0 0
        %2070 = vmatprep.subr.bf16.mxu0 0
        %2071 = vmatpush2.bf16.msra.mxu0 0
        %2072 = vmatprep.subr.bf16.mxu0 0
        %2073 = vmatpush2.bf16.msra.mxu0 0
        %2074 = vmatprep.subr.bf16.mxu0 0
        %2075 = vmatpush2.bf16.msra.mxu0 0
        %2076 = vmatprep.subr.bf16.mxu0 0
        %2077 = vmatpush2.bf16.msra.mxu0 0
        %2078 = vmatprep.mubr.bf16.mxu0 0
        %2079 = vmatmul.mubr.bf16.gmra.mxu0 %v2044
        %v2080 = vpop.f32.mrf.mxu0
        %v2081 = vadd.f32 %v2029, %v2080
        %v2082 = vpop.f32.mrf.mxu0
        %v2083 = vpop.f32.mrf.mxu0
        %v2084 = vpop.f32.mrf.mxu0
        %2085 = vdwg.mxu0
        %v2086 = vmul.f32 %v2081, 0.5
        %v2087 = vmul.f32 %v2081, 0.70710677
        %v2088 = verf.f32.pop %v2087
        %v2089 = vadd.f32 %v2088, 1.0
        %v2090 = vmul.f32 %v2086, %v2089
        %v2091 = vpack.c.bf16 %v2090, %v2090
        %s2092 = scalar_lea.vmem %s12, 32
        %v2093 = vld [vmem:[%s2092] sm:$0xf]
        %v2094 = vld [vmem:[%s2092 + $0x4] sm:$0xf]
        %v2095 = vld [vmem:[%s2092 + $0x8] sm:$0xf]
        %v2096 = vld [vmem:[%s2092 + $0xc] sm:$0xf]
        %v2097 = vld [vmem:[%s2092 + $0x10] sm:$0xf]
        %v2098 = vld [vmem:[%s2092 + $0x14] sm:$0xf]
        %v2099 = vld [vmem:[%s2092 + $0x18] sm:$0xf]
        %v2100 = vld [vmem:[%s2092 + $0x1c] sm:$0xf]
        %s2101 = scalar_lea.vmem %s13, 1
        %v2102 = vld [vmem:[%s2101] sm:$0x1]
        %v2104 = vlaneseq
        %v2105 = vshrl.u32 %v2104, 7
        %v2106 = vsub.s32 0, %v2105
        %v2107 = vrot.slane %v2102, %v2106
        %v2117 = vunpack.c.l.b16 %v2093
        %v2118 = vunpack.c.l.b16 %v2094
        %v2119 = vunpack.c.l.b16 %v2095
        %v2120 = vunpack.c.l.b16 %v2096
        %v2121 = vunpack.c.l.b16 %v2097
        %v2122 = vunpack.c.l.b16 %v2098
        %v2123 = vunpack.c.l.b16 %v2099
        %v2124 = vunpack.c.l.b16 %v2100
        %v2125 = vpack.c.b16 %v2118, %v2117
        %v2126 = vpack.c.b16 %v2120, %v2119
        %v2127 = vpack.c.b16 %v2122, %v2121
        %v2128 = vpack.c.b16 %v2124, %v2123
        %v2134 = vsel %vm1312, %v2091, 0
        %2136 = vmatprep.subr.bf16.mxu0 0
        %2137 = vmatpush1.bf16.msra.mxu0 0
        %2138 = vmatprep.subr.bf16.mxu0 0
        %2139 = vmatpush1.bf16.msra.mxu0 0
        %2140 = vmatprep.subr.bf16.mxu0 0
        %2141 = vmatpush1.bf16.msra.mxu0 0
        %2142 = vmatprep.subr.bf16.mxu0 0
        %2143 = vmatpush1.bf16.msra.mxu0 0
        %2144 = vmatprep.subr.bf16.mxu0 0
        %2145 = vmatpush1.bf16.msra.mxu0 %v2128
        %2146 = vmatprep.subr.bf16.mxu0 0
        %2147 = vmatpush1.bf16.msra.mxu0 %v2127
        %2148 = vmatprep.subr.bf16.mxu0 0
        %2149 = vmatpush1.bf16.msra.mxu0 %v2126
        %2150 = vmatprep.subr.bf16.mxu0 0
        %2151 = vmatpush1.bf16.msra.mxu0 %v2125
        %2152 = vmatprep.subr.bf16.mxu0 0
        %2153 = vmatpush2.bf16.msra.mxu0 0
        %2154 = vmatprep.subr.bf16.mxu0 0
        %2155 = vmatpush2.bf16.msra.mxu0 0
        %2156 = vmatprep.subr.bf16.mxu0 0
        %2157 = vmatpush2.bf16.msra.mxu0 0
        %2158 = vmatprep.subr.bf16.mxu0 0
        %2159 = vmatpush2.bf16.msra.mxu0 0
        %2160 = vmatprep.subr.bf16.mxu0 0
        %2161 = vmatpush2.bf16.msra.mxu0 0
        %2162 = vmatprep.subr.bf16.mxu0 0
        %2163 = vmatpush2.bf16.msra.mxu0 0
        %2164 = vmatprep.subr.bf16.mxu0 0
        %2165 = vmatpush2.bf16.msra.mxu0 0
        %2166 = vmatprep.subr.bf16.mxu0 0
        %2167 = vmatpush2.bf16.msra.mxu0 0
        %2168 = vmatprep.mubr.bf16.mxu0 0
        %2169 = vmatmul.mubr.bf16.gmra.mxu0 %v2134
        %v2170 = vpop.f32.mrf.mxu0
        %v2171 = vadd.f32 %v2107, %v2170
        %v2172 = vpop.f32.mrf.mxu0
        %v2173 = vpop.f32.mrf.mxu0
        %v2174 = vpop.f32.mrf.mxu0
        %2175 = vdwg.mxu0
        %v2176 = vadd.f32 %v2171, %v2016
        %s2177 = scalar_lea.vmem %s14, 1
        %v2178 = vld [vmem:[%s2177] sm:$0x1]
        %s2179 = scalar_lea.vmem %s15, 1
        %v2180 = vld [vmem:[%s2179] sm:$0x1]
        %v2181 = vsel %vm535, %v2176, 0.0
        %2182 = vadd.xlane.f32.xlu0 %v2181
        %v2183 = vpop.xlane.xlu0 %2182
        %v2184 = vmul.f32 %v2183, %v539
        %v2185 = vmul.f32 %v2176, %v2176
        %v2186 = vsel %vm535, %v2185, 0.0
        %2187 = vadd.xlane.f32.xlu0 %v2186
        %v2188 = vpop.xlane.xlu0 %2187
        %v2189 = vmul.f32 %v2188, %v539
        %v2190 = vmul.f32 %v2184, %v2184
        %v2191 = vsub.f32 %v2189, %v2190
        %v2192 = vmax.f32 %v2191, 0.0
        %v2193 = vsub.f32 %v2176, %v2184
        %v2194 = vadd.f32 %v2192, 1e-12
        %v2195 = vrsqrt.pop %v2194
        %v2196 = vmul.f32 %v2193, %v2195
        %v2198 = vlaneseq
        %v2199 = vshrl.u32 %v2198, 7
        %v2200 = vsub.s32 0, %v2199
        %v2201 = vrot.slane %v2178, %v2200
        %v2203 = vmul.f32 %v2196, %v2201
        %v2205 = vlaneseq
        %v2206 = vshrl.u32 %v2205, 7
        %v2207 = vsub.s32 0, %v2206
        %v2208 = vrot.slane %v2180, %v2207
        %v2210 = vadd.f32 %v2203, %v2208
        %2211 = vst.msk [vmem:[%s523] sm:$0xff] %vm535, %v2210
        %s2212 = sand.u32 %s384, 1
        %s2213 = scalar_lea.sflag [#allocation3], %s2212
        %s2214 = sand.u32 %s384, 1
        %s2215 = smul.addr %s2214, 8
        %s2216 = scalar_lea.vmem [#allocation2], %s2215
        // Predicated region
        $region85: #{text_encoder_forward.1} parent=83 // pred_check
          %p2217 = pneg %p394
        $region86: #{text_encoder_forward.1} parent=83 // pred_check_branch
          %2219 = sbr.rel (%p2217) target = $region88
        $region87: #{text_encoder_forward.1} parent=83 // pred_region
          %s2221 = ssub.s32 128, 128
          %2222 = vsyncadd %s2213, %s2221
          %s2223 = smul.addr %s30, 128
          %s2224 = scalar_lea.hbm %s16, %s2223
          %s2226 = sshll.u32 %s2216, 4
          %s2227 = int_to_ptr.vmem [resolvable:$true] %s2226
          %2229 = dma.vmem_to_hbm [thread:$0]  %s2227, 128, %s2224, %s2213
        $region88: #{text_encoder_forward.1} parent=83 // pred_fallthru
          _
      $region84: #{text_encoder_forward.1} parent=5 // pred_fallthru
        _
      %p2230 = scmp.le.s32.totalorder 2, %s25
      // Predicated region
      $region89: #{text_encoder_forward.1} parent=5 // pred_check
        %p2231 = pneg %p2230
      $region90: #{text_encoder_forward.1} parent=5 // pred_check_branch
        %2233 = sbr.rel (%p2231) target = $region92
      $region91: #{text_encoder_forward.1} parent=5 // pred_region
        %s2234 = ssub.s32 %s25, 2
        // Predicated region
        $region93: #{text_encoder_forward.1} parent=91 // pred_check
          %p2235 = pneg %p400
        $region94: #{text_encoder_forward.1} parent=91 // pred_check_branch
          %2237 = sbr.rel (%p2235) target = $region96
        $region95: #{text_encoder_forward.1} parent=91 // pred_region
          %s2238 = sand.u32 %s385, 1
          %s2239 = scalar_lea.sflag [#allocation3], %s2238
          %s2240 = sand.u32 %s385, 1
          %s2241 = smul.addr %s2240, 8
          %s2242 = scalar_lea.vmem [#allocation2], %s2241
          %2243 = dma.done %s2239, 128
        $region96: #{text_encoder_forward.1} parent=91 // pred_fallthru
          _
      $region92: #{text_encoder_forward.1} parent=5 // pred_fallthru
        _
    $region6: #{text_encoder_forward.1} parent=1 // loop_footer
      %s29 = sadd.s32 1, %s25
    $region7: #{text_encoder_forward.1} parent=1 // loop_footer_branch
      %24 = sbr.rel target = $region3
    $region8: #{text_encoder_forward.1} parent=1 // loop_exit
      _
    %2244 = vsyncpa [#allocation3], 1
    %s2245 = scalar_lea.sflag [#allocation3], 1
    %2246 = vsyncpa %s2245, 1

</llo_original>
